<compile_context>
chip_gen: v6e
topology: v6e:2x2x1
jax: 0.10.0
libtpu: 0.0.40
codegen_flags: <defaults>
</compile_context>

<pallas_src>
import functools

import jax
import jax.numpy as jnp
from jax import lax
from jax.experimental import pallas as pl
from jax.experimental.pallas import tpu as pltpu


# ----------------------------------------------------------------------------
# Pallas kernels
# ----------------------------------------------------------------------------
def _matmul_bias_kernel(x_ref, w_ref, b_ref, o_ref, *, relu):
    """One (TILE_M, K) x (K, N) tile: bf16 MXU matmul, f32 acc, bias [+ReLU]."""
    y = jnp.dot(x_ref[...].astype(jnp.bfloat16), w_ref[...],
                preferred_element_type=jnp.float32) + b_ref[...]
    if relu:
        y = jnp.maximum(y, 0.0)
    o_ref[...] = y.astype(o_ref.dtype)


def _round_up(x, m):
    return -(-x // m) * m


def _pick_tile_m(M, tile_m=512):
    """Pick a row tile that is a multiple of 8 (or the full M) and, when M is
    big enough, yields >=2 roughly-even 'parallel' grid steps so both v7x
    TensorCores are used (e.g. M=800 -> 400+400, M=128 -> 64+64)."""
    if M <= 8 or M % 8 != 0:
        return M
    n_tiles = max(2, -(-M // tile_m))
    return min(_round_up(-(-M // n_tiles), 8), M)


def pallas_linear(x, w_bf16, b_f32, *, relu=False, out_dtype=jnp.float32,
                  tile_m=512):
    """Fused (M,K)@(K,N)+bias[+ReLU], tiled & double-buffered over M rows.

    Weights/bias stay resident (constant index_map); rows stream through.
    Per-step VMEM footprint is a few MiB at tile_m<=512 — safe on every
    generation including v7x's 64 MiB physical / 32 MiB scoped VMEM.
    """
    M, K = x.shape
    K2, N = w_bf16.shape
    assert K == K2 and b_f32.shape == (1, N)
    tm = _pick_tile_m(M, tile_m)
    return pl.pallas_call(
        functools.partial(_matmul_bias_kernel, relu=relu),
        out_shape=jax.ShapeDtypeStruct((M, N), out_dtype),
        grid=(pl.cdiv(M, tm),),
        in_specs=[
            pl.BlockSpec((tm, K), lambda i: (i, 0)),
            pl.BlockSpec((K, N), lambda i: (0, 0)),
            pl.BlockSpec((1, N), lambda i: (0, 0)),
        ],
        out_specs=pl.BlockSpec((tm, N), lambda i: (i, 0)),
        compiler_params=pltpu.CompilerParams(
            dimension_semantics=("parallel",),
            vmem_limit_bytes=32 * 1024 * 1024),
    )(x, w_bf16, b_f32)


def _lstm_head_kernel(xg_ref, whh_ref, h0_ref, c0_ref, hw_ref, hb_ref,
                      out_ref, hT_ref, cT_ref, *, hidden, seq_len, unroll):
    """Single-invocation LSTM recurrence + fused pi/value head.

    xg_ref : (T, Bp, 4H) f32  precomputed x@W_ih + (b_ih+b_hh), time-major.
    whh_ref: (H, 4H)     bf16 recurrent weights (gate cols = [i, f, o, g]).
    hw_ref : (H, 128)    bf16 fused [pi | v | pad] head weights.
    out_ref: (T, Bp, 128) f32 lane-dense head output per timestep.
    """
    whh = whh_ref[...]
    hw = hw_ref[...]
    hb = hb_ref[...]

    def step(t, carry):
        h, c = carry
        xg_t = xg_ref[t]                                          # (Bp, 4H) f32
        gates = jnp.dot(h.astype(jnp.bfloat16), whh,
                        preferred_element_type=jnp.float32) + xg_t
        # gate order [i, f, o, g]: one contiguous sigmoid slice + one tanh.
        sfo = jax.nn.sigmoid(gates[:, :3 * hidden])
        i = sfo[:, 0 * hidden:1 * hidden]
        f = sfo[:, 1 * hidden:2 * hidden]
        o = sfo[:, 2 * hidden:3 * hidden]
        g = jnp.tanh(gates[:, 3 * hidden:])
        c = f * c + i * g
        h = o * jnp.tanh(c)
        # Fused head: one unmasked 128-lane store; hseq never hits HBM.
        out_ref[t] = (jnp.dot(h.astype(jnp.bfloat16), hw,
                              preferred_element_type=jnp.float32)
                      + hb).astype(out_ref.dtype)
        return h, c

    h, c = lax.fori_loop(0, seq_len, step, (h0_ref[...], c0_ref[...]),
                         unroll=unroll)
    hT_ref[...] = h
    cT_ref[...] = c


def pallas_lstm_head(xg_tm, whh, h0, c0, head_w, head_b, *, hidden):
    """xg_tm: (T, Bp, 4H) f32 time-major; returns (head (T,Bp,128), hT, cT)."""
    T, Bp, G = xg_tm.shape
    n_head = head_w.shape[1]
    kernel = functools.partial(_lstm_head_kernel, hidden=hidden, seq_len=T,
                               unroll=bool(T <= 16))
    return pl.pallas_call(
        kernel,
        out_shape=(
            jax.ShapeDtypeStruct((T, Bp, n_head), jnp.float32),
            jax.ShapeDtypeStruct((Bp, hidden), jnp.float32),
            jax.ShapeDtypeStruct((Bp, hidden), jnp.float32),
        ),
        grid=(1,),
        in_specs=[
            pl.BlockSpec((T, Bp, G), lambda i: (0, 0, 0)),
            pl.BlockSpec((hidden, G), lambda i: (0, 0)),
            pl.BlockSpec((Bp, hidden), lambda i: (0, 0)),
            pl.BlockSpec((Bp, hidden), lambda i: (0, 0)),
            pl.BlockSpec((hidden, n_head), lambda i: (0, 0)),
            pl.BlockSpec((1, n_head), lambda i: (0, 0)),
        ],
        out_specs=(
            pl.BlockSpec((T, Bp, n_head), lambda i: (0, 0, 0)),
            pl.BlockSpec((Bp, hidden), lambda i: (0, 0)),
            pl.BlockSpec((Bp, hidden), lambda i: (0, 0)),
        ),
        compiler_params=pltpu.CompilerParams(
            dimension_semantics=("arbitrary",)),
    )(xg_tm, whh, h0, c0, head_w, head_b)


# ----------------------------------------------------------------------------
# Glue: im2col patch extraction (data movement only), conv wrapper, params
# ----------------------------------------------------------------------------
def im2col(x, k, s):
    """x: (N, H, W, C) NHWC -> (N*oh*ow, k*k*C), patch feature order (kh, kw, c)."""
    N, H, W, C = x.shape
    oh = (H - k) // s + 1
    ow = (W - k) // s + 1
    cols = []
    for dy in range(k):
        for dx in range(k):
            cols.append(x[:, dy:dy + s * (oh - 1) + 1:s,
                          dx:dx + s * (ow - 1) + 1:s, :])
    p = jnp.stack(cols, axis=3)                    # (N, oh, ow, k*k, C)
    return p.reshape(N * oh * ow, k * k * C), oh, ow


def conv2d_relu(x, wm, b, k, stride):
    """wm: (k*k*in_c, out_c) bf16, b: (1, out_c) f32. im2col + fused matmul+ReLU."""
    patches, oh, ow = im2col(x, k, stride)
    y = pallas_linear(patches, wm, b, relu=True, out_dtype=jnp.bfloat16)
    return y.reshape(x.shape[0], oh, ow, wm.shape[1])


def _permute_gates(w, hidden):
    """PyTorch LSTM gate order [i, f, g, o] -> kernel order [i, f, o, g]."""
    i, f, g, o = jnp.split(w, 4, axis=-1)
    return jnp.concatenate([i, f, o, g], axis=-1)


def init_params(key, obs_shape, lstm_cell_size, num_outputs):
    """Deterministic synthetic init matching the shapes/init of TorchDQNLSTMModel.

    Conv layers: xavier_uniform weights + bias 0.01 (xavier_init); LSTM keeps
    PyTorch default +-1/sqrt(H); heads xavier + bias 0.01.  Weights stored
    bf16, biases (1, N) f32, 1/255 folded into conv0, gate cols permuted.
    """
    Himg, Wimg, C = obs_shape
    channels = [C, 32, 64, 64]
    kernels = [8, 4, 4]
    strides = [4, 2, 2]
    keys = iter(jax.random.split(key, 16))
    params = {}
    oh, ow = Himg, Wimg
    for li, (ci, co, kk, ss) in enumerate(
            zip(channels[:-1], channels[1:], kernels, strides)):
        fan_in, fan_out = kk * kk * ci, kk * kk * co
        bnd = (6.0 / (fan_in + fan_out)) ** 0.5
        w4 = jax.random.uniform(next(keys), (kk, kk, ci, co), jnp.float32,
                                -bnd, bnd)
        if li == 0:
            w4 = w4 * (1.0 / 255.0)   # fold PyTorch `.float()/255` into conv0
        params[f"conv{li}_wm"] = w4.reshape(kk * kk * ci, co).astype(jnp.bfloat16)
        params[f"conv{li}_b"] = jnp.full((1, co), 0.01, jnp.float32)
        oh = (oh - kk) // ss + 1
        ow = (ow - kk) // ss + 1
    feat = oh * ow * channels[-1]

    H = lstm_cell_size
    kb = 1.0 / (H ** 0.5)                            # PyTorch default LSTM init
    wih = jax.random.uniform(next(keys), (feat, 4 * H), jnp.float32, -kb, kb)
    whh = jax.random.uniform(next(keys), (H, 4 * H), jnp.float32, -kb, kb)
    bias = (jax.random.uniform(next(keys), (4 * H,), jnp.float32, -kb, kb)
            + jax.random.uniform(next(keys), (4 * H,), jnp.float32, -kb, kb))
    params["lstm_wih"] = _permute_gates(wih, H).astype(jnp.bfloat16)
    params["lstm_whh"] = _permute_gates(whh, H).astype(jnp.bfloat16)
    params["lstm_b"] = _permute_gates(bias, H).reshape(1, 4 * H).astype(jnp.float32)

    def xavier(k_, fi, fo):                          # xavier_uniform + bias 0.01
        bnd = (6.0 / (fi + fo)) ** 0.5
        return jax.random.uniform(k_, (fi, fo), jnp.float32, -bnd, bnd)

    pi_w = xavier(next(keys), H, num_outputs)
    v_w = xavier(next(keys), H, 1)
    # Fused, lane-dense head: [pi | v | zero-pad] up to a multiple of 128 lanes.
    n_head = max(128, _round_up(num_outputs + 1, 128))
    head_w = jnp.zeros((H, n_head), jnp.float32)
    head_w = head_w.at[:, :num_outputs].set(pi_w)
    head_w = head_w.at[:, num_outputs:num_outputs + 1].set(v_w)
    head_b = jnp.zeros((n_head,), jnp.float32)
    head_b = head_b.at[:num_outputs + 1].set(0.01)
    params["head_w"] = head_w.astype(jnp.bfloat16)
    params["head_b"] = head_b.reshape(1, n_head)
    return params, feat


def dqn_lstm_forward(params, obs, state, seq_len, lstm_cell_size, num_outputs):
    """obs: (B*T, H, W, C) uint8, state: (h0, c0) each (B, H_lstm) f32."""
    BT = obs.shape[0]
    B = BT // seq_len
    H = lstm_cell_size

    # `.float()/255`: the 1/255 is folded into conv0 weights; uint8->bf16 is
    # exact for 0..255 and XLA fuses it into the patch gather.
    x = obs.astype(jnp.bfloat16)
    x = conv2d_relu(x, params["conv0_wm"], params["conv0_b"], 8, 4)
    x = conv2d_relu(x, params["conv1_wm"], params["conv1_b"], 4, 2)
    x = conv2d_relu(x, params["conv2_wm"], params["conv2_b"], 4, 2)
    x_flat = x.reshape(BT, -1)

    # LSTM input projection hoisted out of the recurrence: one matmul over all
    # timesteps (both PyTorch biases folded in).
    xg = pallas_linear(x_flat, params["lstm_wih"], params["lstm_b"],
                       out_dtype=jnp.float32)
    # add_time_dimension (batch_first) then time-major for the single-invocation
    # LSTM kernel (leading-axis dynamic indexing); tiny f32 transpose.
    xg_tm = xg.reshape(B, seq_len, 4 * H).transpose(1, 0, 2)      # (T, B, 4H)

    # Pad batch up to 8 sublanes; padded rows (zero xg, zero state) stay zero.
    Bp = max(8, _round_up(B, 8))
    h0, c0 = state
    if Bp != B:
        xg_tm = jnp.pad(xg_tm, ((0, 0), (0, Bp - B), (0, 0)))
        h0 = jnp.pad(h0, ((0, Bp - B), (0, 0)))
        c0 = jnp.pad(c0, ((0, Bp - B), (0, 0)))

    head_tm, hT, cT = pallas_lstm_head(xg_tm, params["lstm_whh"], h0, c0,
                                       params["head_w"], params["head_b"],
                                       hidden=H)
    # (T, Bp, 128) -> (B*T, 128) in PyTorch's batch-major row order.
    head = head_tm[:, :B, :].transpose(1, 0, 2).reshape(BT, -1)
    logits = head[:, :num_outputs]
    value = head[:, num_outputs]
    return logits, value, (hT[:B], cT[:B])


# ----------------------------------------------------------------------------
if __name__ == "__main__":
    B, T = 2, 4
    Himg = Wimg = 44          # smallest spatial size valid for k=[8,4,4], s=[4,2,2]
    C = 4
    num_outputs = 6
    lstm_cell_size = 32

    key = jax.random.PRNGKey(0)
    kobs, kparams = jax.random.split(key)
    obs = jax.random.randint(kobs, (B * T, Himg, Wimg, C), 0, 256,
                             dtype=jnp.int32).astype(jnp.uint8)
    params, feat = init_params(kparams, (Himg, Wimg, C), lstm_cell_size,
                               num_outputs)

    # get_initial_state(): zeros of shape (lstm_cell_size,) per batch element
    h0 = jnp.zeros((B, lstm_cell_size), jnp.float32)
    c0 = jnp.zeros((B, lstm_cell_size), jnp.float32)

    fwd = jax.jit(dqn_lstm_forward, static_argnums=(3, 4, 5))
    logits, value, (h_out, c_out) = fwd(params, obs, (h0, c0), T,
                                        lstm_cell_size, num_outputs)
    jax.block_until_ready((logits, value, h_out, c_out))

    assert logits.shape == (B * T, num_outputs)
    assert value.shape == (B * T,)
    assert h_out.shape == (B, lstm_cell_size) and c_out.shape == (B, lstm_cell_size)
    assert bool(jnp.all(jnp.isfinite(logits))) and bool(jnp.all(jnp.isfinite(value)))
    print("KERNEL_OK")
</pallas_src>

<mosaic_0001>
module attributes {stable_mosaic.version = 11 : i64} {
  func.func @_matmul_bias_kernel(%arg0: i32, %arg1: memref<400x256xbf16, #tpu.memory_space<vmem>>, %arg2: memref<256x32xbf16, #tpu.memory_space<vmem>>, %arg3: memref<1x32xf32, #tpu.memory_space<vmem>>, %arg4: memref<400x32xbf16, #tpu.memory_space<vmem>>) attributes {dimension_semantics = [#tpu.dimension_semantics<parallel>], iteration_bounds = array<i64: 2>, scalar_prefetch = 0 : i64, scratch_operands = 0 : i64, tpu.core_type = #tpu.core_type<tc>, window_params = [{transform_indices = @transform_0, window_bounds = array<i64: 400, 256>}, {pipeline_mode = #tpu.pipeline_mode<synchronous>, transform_indices = @transform_1, window_bounds = array<i64: 256, 32>}, {pipeline_mode = #tpu.pipeline_mode<synchronous>, transform_indices = @transform_2, window_bounds = array<i64: 1, 32>}, {transform_indices = @transform_3, window_bounds = array<i64: 400, 32>}]} {
    %c0 = arith.constant 0 : index
    %c0_0 = arith.constant 0 : index
    %0 = vector.load %arg1[%c0, %c0_0] : memref<400x256xbf16, #tpu.memory_space<vmem>>, vector<400x256xbf16>
    %c0_1 = arith.constant 0 : index
    %c0_2 = arith.constant 0 : index
    %1 = vector.load %arg2[%c0_1, %c0_2] : memref<256x32xbf16, #tpu.memory_space<vmem>>, vector<256x32xbf16>
    %cst = arith.constant dense<0.000000e+00> : vector<400x32xf32>
    %2 = tpu.matmul %0, %1, %cst {dimension_numbers = #tpu.dot_dimension_numbers<[1], [0], [0], [1], [0, 0, 1, 1], [], []>} : vector<400x256xbf16>, vector<256x32xbf16>, vector<400x32xf32> -> vector<400x32xf32>
    %c0_3 = arith.constant 0 : index
    %c0_4 = arith.constant 0 : index
    %3 = vector.load %arg3[%c0_3, %c0_4] : memref<1x32xf32, #tpu.memory_space<vmem>>, vector<1x32xf32>
    %4 = vector.broadcast %3 : vector<1x32xf32> to vector<400x32xf32>
    %5 = arith.addf %2, %4 : vector<400x32xf32>
    %cst_5 = arith.constant 0.000000e+00 : f32
    %6 = vector.broadcast %cst_5 : f32 to vector<400x32xf32>
    %7 = arith.maximumf %5, %6 : vector<400x32xf32>
    %8 = arith.truncf %7 : vector<400x32xf32> to vector<400x32xbf16>
    %c0_6 = arith.constant 0 : index
    %c0_7 = arith.constant 0 : index
    %9 = vector.load %arg4[%c0_6, %c0_7] : memref<400x32xbf16, #tpu.memory_space<vmem>>, vector<400x32xbf16>
    tpu.vector_store %arg4[%c0_6, %c0_7], %8 {strides = array<i32>} : memref<400x32xbf16, #tpu.memory_space<vmem>>, vector<400x32xbf16>,
    return
  }
  func.func @transform_0(%arg0: i32) -> (i32, i32) {
    %c0_i32 = arith.constant 0 : i32
    %c0_i32_0 = arith.constant 0 : i32
    return %arg0, %c0_i32 : i32, i32
  }
  func.func @transform_1(%arg0: i32) -> (i32, i32) {
    %c0_i32 = arith.constant 0 : i32
    %c0_i32_0 = arith.constant 0 : i32
    %c0_i32_1 = arith.constant 0 : i32
    return %c0_i32, %c0_i32_0 : i32, i32
  }
  func.func @transform_2(%arg0: i32) -> (i32, i32) {
    %c0_i32 = arith.constant 0 : i32
    %c0_i32_0 = arith.constant 0 : i32
    %c0_i32_1 = arith.constant 0 : i32
    return %c0_i32, %c0_i32_0 : i32, i32
  }
  func.func @transform_3(%arg0: i32) -> (i32, i32) {
    %c0_i32 = arith.constant 0 : i32
    %c0_i32_0 = arith.constant 0 : i32
    return %arg0, %c0_i32 : i32, i32
  }
}

module attributes {stable_mosaic.version = 11 : i64} {
  func.func @_matmul_bias_kernel(%arg0: i32, %arg1: memref<64x512xbf16, #tpu.memory_space<vmem>>, %arg2: memref<512x64xbf16, #tpu.memory_space<vmem>>, %arg3: memref<1x64xf32, #tpu.memory_space<vmem>>, %arg4: memref<64x64xbf16, #tpu.memory_space<vmem>>) attributes {dimension_semantics = [#tpu.dimension_semantics<parallel>], iteration_bounds = array<i64: 2>, scalar_prefetch = 0 : i64, scratch_operands = 0 : i64, tpu.core_type = #tpu.core_type<tc>, window_params = [{transform_indices = @transform_0, window_bounds = array<i64: 64, 512>}, {pipeline_mode = #tpu.pipeline_mode<synchronous>, transform_indices = @transform_1, window_bounds = array<i64: 512, 64>}, {pipeline_mode = #tpu.pipeline_mode<synchronous>, transform_indices = @transform_2, window_bounds = array<i64: 1, 64>}, {transform_indices = @transform_3, window_bounds = array<i64: 64, 64>}]} {
    %c0 = arith.constant 0 : index
    %c0_0 = arith.constant 0 : index
    %0 = vector.load %arg1[%c0, %c0_0] : memref<64x512xbf16, #tpu.memory_space<vmem>>, vector<64x512xbf16>
    %c0_1 = arith.constant 0 : index
    %c0_2 = arith.constant 0 : index
    %1 = vector.load %arg2[%c0_1, %c0_2] : memref<512x64xbf16, #tpu.memory_space<vmem>>, vector<512x64xbf16>
    %cst = arith.constant dense<0.000000e+00> : vector<64x64xf32>
    %2 = tpu.matmul %0, %1, %cst {dimension_numbers = #tpu.dot_dimension_numbers<[1], [0], [0], [1], [0, 0, 1, 1], [], []>} : vector<64x512xbf16>, vector<512x64xbf16>, vector<64x64xf32> -> vector<64x64xf32>
    %c0_3 = arith.constant 0 : index
    %c0_4 = arith.constant 0 : index
    %3 = vector.load %arg3[%c0_3, %c0_4] : memref<1x64xf32, #tpu.memory_space<vmem>>, vector<1x64xf32>
    %4 = vector.broadcast %3 : vector<1x64xf32> to vector<64x64xf32>
    %5 = arith.addf %2, %4 : vector<64x64xf32>
    %cst_5 = arith.constant 0.000000e+00 : f32
    %6 = vector.broadcast %cst_5 : f32 to vector<64x64xf32>
    %7 = arith.maximumf %5, %6 : vector<64x64xf32>
    %8 = arith.truncf %7 : vector<64x64xf32> to vector<64x64xbf16>
    %c0_6 = arith.constant 0 : index
    %c0_7 = arith.constant 0 : index
    %9 = vector.load %arg4[%c0_6, %c0_7] : memref<64x64xbf16, #tpu.memory_space<vmem>>, vector<64x64xbf16>
    tpu.vector_store %arg4[%c0_6, %c0_7], %8 {strides = array<i32>} : memref<64x64xbf16, #tpu.memory_space<vmem>>, vector<64x64xbf16>,
    return
  }
  func.func @transform_0(%arg0: i32) -> (i32, i32) {
    %c0_i32 = arith.constant 0 : i32
    %c0_i32_0 = arith.constant 0 : i32
    return %arg0, %c0_i32 : i32, i32
  }
  func.func @transform_1(%arg0: i32) -> (i32, i32) {
    %c0_i32 = arith.constant 0 : i32
    %c0_i32_0 = arith.constant 0 : i32
    %c0_i32_1 = arith.constant 0 : i32
    return %c0_i32, %c0_i32_0 : i32, i32
  }
  func.func @transform_2(%arg0: i32) -> (i32, i32) {
    %c0_i32 = arith.constant 0 : i32
    %c0_i32_0 = arith.constant 0 : i32
    %c0_i32_1 = arith.constant 0 : i32
    return %c0_i32, %c0_i32_0 : i32, i32
  }
  func.func @transform_3(%arg0: i32) -> (i32, i32) {
    %c0_i32 = arith.constant 0 : i32
    %c0_i32_0 = arith.constant 0 : i32
    return %arg0, %c0_i32 : i32, i32
  }
}

module attributes {stable_mosaic.version = 11 : i64} {
  func.func @_matmul_bias_kernel(%arg0: i32, %arg1: memref<8x1024xbf16, #tpu.memory_space<vmem>>, %arg2: memref<1024x64xbf16, #tpu.memory_space<vmem>>, %arg3: memref<1x64xf32, #tpu.memory_space<vmem>>, %arg4: memref<8x64xbf16, #tpu.memory_space<vmem>>) attributes {dimension_semantics = [#tpu.dimension_semantics<parallel>], iteration_bounds = array<i64: 1>, scalar_prefetch = 0 : i64, scratch_operands = 0 : i64, tpu.core_type = #tpu.core_type<tc>, window_params = [{transform_indices = @transform_0, window_bounds = array<i64: 8, 1024>}, {pipeline_mode = #tpu.pipeline_mode<synchronous>, transform_indices = @transform_1, window_bounds = array<i64: 1024, 64>}, {pipeline_mode = #tpu.pipeline_mode<synchronous>, transform_indices = @transform_2, window_bounds = array<i64: 1, 64>}, {transform_indices = @transform_3, window_bounds = array<i64: 8, 64>}]} {
    %c0 = arith.constant 0 : index
    %c0_0 = arith.constant 0 : index
    %0 = vector.load %arg1[%c0, %c0_0] : memref<8x1024xbf16, #tpu.memory_space<vmem>>, vector<8x1024xbf16>
    %c0_1 = arith.constant 0 : index
    %c0_2 = arith.constant 0 : index
    %1 = vector.load %arg2[%c0_1, %c0_2] : memref<1024x64xbf16, #tpu.memory_space<vmem>>, vector<1024x64xbf16>
    %cst = arith.constant dense<0.000000e+00> : vector<8x64xf32>
    %2 = tpu.matmul %0, %1, %cst {dimension_numbers = #tpu.dot_dimension_numbers<[1], [0], [0], [1], [0, 0, 1, 1], [], []>} : vector<8x1024xbf16>, vector<1024x64xbf16>, vector<8x64xf32> -> vector<8x64xf32>
    %c0_3 = arith.constant 0 : index
    %c0_4 = arith.constant 0 : index
    %3 = vector.load %arg3[%c0_3, %c0_4] : memref<1x64xf32, #tpu.memory_space<vmem>>, vector<1x64xf32>
    %4 = vector.broadcast %3 : vector<1x64xf32> to vector<8x64xf32>
    %5 = arith.addf %2, %4 : vector<8x64xf32>
    %cst_5 = arith.constant 0.000000e+00 : f32
    %6 = vector.broadcast %cst_5 : f32 to vector<8x64xf32>
    %7 = arith.maximumf %5, %6 : vector<8x64xf32>
    %8 = arith.truncf %7 : vector<8x64xf32> to vector<8x64xbf16>
    %c0_6 = arith.constant 0 : index
    %c0_7 = arith.constant 0 : index
    %9 = vector.load %arg4[%c0_6, %c0_7] : memref<8x64xbf16, #tpu.memory_space<vmem>>, vector<8x64xbf16>
    tpu.vector_store %arg4[%c0_6, %c0_7], %8 {strides = array<i32>} : memref<8x64xbf16, #tpu.memory_space<vmem>>, vector<8x64xbf16>,
    return
  }
  func.func @transform_0(%arg0: i32) -> (i32, i32) {
    %c0_i32 = arith.constant 0 : i32
    %c0_i32_0 = arith.constant 0 : i32
    return %arg0, %c0_i32 : i32, i32
  }
  func.func @transform_1(%arg0: i32) -> (i32, i32) {
    %c0_i32 = arith.constant 0 : i32
    %c0_i32_0 = arith.constant 0 : i32
    %c0_i32_1 = arith.constant 0 : i32
    return %c0_i32, %c0_i32_0 : i32, i32
  }
  func.func @transform_2(%arg0: i32) -> (i32, i32) {
    %c0_i32 = arith.constant 0 : i32
    %c0_i32_0 = arith.constant 0 : i32
    %c0_i32_1 = arith.constant 0 : i32
    return %c0_i32, %c0_i32_0 : i32, i32
  }
  func.func @transform_3(%arg0: i32) -> (i32, i32) {
    %c0_i32 = arith.constant 0 : i32
    %c0_i32_0 = arith.constant 0 : i32
    return %arg0, %c0_i32 : i32, i32
  }
}

module attributes {stable_mosaic.version = 11 : i64} {
  func.func @_matmul_bias_kernel(%arg0: i32, %arg1: memref<8x64xbf16, #tpu.memory_space<vmem>>, %arg2: memref<64x128xbf16, #tpu.memory_space<vmem>>, %arg3: memref<1x128xf32, #tpu.memory_space<vmem>>, %arg4: memref<8x128xf32, #tpu.memory_space<vmem>>) attributes {dimension_semantics = [#tpu.dimension_semantics<parallel>], iteration_bounds = array<i64: 1>, scalar_prefetch = 0 : i64, scratch_operands = 0 : i64, tpu.core_type = #tpu.core_type<tc>, window_params = [{transform_indices = @transform_0, window_bounds = array<i64: 8, 64>}, {pipeline_mode = #tpu.pipeline_mode<synchronous>, transform_indices = @transform_1, window_bounds = array<i64: 64, 128>}, {pipeline_mode = #tpu.pipeline_mode<synchronous>, transform_indices = @transform_2, window_bounds = array<i64: 1, 128>}, {transform_indices = @transform_3, window_bounds = array<i64: 8, 128>}]} {
    %c0 = arith.constant 0 : index
    %c0_0 = arith.constant 0 : index
    %0 = vector.load %arg1[%c0, %c0_0] : memref<8x64xbf16, #tpu.memory_space<vmem>>, vector<8x64xbf16>
    %c0_1 = arith.constant 0 : index
    %c0_2 = arith.constant 0 : index
    %1 = vector.load %arg2[%c0_1, %c0_2] : memref<64x128xbf16, #tpu.memory_space<vmem>>, vector<64x128xbf16>
    %cst = arith.constant dense<0.000000e+00> : vector<8x128xf32>
    %2 = tpu.matmul %0, %1, %cst {dimension_numbers = #tpu.dot_dimension_numbers<[1], [0], [0], [1], [0, 0, 1, 1], [], []>} : vector<8x64xbf16>, vector<64x128xbf16>, vector<8x128xf32> -> vector<8x128xf32>
    %c0_3 = arith.constant 0 : index
    %c0_4 = arith.constant 0 : index
    %3 = vector.load %arg3[%c0_3, %c0_4] : memref<1x128xf32, #tpu.memory_space<vmem>>, vector<1x128xf32>
    %4 = vector.broadcast %3 : vector<1x128xf32> to vector<8x128xf32>
    %5 = arith.addf %2, %4 : vector<8x128xf32>
    %c0_5 = arith.constant 0 : index
    %c0_6 = arith.constant 0 : index
    %6 = vector.load %arg4[%c0_5, %c0_6] : memref<8x128xf32, #tpu.memory_space<vmem>>, vector<8x128xf32>
    tpu.vector_store %arg4[%c0_5, %c0_6], %5 {strides = array<i32>} : memref<8x128xf32, #tpu.memory_space<vmem>>, vector<8x128xf32>,
    return
  }
  func.func @transform_0(%arg0: i32) -> (i32, i32) {
    %c0_i32 = arith.constant 0 : i32
    %c0_i32_0 = arith.constant 0 : i32
    return %arg0, %c0_i32 : i32, i32
  }
  func.func @transform_1(%arg0: i32) -> (i32, i32) {
    %c0_i32 = arith.constant 0 : i32
    %c0_i32_0 = arith.constant 0 : i32
    %c0_i32_1 = arith.constant 0 : i32
    return %c0_i32, %c0_i32_0 : i32, i32
  }
  func.func @transform_2(%arg0: i32) -> (i32, i32) {
    %c0_i32 = arith.constant 0 : i32
    %c0_i32_0 = arith.constant 0 : i32
    %c0_i32_1 = arith.constant 0 : i32
    return %c0_i32, %c0_i32_0 : i32, i32
  }
  func.func @transform_3(%arg0: i32) -> (i32, i32) {
    %c0_i32 = arith.constant 0 : i32
    %c0_i32_0 = arith.constant 0 : i32
    return %arg0, %c0_i32 : i32, i32
  }
}

module attributes {stable_mosaic.version = 11 : i64} {
  func.func @_lstm_head_kernel(%arg0: i32, %arg1: memref<4x8x128xf32, #tpu.memory_space<vmem>>, %arg2: memref<32x128xbf16, #tpu.memory_space<vmem>>, %arg3: memref<8x32xf32, #tpu.memory_space<vmem>>, %arg4: memref<8x32xf32, #tpu.memory_space<vmem>>, %arg5: memref<32x128xbf16, #tpu.memory_space<vmem>>, %arg6: memref<1x128xf32, #tpu.memory_space<vmem>>, %arg7: memref<4x8x128xf32, #tpu.memory_space<vmem>>, %arg8: memref<8x32xf32, #tpu.memory_space<vmem>>, %arg9: memref<8x32xf32, #tpu.memory_space<vmem>>) attributes {dimension_semantics = [#tpu.dimension_semantics<arbitrary>], iteration_bounds = array<i64: 1>, scalar_prefetch = 0 : i64, scratch_operands = 0 : i64, tpu.core_type = #tpu.core_type<tc>, window_params = [{pipeline_mode = #tpu.pipeline_mode<synchronous>, transform_indices = @transform_0, window_bounds = array<i64: 4, 8, 128>}, {pipeline_mode = #tpu.pipeline_mode<synchronous>, transform_indices = @transform_1, window_bounds = array<i64: 32, 128>}, {pipeline_mode = #tpu.pipeline_mode<synchronous>, transform_indices = @transform_2, window_bounds = array<i64: 8, 32>}, {pipeline_mode = #tpu.pipeline_mode<synchronous>, transform_indices = @transform_3, window_bounds = array<i64: 8, 32>}, {pipeline_mode = #tpu.pipeline_mode<synchronous>, transform_indices = @transform_4, window_bounds = array<i64: 32, 128>}, {pipeline_mode = #tpu.pipeline_mode<synchronous>, transform_indices = @transform_5, window_bounds = array<i64: 1, 128>}, {pipeline_mode = #tpu.pipeline_mode<synchronous>, transform_indices = @transform_6, window_bounds = array<i64: 4, 8, 128>}, {pipeline_mode = #tpu.pipeline_mode<synchronous>, transform_indices = @transform_7, window_bounds = array<i64: 8, 32>}, {pipeline_mode = #tpu.pipeline_mode<synchronous>, transform_indices = @transform_8, window_bounds = array<i64: 8, 32>}]} {
    %c0 = arith.constant 0 : index
    %c0_0 = arith.constant 0 : index
    %0 = vector.load %arg2[%c0, %c0_0] : memref<32x128xbf16, #tpu.memory_space<vmem>>, vector<32x128xbf16>
    %c0_1 = arith.constant 0 : index
    %c0_2 = arith.constant 0 : index
    %1 = vector.load %arg5[%c0_1, %c0_2] : memref<32x128xbf16, #tpu.memory_space<vmem>>, vector<32x128xbf16>
    %c0_3 = arith.constant 0 : index
    %c0_4 = arith.constant 0 : index
    %2 = vector.load %arg6[%c0_3, %c0_4] : memref<1x128xf32, #tpu.memory_space<vmem>>, vector<1x128xf32>
    %c0_5 = arith.constant 0 : index
    %c0_6 = arith.constant 0 : index
    %3 = vector.load %arg3[%c0_5, %c0_6] : memref<8x32xf32, #tpu.memory_space<vmem>>, vector<8x32xf32>
    %c0_7 = arith.constant 0 : index
    %c0_8 = arith.constant 0 : index
    %4 = vector.load %arg4[%c0_7, %c0_8] : memref<8x32xf32, #tpu.memory_space<vmem>>, vector<8x32xf32>
    %c0_i32 = arith.constant 0 : i32
    %5 = arith.index_cast %c0_i32 : i32 to index
    %c0_9 = arith.constant 0 : index
    %c0_10 = arith.constant 0 : index
    %6 = vector.load %arg1[%5, %c0_9, %c0_10] : memref<4x8x128xf32, #tpu.memory_space<vmem>>, vector<1x8x128xf32>
    %7 = vector.shape_cast %6 : vector<1x8x128xf32> to vector<8x128xf32>
    %8 = arith.truncf %3 : vector<8x32xf32> to vector<8x32xbf16>
    %cst = arith.constant dense<0.000000e+00> : vector<8x128xf32>
    %9 = tpu.matmul %8, %0, %cst {dimension_numbers = #tpu.dot_dimension_numbers<[1], [0], [0], [1], [0, 0, 1, 1], [], []>} : vector<8x32xbf16>, vector<32x128xbf16>, vector<8x128xf32> -> vector<8x128xf32>
    %10 = arith.addf %9, %7 : vector<8x128xf32>
    %11 = vector.extract_strided_slice %10 {offsets = [0, 0], sizes = [8, 96], strides = [1, 1]} : vector<8x128xf32> to vector<8x96xf32>
    %12 = arith.negf %11 : vector<8x96xf32>
    %13 = math.exp %12 : vector<8x96xf32>
    %cst_11 = arith.constant 1.000000e+00 : f32
    %14 = vector.broadcast %cst_11 : f32 to vector<8x96xf32>
    %15 = arith.addf %14, %13 : vector<8x96xf32>
    %16 = arith.divf %14, %15 : vector<8x96xf32>
    %17 = vector.extract_strided_slice %16 {offsets = [0, 0], sizes = [8, 32], strides = [1, 1]} : vector<8x96xf32> to vector<8x32xf32>
    %18 = vector.extract_strided_slice %16 {offsets = [0, 32], sizes = [8, 32], strides = [1, 1]} : vector<8x96xf32> to vector<8x32xf32>
    %19 = vector.extract_strided_slice %16 {offsets = [0, 64], sizes = [8, 32], strides = [1, 1]} : vector<8x96xf32> to vector<8x32xf32>
    %20 = vector.extract_strided_slice %10 {offsets = [0, 96], sizes = [8, 32], strides = [1, 1]} : vector<8x128xf32> to vector<8x32xf32>
    %21 = math.tanh %20 : vector<8x32xf32>
    %22 = arith.mulf %18, %4 : vector<8x32xf32>
    %23 = arith.mulf %17, %21 : vector<8x32xf32>
    %24 = arith.addf %22, %23 : vector<8x32xf32>
    %25 = math.tanh %24 : vector<8x32xf32>
    %26 = arith.mulf %19, %25 : vector<8x32xf32>
    %27 = arith.truncf %26 : vector<8x32xf32> to vector<8x32xbf16>
    %cst_12 = arith.constant dense<0.000000e+00> : vector<8x128xf32>
    %28 = tpu.matmul %27, %1, %cst_12 {dimension_numbers = #tpu.dot_dimension_numbers<[1], [0], [0], [1], [0, 0, 1, 1], [], []>} : vector<8x32xbf16>, vector<32x128xbf16>, vector<8x128xf32> -> vector<8x128xf32>
    %29 = vector.broadcast %2 : vector<1x128xf32> to vector<8x128xf32>
    %30 = arith.addf %28, %29 : vector<8x128xf32>
    %31 = arith.index_cast %c0_i32 : i32 to index
    %c0_13 = arith.constant 0 : index
    %c0_14 = arith.constant 0 : index
    %32 = vector.load %arg7[%31, %c0_13, %c0_14] : memref<4x8x128xf32, #tpu.memory_space<vmem>>, vector<1x8x128xf32>
    %33 = vector.shape_cast %32 : vector<1x8x128xf32> to vector<8x128xf32>
    %34 = vector.shape_cast %30 : vector<8x128xf32> to vector<1x8x128xf32>
    tpu.vector_store %arg7[%31, %c0_13, %c0_14], %34 {strides = array<i32>} : memref<4x8x128xf32, #tpu.memory_space<vmem>>, vector<1x8x128xf32>,
    %c1_i32 = arith.constant 1 : i32
    %35 = arith.index_cast %c1_i32 : i32 to index
    %c0_15 = arith.constant 0 : index
    %c0_16 = arith.constant 0 : index
    %36 = vector.load %arg1[%35, %c0_15, %c0_16] : memref<4x8x128xf32, #tpu.memory_space<vmem>>, vector<1x8x128xf32>
    %37 = vector.shape_cast %36 : vector<1x8x128xf32> to vector<8x128xf32>
    %38 = arith.truncf %26 : vector<8x32xf32> to vector<8x32xbf16>
    %cst_17 = arith.constant dense<0.000000e+00> : vector<8x128xf32>
    %39 = tpu.matmul %38, %0, %cst_17 {dimension_numbers = #tpu.dot_dimension_numbers<[1], [0], [0], [1], [0, 0, 1, 1], [], []>} : vector<8x32xbf16>, vector<32x128xbf16>, vector<8x128xf32> -> vector<8x128xf32>
    %40 = arith.addf %39, %37 : vector<8x128xf32>
    %41 = vector.extract_strided_slice %40 {offsets = [0, 0], sizes = [8, 96], strides = [1, 1]} : vector<8x128xf32> to vector<8x96xf32>
    %42 = arith.negf %41 : vector<8x96xf32>
    %43 = math.exp %42 : vector<8x96xf32>
    %cst_18 = arith.constant 1.000000e+00 : f32
    %44 = vector.broadcast %cst_18 : f32 to vector<8x96xf32>
    %45 = arith.addf %44, %43 : vector<8x96xf32>
    %46 = arith.divf %44, %45 : vector<8x96xf32>
    %47 = vector.extract_strided_slice %46 {offsets = [0, 0], sizes = [8, 32], strides = [1, 1]} : vector<8x96xf32> to vector<8x32xf32>
    %48 = vector.extract_strided_slice %46 {offsets = [0, 32], sizes = [8, 32], strides = [1, 1]} : vector<8x96xf32> to vector<8x32xf32>
    %49 = vector.extract_strided_slice %46 {offsets = [0, 64], sizes = [8, 32], strides = [1, 1]} : vector<8x96xf32> to vector<8x32xf32>
    %50 = vector.extract_strided_slice %40 {offsets = [0, 96], sizes = [8, 32], strides = [1, 1]} : vector<8x128xf32> to vector<8x32xf32>
    %51 = math.tanh %50 : vector<8x32xf32>
    %52 = arith.mulf %48, %24 : vector<8x32xf32>
    %53 = arith.mulf %47, %51 : vector<8x32xf32>
    %54 = arith.addf %52, %53 : vector<8x32xf32>
    %55 = math.tanh %54 : vector<8x32xf32>
    %56 = arith.mulf %49, %55 : vector<8x32xf32>
    %57 = arith.truncf %56 : vector<8x32xf32> to vector<8x32xbf16>
    %cst_19 = arith.constant dense<0.000000e+00> : vector<8x128xf32>
    %58 = tpu.matmul %57, %1, %cst_19 {dimension_numbers = #tpu.dot_dimension_numbers<[1], [0], [0], [1], [0, 0, 1, 1], [], []>} : vector<8x32xbf16>, vector<32x128xbf16>, vector<8x128xf32> -> vector<8x128xf32>
    %59 = vector.broadcast %2 : vector<1x128xf32> to vector<8x128xf32>
    %60 = arith.addf %58, %59 : vector<8x128xf32>
    %61 = arith.index_cast %c1_i32 : i32 to index
    %c0_20 = arith.constant 0 : index
    %c0_21 = arith.constant 0 : index
    %62 = vector.load %arg7[%61, %c0_20, %c0_21] : memref<4x8x128xf32, #tpu.memory_space<vmem>>, vector<1x8x128xf32>
    %63 = vector.shape_cast %62 : vector<1x8x128xf32> to vector<8x128xf32>
    %64 = vector.shape_cast %60 : vector<8x128xf32> to vector<1x8x128xf32>
    tpu.vector_store %arg7[%61, %c0_20, %c0_21], %64 {strides = array<i32>} : memref<4x8x128xf32, #tpu.memory_space<vmem>>, vector<1x8x128xf32>,
    %c2_i32 = arith.constant 2 : i32
    %65 = arith.index_cast %c2_i32 : i32 to index
    %c0_22 = arith.constant 0 : index
    %c0_23 = arith.constant 0 : index
    %66 = vector.load %arg1[%65, %c0_22, %c0_23] : memref<4x8x128xf32, #tpu.memory_space<vmem>>, vector<1x8x128xf32>
    %67 = vector.shape_cast %66 : vector<1x8x128xf32> to vector<8x128xf32>
    %68 = arith.truncf %56 : vector<8x32xf32> to vector<8x32xbf16>
    %cst_24 = arith.constant dense<0.000000e+00> : vector<8x128xf32>
    %69 = tpu.matmul %68, %0, %cst_24 {dimension_numbers = #tpu.dot_dimension_numbers<[1], [0], [0], [1], [0, 0, 1, 1], [], []>} : vector<8x32xbf16>, vector<32x128xbf16>, vector<8x128xf32> -> vector<8x128xf32>
    %70 = arith.addf %69, %67 : vector<8x128xf32>
    %71 = vector.extract_strided_slice %70 {offsets = [0, 0], sizes = [8, 96], strides = [1, 1]} : vector<8x128xf32> to vector<8x96xf32>
    %72 = arith.negf %71 : vector<8x96xf32>
    %73 = math.exp %72 : vector<8x96xf32>
    %cst_25 = arith.constant 1.000000e+00 : f32
    %74 = vector.broadcast %cst_25 : f32 to vector<8x96xf32>
    %75 = arith.addf %74, %73 : vector<8x96xf32>
    %76 = arith.divf %74, %75 : vector<8x96xf32>
    %77 = vector.extract_strided_slice %76 {offsets = [0, 0], sizes = [8, 32], strides = [1, 1]} : vector<8x96xf32> to vector<8x32xf32>
    %78 = vector.extract_strided_slice %76 {offsets = [0, 32], sizes = [8, 32], strides = [1, 1]} : vector<8x96xf32> to vector<8x32xf32>
    %79 = vector.extract_strided_slice %76 {offsets = [0, 64], sizes = [8, 32], strides = [1, 1]} : vector<8x96xf32> to vector<8x32xf32>
    %80 = vector.extract_strided_slice %70 {offsets = [0, 96], sizes = [8, 32], strides = [1, 1]} : vector<8x128xf32> to vector<8x32xf32>
    %81 = math.tanh %80 : vector<8x32xf32>
    %82 = arith.mulf %78, %54 : vector<8x32xf32>
    %83 = arith.mulf %77, %81 : vector<8x32xf32>
    %84 = arith.addf %82, %83 : vector<8x32xf32>
    %85 = math.tanh %84 : vector<8x32xf32>
    %86 = arith.mulf %79, %85 : vector<8x32xf32>
    %87 = arith.truncf %86 : vector<8x32xf32> to vector<8x32xbf16>
    %cst_26 = arith.constant dense<0.000000e+00> : vector<8x128xf32>
    %88 = tpu.matmul %87, %1, %cst_26 {dimension_numbers = #tpu.dot_dimension_numbers<[1], [0], [0], [1], [0, 0, 1, 1], [], []>} : vector<8x32xbf16>, vector<32x128xbf16>, vector<8x128xf32> -> vector<8x128xf32>
    %89 = vector.broadcast %2 : vector<1x128xf32> to vector<8x128xf32>
    %90 = arith.addf %88, %89 : vector<8x128xf32>
    %91 = arith.index_cast %c2_i32 : i32 to index
    %c0_27 = arith.constant 0 : index
    %c0_28 = arith.constant 0 : index
    %92 = vector.load %arg7[%91, %c0_27, %c0_28] : memref<4x8x128xf32, #tpu.memory_space<vmem>>, vector<1x8x128xf32>
    %93 = vector.shape_cast %92 : vector<1x8x128xf32> to vector<8x128xf32>
    %94 = vector.shape_cast %90 : vector<8x128xf32> to vector<1x8x128xf32>
    tpu.vector_store %arg7[%91, %c0_27, %c0_28], %94 {strides = array<i32>} : memref<4x8x128xf32, #tpu.memory_space<vmem>>, vector<1x8x128xf32>,
    %c3_i32 = arith.constant 3 : i32
    %95 = arith.index_cast %c3_i32 : i32 to index
    %c0_29 = arith.constant 0 : index
    %c0_30 = arith.constant 0 : index
    %96 = vector.load %arg1[%95, %c0_29, %c0_30] : memref<4x8x128xf32, #tpu.memory_space<vmem>>, vector<1x8x128xf32>
    %97 = vector.shape_cast %96 : vector<1x8x128xf32> to vector<8x128xf32>
    %98 = arith.truncf %86 : vector<8x32xf32> to vector<8x32xbf16>
    %cst_31 = arith.constant dense<0.000000e+00> : vector<8x128xf32>
    %99 = tpu.matmul %98, %0, %cst_31 {dimension_numbers = #tpu.dot_dimension_numbers<[1], [0], [0], [1], [0, 0, 1, 1], [], []>} : vector<8x32xbf16>, vector<32x128xbf16>, vector<8x128xf32> -> vector<8x128xf32>
    %100 = arith.addf %99, %97 : vector<8x128xf32>
    %101 = vector.extract_strided_slice %100 {offsets = [0, 0], sizes = [8, 96], strides = [1, 1]} : vector<8x128xf32> to vector<8x96xf32>
    %102 = arith.negf %101 : vector<8x96xf32>
    %103 = math.exp %102 : vector<8x96xf32>
    %cst_32 = arith.constant 1.000000e+00 : f32
    %104 = vector.broadcast %cst_32 : f32 to vector<8x96xf32>
    %105 = arith.addf %104, %103 : vector<8x96xf32>
    %106 = arith.divf %104, %105 : vector<8x96xf32>
    %107 = vector.extract_strided_slice %106 {offsets = [0, 0], sizes = [8, 32], strides = [1, 1]} : vector<8x96xf32> to vector<8x32xf32>
    %108 = vector.extract_strided_slice %106 {offsets = [0, 32], sizes = [8, 32], strides = [1, 1]} : vector<8x96xf32> to vector<8x32xf32>
    %109 = vector.extract_strided_slice %106 {offsets = [0, 64], sizes = [8, 32], strides = [1, 1]} : vector<8x96xf32> to vector<8x32xf32>
    %110 = vector.extract_strided_slice %100 {offsets = [0, 96], sizes = [8, 32], strides = [1, 1]} : vector<8x128xf32> to vector<8x32xf32>
    %111 = math.tanh %110 : vector<8x32xf32>
    %112 = arith.mulf %108, %84 : vector<8x32xf32>
    %113 = arith.mulf %107, %111 : vector<8x32xf32>
    %114 = arith.addf %112, %113 : vector<8x32xf32>
    %115 = math.tanh %114 : vector<8x32xf32>
    %116 = arith.mulf %109, %115 : vector<8x32xf32>
    %117 = arith.truncf %116 : vector<8x32xf32> to vector<8x32xbf16>
    %cst_33 = arith.constant dense<0.000000e+00> : vector<8x128xf32>
    %118 = tpu.matmul %117, %1, %cst_33 {dimension_numbers = #tpu.dot_dimension_numbers<[1], [0], [0], [1], [0, 0, 1, 1], [], []>} : vector<8x32xbf16>, vector<32x128xbf16>, vector<8x128xf32> -> vector<8x128xf32>
    %119 = vector.broadcast %2 : vector<1x128xf32> to vector<8x128xf32>
    %120 = arith.addf %118, %119 : vector<8x128xf32>
    %121 = arith.index_cast %c3_i32 : i32 to index
    %c0_34 = arith.constant 0 : index
    %c0_35 = arith.constant 0 : index
    %122 = vector.load %arg7[%121, %c0_34, %c0_35] : memref<4x8x128xf32, #tpu.memory_space<vmem>>, vector<1x8x128xf32>
    %123 = vector.shape_cast %122 : vector<1x8x128xf32> to vector<8x128xf32>
    %124 = vector.shape_cast %120 : vector<8x128xf32> to vector<1x8x128xf32>
    tpu.vector_store %arg7[%121, %c0_34, %c0_35], %124 {strides = array<i32>} : memref<4x8x128xf32, #tpu.memory_space<vmem>>, vector<1x8x128xf32>,
    %c4_i32 = arith.constant 4 : i32
    %c0_36 = arith.constant 0 : index
    %c0_37 = arith.constant 0 : index
    %125 = vector.load %arg8[%c0_36, %c0_37] : memref<8x32xf32, #tpu.memory_space<vmem>>, vector<8x32xf32>
    tpu.vector_store %arg8[%c0_36, %c0_37], %116 {strides = array<i32>} : memref<8x32xf32, #tpu.memory_space<vmem>>, vector<8x32xf32>,
    %c0_38 = arith.constant 0 : index
    %c0_39 = arith.constant 0 : index
    %126 = vector.load %arg9[%c0_38, %c0_39] : memref<8x32xf32, #tpu.memory_space<vmem>>, vector<8x32xf32>
    tpu.vector_store %arg9[%c0_38, %c0_39], %114 {strides = array<i32>} : memref<8x32xf32, #tpu.memory_space<vmem>>, vector<8x32xf32>,
    return
  }
  func.func @transform_0(%arg0: i32) -> (i32, i32, i32) {
    %c0_i32 = arith.constant 0 : i32
    %c0_i32_0 = arith.constant 0 : i32
    %c0_i32_1 = arith.constant 0 : i32
    %c0_i32_2 = arith.constant 0 : i32
    return %c0_i32, %c0_i32_0, %c0_i32_1 : i32, i32, i32
  }
  func.func @transform_1(%arg0: i32) -> (i32, i32) {
    %c0_i32 = arith.constant 0 : i32
    %c0_i32_0 = arith.constant 0 : i32
    %c0_i32_1 = arith.constant 0 : i32
    return %c0_i32, %c0_i32_0 : i32, i32
  }
  func.func @transform_2(%arg0: i32) -> (i32, i32) {
    %c0_i32 = arith.constant 0 : i32
    %c0_i32_0 = arith.constant 0 : i32
    %c0_i32_1 = arith.constant 0 : i32
    return %c0_i32, %c0_i32_0 : i32, i32
  }
  func.func @transform_3(%arg0: i32) -> (i32, i32) {
    %c0_i32 = arith.constant 0 : i32
    %c0_i32_0 = arith.constant 0 : i32
    %c0_i32_1 = arith.constant 0 : i32
    return %c0_i32, %c0_i32_0 : i32, i32
  }
  func.func @transform_4(%arg0: i32) -> (i32, i32) {
    %c0_i32 = arith.constant 0 : i32
    %c0_i32_0 = arith.constant 0 : i32
    %c0_i32_1 = arith.constant 0 : i32
    return %c0_i32, %c0_i32_0 : i32, i32
  }
  func.func @transform_5(%arg0: i32) -> (i32, i32) {
    %c0_i32 = arith.constant 0 : i32
    %c0_i32_0 = arith.constant 0 : i32
    %c0_i32_1 = arith.constant 0 : i32
    return %c0_i32, %c0_i32_0 : i32, i32
  }
  func.func @transform_6(%arg0: i32) -> (i32, i32, i32) {
    %c0_i32 = arith.constant 0 : i32
    %c0_i32_0 = arith.constant 0 : i32
    %c0_i32_1 = arith.constant 0 : i32
    %c0_i32_2 = arith.constant 0 : i32
    return %c0_i32, %c0_i32_0, %c0_i32_1 : i32, i32, i32
  }
  func.func @transform_7(%arg0: i32) -> (i32, i32) {
    %c0_i32 = arith.constant 0 : i32
    %c0_i32_0 = arith.constant 0 : i32
    %c0_i32_1 = arith.constant 0 : i32
    return %c0_i32, %c0_i32_0 : i32, i32
  }
  func.func @transform_8(%arg0: i32) -> (i32, i32) {
    %c0_i32 = arith.constant 0 : i32
    %c0_i32_0 = arith.constant 0 : i32
    %c0_i32_1 = arith.constant 0 : i32
    return %c0_i32, %c0_i32_0 : i32, i32
  }
}

</mosaic_0001>

<llo_original>
// kernel: dqn_lstm_forward.5
$region0: #{dqn_lstm_forward.5}
  #allocation0 [shape = 'u32[]', space=smem, size = 0x4, offset = 0x4, fixed_abs, tag = 'smem constant byte address 0x4 - core index']
  #allocation1 [shape = 'u32[144,128]{1,0:T(1,128)}', space=vmem, size = 0x12000, scoped, tag = 'internal scratch']
  %s0 = inlined_call_operand.vmem [shape: bf16[800,256], index: 0, kind: input, shape index: {}]
  %s1 = inlined_call_operand.vmem [shape: bf16[256,32], index: 1, kind: input, shape index: {}]
  %s2 = inlined_call_operand.vmem [shape: f32[1,32], index: 2, kind: input, shape index: {}]
  %s3 = inlined_call_operand.vmem [shape: bf16[800,32], index: 3, kind: output, shape index: {}]
  %s4 = sld [smem:[#allocation0]]
  $region45: #{dqn_lstm_forward.5} parent=0
    _
  %s6 = ssub.s32 1, %s4
  %s7 = scalar_select 0, %s6, %s4
  loop: start=0, step=1, limit=4
  $region2: #{dqn_lstm_forward.5} parent=0 // loop_pre_header
    _
  $region3: #{dqn_lstm_forward.5} parent=0 // loop_header
    %s9 = sphi 0, %s13
    %p10 = scmp.ge.s32.totalorder %s9, 4
    %s19 = sphi 0, %s21
    %s22 = sphi 0, %s19
    %s23 = sphi 0, %s22
    %s39 = sphi 0, %s23
    %s43 = sphi 0, %s43
    %s45 = sphi 0, %s43
    %s46 = sphi 0, %s45
    %s60 = sphi 0, %s46
    %s64 = sphi 0, %s64
    %s66 = sphi 0, %s64
    %s67 = sphi 0, %s66
    %s81 = sphi 0, %s67
    %s87 = sphi 0, %s89
    %s90 = sphi 0, %s87
    %s91 = sphi 0, %s90
    %s107 = sphi 0, %s91
  $region4: #{dqn_lstm_forward.5} parent=0 // loop_header_branch
    %12 = sbr.rel (%p10) target = $region8
  $region5: #{dqn_lstm_forward.5} parent=0 // loop_body
    %s14 = ssub.s32 %s9, 1
    %s15 = ssub.s32 %s9, 2
    %s16 = sadd.s32 %s9, 1
    %s17 = ssub.s32 %s9, %s16
    %p18 = scmp.eq.s32.totalorder %s17, 0
    %s20 = sadd.s32 %s19, 1
    %s21 = scalar_select %p18, %s19, %s20
    %p24 = pneg %p18
    %p25 = scmp.eq.s32.totalorder %s9, 1
    %p26 = por %p24, %p25
    %p27 = scmp.ne.s32.totalorder %s19, %s22
    %p28 = scmp.eq.s32.totalorder %s9, 0
    %p29 = por %p27, %p28
    %p30 = scmp.ne.s32.totalorder %s19, %s22
    %p31 = scmp.eq.s32.totalorder %s14, 1
    %p32 = por %p30, %p31
    %p33 = scmp.ne.s32.totalorder %s22, %s23
    %p34 = scmp.eq.s32.totalorder %s14, 0
    %p35 = por %p33, %p34
    %p36 = scmp.ne.s32.totalorder %s22, %s23
    %p37 = scmp.eq.s32.totalorder %s15, 1
    %p38 = por %p36, %p37
    %p40 = scmp.ne.s32.totalorder %s23, %s39
    %p41 = scmp.eq.s32.totalorder %s15, 0
    %p42 = por %p40, %p41
    %s44 = sadd.s32 %s43, 1
    %p47 = scmp.eq.s32.totalorder %s9, 1
    %p48 = scmp.ne.s32.totalorder %s43, %s45
    %p49 = scmp.eq.s32.totalorder %s9, 0
    %p50 = por %p48, %p49
    %p51 = scmp.ne.s32.totalorder %s43, %s45
    %p52 = scmp.eq.s32.totalorder %s14, 1
    %p53 = por %p51, %p52
    %p54 = scmp.ne.s32.totalorder %s45, %s46
    %p55 = scmp.eq.s32.totalorder %s14, 0
    %p56 = por %p54, %p55
    %p57 = scmp.ne.s32.totalorder %s45, %s46
    %p58 = scmp.eq.s32.totalorder %s15, 1
    %p59 = por %p57, %p58
    %p61 = scmp.ne.s32.totalorder %s46, %s60
    %p62 = scmp.eq.s32.totalorder %s15, 0
    %p63 = por %p61, %p62
    %s65 = sadd.s32 %s64, 1
    %p68 = scmp.eq.s32.totalorder %s9, 1
    %p69 = scmp.ne.s32.totalorder %s64, %s66
    %p70 = scmp.eq.s32.totalorder %s9, 0
    %p71 = por %p69, %p70
    %p72 = scmp.ne.s32.totalorder %s64, %s66
    %p73 = scmp.eq.s32.totalorder %s14, 1
    %p74 = por %p72, %p73
    %p75 = scmp.ne.s32.totalorder %s66, %s67
    %p76 = scmp.eq.s32.totalorder %s14, 0
    %p77 = por %p75, %p76
    %p78 = scmp.ne.s32.totalorder %s66, %s67
    %p79 = scmp.eq.s32.totalorder %s15, 1
    %p80 = por %p78, %p79
    %p82 = scmp.ne.s32.totalorder %s67, %s81
    %p83 = scmp.eq.s32.totalorder %s15, 0
    %p84 = por %p82, %p83
    %s85 = ssub.s32 %s9, %s16
    %p86 = scmp.eq.s32.totalorder %s85, 0
    %s88 = sadd.s32 %s87, 1
    %s89 = scalar_select %p86, %s87, %s88
    %p92 = pneg %p86
    %p93 = scmp.eq.s32.totalorder %s9, 1
    %p94 = por %p92, %p93
    %p95 = scmp.ne.s32.totalorder %s87, %s90
    %p96 = scmp.eq.s32.totalorder %s9, 0
    %p97 = por %p95, %p96
    %p98 = scmp.ne.s32.totalorder %s87, %s90
    %p99 = scmp.eq.s32.totalorder %s14, 1
    %p100 = por %p98, %p99
    %p101 = scmp.ne.s32.totalorder %s90, %s91
    %p102 = scmp.eq.s32.totalorder %s14, 0
    %p103 = por %p101, %p102
    %p104 = scmp.ne.s32.totalorder %s90, %s91
    %p105 = scmp.eq.s32.totalorder %s15, 1
    %p106 = por %p104, %p105
    %p108 = scmp.ne.s32.totalorder %s91, %s107
    %p109 = scmp.eq.s32.totalorder %s15, 0
    %p110 = por %p108, %p109
    %p111 = scmp.le.s32.totalorder 1, %s9
    %p112 = scmp.lt.s32.totalorder %s9, 3
    %p113 = pnand %p111, %p112
    %p114 = pneg %p113
    // Predicated region
    $region9: #{dqn_lstm_forward.5} parent=5 // pred_check
      _
    $region10: #{dqn_lstm_forward.5} parent=5 // pred_check_branch
      %116 = sbr.rel (%p113) target = $region12
    $region11: #{dqn_lstm_forward.5} parent=5 // pred_region
      %s117 = ssub.s32 %s9, 1
      // Predicated region
      $region13: #{dqn_lstm_forward.5} parent=11 // pred_check
        %p118 = pneg %p56
      $region14: #{dqn_lstm_forward.5} parent=11 // pred_check_branch
        %120 = sbr.rel (%p118) target = $region16
      $region15: #{dqn_lstm_forward.5} parent=11 // pred_region
        _
      $region16: #{dqn_lstm_forward.5} parent=11 // pred_fallthru
        _
      // Predicated region
      $region17: #{dqn_lstm_forward.5} parent=11 // pred_check
        %p121 = pneg %p77
      $region18: #{dqn_lstm_forward.5} parent=11 // pred_check_branch
        %123 = sbr.rel (%p121) target = $region20
      $region19: #{dqn_lstm_forward.5} parent=11 // pred_region
        _
      $region20: #{dqn_lstm_forward.5} parent=11 // pred_fallthru
        _
    $region12: #{dqn_lstm_forward.5} parent=5 // pred_fallthru
      _
    %p124 = scmp.lt.s32.totalorder %s9, 2
    // Predicated region
    $region21: #{dqn_lstm_forward.5} parent=5 // pred_check
      %p125 = pneg %p124
    $region22: #{dqn_lstm_forward.5} parent=5 // pred_check_branch
      %127 = sbr.rel (%p125) target = $region24
    $region23: #{dqn_lstm_forward.5} parent=5 // pred_region
      // Predicated region
      $region25: #{dqn_lstm_forward.5} parent=23 // pred_check
        %p128 = pneg %p29
      $region26: #{dqn_lstm_forward.5} parent=23 // pred_check_branch
        %130 = sbr.rel (%p128) target = $region28
      $region27: #{dqn_lstm_forward.5} parent=23 // pred_region
        %s131 = smul.u32 50, %s9
        %p132 = scmp.lt.s32.totalorder %s131, 99
        %s133 = scalar_select %p132, %s131, 99
        %s134 = smul.addr %s133, 2
        %s135 = smul.addr %s134, 4
        %s136 = scalar_lea.vmem %s0, %s135
        %s137 = smul.u32 50, %s9
      $region28: #{dqn_lstm_forward.5} parent=23 // pred_fallthru
        _
    $region24: #{dqn_lstm_forward.5} parent=5 // pred_fallthru
      _
    %p138 = scmp.le.s32.totalorder 1, %s9
    %p139 = scmp.lt.s32.totalorder %s9, 3
    %p140 = pnand %p138, %p139
    %p141 = pneg %p140
    // Predicated region
    $region29: #{dqn_lstm_forward.5} parent=5 // pred_check
      _
    $region30: #{dqn_lstm_forward.5} parent=5 // pred_check_branch
      %143 = sbr.rel (%p140) target = $region32
    $region31: #{dqn_lstm_forward.5} parent=5 // pred_region
      %s144 = ssub.s32 %s9, 1
      %s145 = smul.u32 50, %s14
      %p146 = scmp.lt.s32.totalorder %s145, 99
      %s147 = scalar_select %p146, %s145, 99
      %s148 = smul.addr %s147, 2
      %s149 = smul.addr %s148, 4
      %s150 = scalar_lea.vmem %s0, %s149
      %p151 = pneg %p35
      %p152 = pneg %p32
      %p153 = pneg %p56
      %p154 = pneg %p53
      %p155 = pneg %p77
      %p156 = pneg %p74
      %p157 = pneg %p103
      %p158 = pneg %p100
      %s159 = smul.u32 50, %s14
      %p160 = scmp.lt.s32.totalorder %s159, 99
      %s161 = scalar_select %p160, %s159, 99
      %s162 = smul.addr %s161, 4
      %s163 = scalar_lea.vmem %s3, %s162
      %s164 = smul.u32 50, %s14
      %p165 = scmp.lt.s32.totalorder %s164, 99
      %s166 = scalar_select %p165, %s164, 99
      %s167 = smul.addr %s166, 2
      %s168 = smul.addr %s167, 4
      %s169 = scalar_lea.vmem %s0, %s168
      %s170 = smul.u32 50, %s14
      %s171 = smul.u32 50, %s14
      %p172 = scmp.lt.s32.totalorder %s171, 99
      %s173 = scalar_select %p172, %s171, 99
      %s174 = smul.addr %s173, 4
      %s175 = scalar_lea.vmem %s3, %s174
      %s176 = smul.u32 50, %s14
      %v178 = vld [vmem:[%s169] sm:$0xff]
      %v179 = vld [vmem:[%s169 + $0x8] sm:$0xff]
      %v180 = vld [vmem:[%s169 + $0x10] sm:$0xff]
      %v181 = vld [vmem:[%s169 + $0x18] sm:$0xff]
      %v182 = vld [vmem:[%s169 + $0x20] sm:$0xff]
      %v183 = vld [vmem:[%s169 + $0x28] sm:$0xff]
      %v184 = vld [vmem:[%s169 + $0x30] sm:$0xff]
      %v185 = vld [vmem:[%s169 + $0x38] sm:$0xff]
      %v186 = vld [vmem:[%s169 + $0x40] sm:$0xff]
      %v187 = vld [vmem:[%s169 + $0x48] sm:$0xff]
      %v188 = vld [vmem:[%s169 + $0x50] sm:$0xff]
      %v189 = vld [vmem:[%s169 + $0x58] sm:$0xff]
      %v190 = vld [vmem:[%s169 + $0x60] sm:$0xff]
      %v191 = vld [vmem:[%s169 + $0x68] sm:$0xff]
      %v192 = vld [vmem:[%s169 + $0x70] sm:$0xff]
      %v193 = vld [vmem:[%s169 + $0x78] sm:$0xff]
      %v194 = vld [vmem:[%s169 + $0x80] sm:$0xff]
      %v195 = vld [vmem:[%s169 + $0x88] sm:$0xff]
      %v196 = vld [vmem:[%s169 + $0x90] sm:$0xff]
      %v197 = vld [vmem:[%s169 + $0x98] sm:$0xff]
      %v198 = vld [vmem:[%s169 + $0xa0] sm:$0xff]
      %v199 = vld [vmem:[%s169 + $0xa8] sm:$0xff]
      %v200 = vld [vmem:[%s169 + $0xb0] sm:$0xff]
      %v201 = vld [vmem:[%s169 + $0xb8] sm:$0xff]
      %v202 = vld [vmem:[%s169 + $0xc0] sm:$0xff]
      %v203 = vld [vmem:[%s169 + $0xc8] sm:$0xff]
      %v204 = vld [vmem:[%s169 + $0xd0] sm:$0xff]
      %v205 = vld [vmem:[%s169 + $0xd8] sm:$0xff]
      %v206 = vld [vmem:[%s169 + $0xe0] sm:$0xff]
      %v207 = vld [vmem:[%s169 + $0xe8] sm:$0xff]
      %v208 = vld [vmem:[%s169 + $0xf0] sm:$0xff]
      %v209 = vld [vmem:[%s169 + $0xf8] sm:$0xff]
      %v210 = vld [vmem:[%s169 + $0x100] sm:$0xff]
      %v211 = vld [vmem:[%s169 + $0x108] sm:$0xff]
      %v212 = vld [vmem:[%s169 + $0x110] sm:$0xff]
      %v213 = vld [vmem:[%s169 + $0x118] sm:$0xff]
      %v214 = vld [vmem:[%s169 + $0x120] sm:$0xff]
      %v215 = vld [vmem:[%s169 + $0x128] sm:$0xff]
      %v216 = vld [vmem:[%s169 + $0x130] sm:$0xff]
      %v217 = vld [vmem:[%s169 + $0x138] sm:$0xff]
      %v218 = vld [vmem:[%s169 + $0x140] sm:$0xff]
      %v219 = vld [vmem:[%s169 + $0x148] sm:$0xff]
      %v220 = vld [vmem:[%s169 + $0x150] sm:$0xff]
      %v221 = vld [vmem:[%s169 + $0x158] sm:$0xff]
      %v222 = vld [vmem:[%s169 + $0x160] sm:$0xff]
      %v223 = vld [vmem:[%s169 + $0x168] sm:$0xff]
      %v224 = vld [vmem:[%s169 + $0x170] sm:$0xff]
      %v225 = vld [vmem:[%s169 + $0x178] sm:$0xff]
      %v226 = vld [vmem:[%s169 + $0x180] sm:$0xff]
      %v227 = vld [vmem:[%s169 + $0x188] sm:$0xff]
      %v228 = vld [vmem:[%s1] sm:$0xf]
      %v229 = vld [vmem:[%s1 + $0x4] sm:$0xf]
      %v230 = vld [vmem:[%s1 + $0x8] sm:$0xf]
      %v231 = vld [vmem:[%s1 + $0xc] sm:$0xf]
      %v232 = vld [vmem:[%s1 + $0x10] sm:$0xf]
      %v233 = vld [vmem:[%s1 + $0x14] sm:$0xf]
      %v234 = vld [vmem:[%s1 + $0x18] sm:$0xf]
      %v235 = vld [vmem:[%s1 + $0x1c] sm:$0xf]
      %v236 = vld [vmem:[%s1 + $0x20] sm:$0xf]
      %v237 = vld [vmem:[%s1 + $0x24] sm:$0xf]
      %v238 = vld [vmem:[%s1 + $0x28] sm:$0xf]
      %v239 = vld [vmem:[%s1 + $0x2c] sm:$0xf]
      %v240 = vld [vmem:[%s1 + $0x30] sm:$0xf]
      %v241 = vld [vmem:[%s1 + $0x34] sm:$0xf]
      %v242 = vld [vmem:[%s1 + $0x38] sm:$0xf]
      %v243 = vld [vmem:[%s1 + $0x3c] sm:$0xf]
      %v244 = vld [vmem:[%s1 + $0x40] sm:$0xf]
      %v245 = vld [vmem:[%s1 + $0x44] sm:$0xf]
      %v246 = vld [vmem:[%s1 + $0x48] sm:$0xf]
      %v247 = vld [vmem:[%s1 + $0x4c] sm:$0xf]
      %v248 = vld [vmem:[%s1 + $0x50] sm:$0xf]
      %v249 = vld [vmem:[%s1 + $0x54] sm:$0xf]
      %v250 = vld [vmem:[%s1 + $0x58] sm:$0xf]
      %v251 = vld [vmem:[%s1 + $0x5c] sm:$0xf]
      %v252 = vld [vmem:[%s1 + $0x60] sm:$0xf]
      %v253 = vld [vmem:[%s1 + $0x64] sm:$0xf]
      %v254 = vld [vmem:[%s1 + $0x68] sm:$0xf]
      %v255 = vld [vmem:[%s1 + $0x6c] sm:$0xf]
      %v256 = vld [vmem:[%s1 + $0x70] sm:$0xf]
      %v257 = vld [vmem:[%s1 + $0x74] sm:$0xf]
      %v258 = vld [vmem:[%s1 + $0x78] sm:$0xf]
      %v259 = vld [vmem:[%s1 + $0x7c] sm:$0xf]
      %v260 = vld [vmem:[%s2] sm:$0x1]
      %v262 = vlaneseq
      %v263 = vshrl.u32 %v262, 7
      %v264 = vsub.s32 0, %v263
      %v265 = vrot.slane %v260, %v264
      %v317 = vunpack.c.l.b16 %v178
      %v318 = vunpack.c.h.b16 %v178
      %v319 = vunpack.c.l.b16 %v179
      %v320 = vunpack.c.h.b16 %v179
      %v321 = vunpack.c.l.b16 %v180
      %v322 = vunpack.c.h.b16 %v180
      %v323 = vunpack.c.l.b16 %v181
      %v324 = vunpack.c.h.b16 %v181
      %v325 = vunpack.c.l.b16 %v182
      %v326 = vunpack.c.h.b16 %v182
      %v327 = vunpack.c.l.b16 %v183
      %v328 = vunpack.c.h.b16 %v183
      %v329 = vunpack.c.l.b16 %v184
      %v330 = vunpack.c.h.b16 %v184
      %v331 = vunpack.c.l.b16 %v185
      %v332 = vunpack.c.h.b16 %v185
      %v333 = vunpack.c.l.b16 %v186
      %v334 = vunpack.c.h.b16 %v186
      %v335 = vunpack.c.l.b16 %v187
      %v336 = vunpack.c.h.b16 %v187
      %v337 = vunpack.c.l.b16 %v188
      %v338 = vunpack.c.h.b16 %v188
      %v339 = vunpack.c.l.b16 %v189
      %v340 = vunpack.c.h.b16 %v189
      %v341 = vunpack.c.l.b16 %v190
      %v342 = vunpack.c.h.b16 %v190
      %v343 = vunpack.c.l.b16 %v191
      %v344 = vunpack.c.h.b16 %v191
      %v345 = vunpack.c.l.b16 %v192
      %v346 = vunpack.c.h.b16 %v192
      %v347 = vunpack.c.l.b16 %v193
      %v348 = vunpack.c.h.b16 %v193
      %v349 = vunpack.c.l.b16 %v194
      %v350 = vunpack.c.h.b16 %v194
      %v351 = vunpack.c.l.b16 %v195
      %v352 = vunpack.c.h.b16 %v195
      %v353 = vunpack.c.l.b16 %v196
      %v354 = vunpack.c.h.b16 %v196
      %v355 = vunpack.c.l.b16 %v197
      %v356 = vunpack.c.h.b16 %v197
      %v357 = vunpack.c.l.b16 %v198
      %v358 = vunpack.c.h.b16 %v198
      %v359 = vunpack.c.l.b16 %v199
      %v360 = vunpack.c.h.b16 %v199
      %v361 = vunpack.c.l.b16 %v200
      %v362 = vunpack.c.h.b16 %v200
      %v363 = vunpack.c.l.b16 %v201
      %v364 = vunpack.c.h.b16 %v201
      %v365 = vunpack.c.l.b16 %v202
      %v366 = vunpack.c.h.b16 %v202
      %v367 = vunpack.c.l.b16 %v203
      %v368 = vunpack.c.h.b16 %v203
      %v369 = vunpack.c.l.b16 %v204
      %v370 = vunpack.c.h.b16 %v204
      %v371 = vunpack.c.l.b16 %v205
      %v372 = vunpack.c.h.b16 %v205
      %v373 = vunpack.c.l.b16 %v206
      %v374 = vunpack.c.h.b16 %v206
      %v375 = vunpack.c.l.b16 %v207
      %v376 = vunpack.c.h.b16 %v207
      %v377 = vunpack.c.l.b16 %v208
      %v378 = vunpack.c.h.b16 %v208
      %v379 = vunpack.c.l.b16 %v209
      %v380 = vunpack.c.h.b16 %v209
      %v381 = vunpack.c.l.b16 %v210
      %v382 = vunpack.c.h.b16 %v210
      %v383 = vunpack.c.l.b16 %v211
      %v384 = vunpack.c.h.b16 %v211
      %v385 = vunpack.c.l.b16 %v212
      %v386 = vunpack.c.h.b16 %v212
      %v387 = vunpack.c.l.b16 %v213
      %v388 = vunpack.c.h.b16 %v213
      %v389 = vunpack.c.l.b16 %v214
      %v390 = vunpack.c.h.b16 %v214
      %v391 = vunpack.c.l.b16 %v215
      %v392 = vunpack.c.h.b16 %v215
      %v393 = vunpack.c.l.b16 %v216
      %v394 = vunpack.c.h.b16 %v216
      %v395 = vunpack.c.l.b16 %v217
      %v396 = vunpack.c.h.b16 %v217
      %v397 = vunpack.c.l.b16 %v218
      %v398 = vunpack.c.h.b16 %v218
      %v399 = vunpack.c.l.b16 %v219
      %v400 = vunpack.c.h.b16 %v219
      %v401 = vunpack.c.l.b16 %v220
      %v402 = vunpack.c.h.b16 %v220
      %v403 = vunpack.c.l.b16 %v221
      %v404 = vunpack.c.h.b16 %v221
      %v405 = vunpack.c.l.b16 %v222
      %v406 = vunpack.c.h.b16 %v222
      %v407 = vunpack.c.l.b16 %v223
      %v408 = vunpack.c.h.b16 %v223
      %v409 = vunpack.c.l.b16 %v224
      %v410 = vunpack.c.h.b16 %v224
      %v411 = vunpack.c.l.b16 %v225
      %v412 = vunpack.c.h.b16 %v225
      %v413 = vunpack.c.l.b16 %v226
      %v414 = vunpack.c.h.b16 %v226
      %v415 = vunpack.c.l.b16 %v227
      %v416 = vunpack.c.h.b16 %v227
      %v417 = vpack.c.b16 %v319, %v317
      %v418 = vpack.c.b16 %v320, %v318
      %v419 = vpack.c.b16 %v323, %v321
      %v420 = vpack.c.b16 %v324, %v322
      %v421 = vpack.c.b16 %v327, %v325
      %v422 = vpack.c.b16 %v328, %v326
      %v423 = vpack.c.b16 %v331, %v329
      %v424 = vpack.c.b16 %v332, %v330
      %v425 = vpack.c.b16 %v335, %v333
      %v426 = vpack.c.b16 %v336, %v334
      %v427 = vpack.c.b16 %v339, %v337
      %v428 = vpack.c.b16 %v340, %v338
      %v429 = vpack.c.b16 %v343, %v341
      %v430 = vpack.c.b16 %v344, %v342
      %v431 = vpack.c.b16 %v347, %v345
      %v432 = vpack.c.b16 %v348, %v346
      %v433 = vpack.c.b16 %v351, %v349
      %v434 = vpack.c.b16 %v352, %v350
      %v435 = vpack.c.b16 %v355, %v353
      %v436 = vpack.c.b16 %v356, %v354
      %v437 = vpack.c.b16 %v359, %v357
      %v438 = vpack.c.b16 %v360, %v358
      %v439 = vpack.c.b16 %v363, %v361
      %v440 = vpack.c.b16 %v364, %v362
      %v441 = vpack.c.b16 %v367, %v365
      %v442 = vpack.c.b16 %v368, %v366
      %v443 = vpack.c.b16 %v371, %v369
      %v444 = vpack.c.b16 %v372, %v370
      %v445 = vpack.c.b16 %v375, %v373
      %v446 = vpack.c.b16 %v376, %v374
      %v447 = vpack.c.b16 %v379, %v377
      %v448 = vpack.c.b16 %v380, %v378
      %v449 = vpack.c.b16 %v383, %v381
      %v450 = vpack.c.b16 %v384, %v382
      %v451 = vpack.c.b16 %v387, %v385
      %v452 = vpack.c.b16 %v388, %v386
      %v453 = vpack.c.b16 %v391, %v389
      %v454 = vpack.c.b16 %v392, %v390
      %v455 = vpack.c.b16 %v395, %v393
      %v456 = vpack.c.b16 %v396, %v394
      %v457 = vpack.c.b16 %v399, %v397
      %v458 = vpack.c.b16 %v400, %v398
      %v459 = vpack.c.b16 %v403, %v401
      %v460 = vpack.c.b16 %v404, %v402
      %v461 = vpack.c.b16 %v407, %v405
      %v462 = vpack.c.b16 %v408, %v406
      %v463 = vpack.c.b16 %v411, %v409
      %v464 = vpack.c.b16 %v412, %v410
      %v465 = vpack.c.b16 %v415, %v413
      %v466 = vpack.c.b16 %v416, %v414
      %v549 = vunpack.c.l.b16 %v228
      %v550 = vunpack.c.l.b16 %v229
      %v551 = vunpack.c.l.b16 %v230
      %v552 = vunpack.c.l.b16 %v231
      %v553 = vunpack.c.l.b16 %v232
      %v554 = vunpack.c.l.b16 %v233
      %v555 = vunpack.c.l.b16 %v234
      %v556 = vunpack.c.l.b16 %v235
      %v557 = vunpack.c.l.b16 %v236
      %v558 = vunpack.c.l.b16 %v237
      %v559 = vunpack.c.l.b16 %v238
      %v560 = vunpack.c.l.b16 %v239
      %v561 = vunpack.c.l.b16 %v240
      %v562 = vunpack.c.l.b16 %v241
      %v563 = vunpack.c.l.b16 %v242
      %v564 = vunpack.c.l.b16 %v243
      %v565 = vunpack.c.l.b16 %v244
      %v566 = vunpack.c.l.b16 %v245
      %v567 = vunpack.c.l.b16 %v246
      %v568 = vunpack.c.l.b16 %v247
      %v569 = vunpack.c.l.b16 %v248
      %v570 = vunpack.c.l.b16 %v249
      %v571 = vunpack.c.l.b16 %v250
      %v572 = vunpack.c.l.b16 %v251
      %v573 = vunpack.c.l.b16 %v252
      %v574 = vunpack.c.l.b16 %v253
      %v575 = vunpack.c.l.b16 %v254
      %v576 = vunpack.c.l.b16 %v255
      %v577 = vunpack.c.l.b16 %v256
      %v578 = vunpack.c.l.b16 %v257
      %v579 = vunpack.c.l.b16 %v258
      %v580 = vunpack.c.l.b16 %v259
      %v581 = vpack.c.b16 %v550, %v549
      %v582 = vpack.c.b16 %v552, %v551
      %v583 = vpack.c.b16 %v554, %v553
      %v584 = vpack.c.b16 %v556, %v555
      %v585 = vpack.c.b16 %v558, %v557
      %v586 = vpack.c.b16 %v560, %v559
      %v587 = vpack.c.b16 %v562, %v561
      %v588 = vpack.c.b16 %v564, %v563
      %v589 = vpack.c.b16 %v566, %v565
      %v590 = vpack.c.b16 %v568, %v567
      %v591 = vpack.c.b16 %v570, %v569
      %v592 = vpack.c.b16 %v572, %v571
      %v593 = vpack.c.b16 %v574, %v573
      %v594 = vpack.c.b16 %v576, %v575
      %v595 = vpack.c.b16 %v578, %v577
      %v596 = vpack.c.b16 %v580, %v579
      %613 = vmatprep.subr.bf16.mxu0 0
      %614 = vmatpush1.bf16.msra.mxu0 %v588
      %615 = vmatprep.subr.bf16.mxu0 0
      %616 = vmatpush1.bf16.msra.mxu0 %v587
      %617 = vmatprep.subr.bf16.mxu0 0
      %618 = vmatpush1.bf16.msra.mxu0 %v586
      %619 = vmatprep.subr.bf16.mxu0 0
      %620 = vmatpush1.bf16.msra.mxu0 %v585
      %621 = vmatprep.subr.bf16.mxu0 0
      %622 = vmatpush1.bf16.msra.mxu0 %v584
      %623 = vmatprep.subr.bf16.mxu0 0
      %624 = vmatpush1.bf16.msra.mxu0 %v583
      %625 = vmatprep.subr.bf16.mxu0 0
      %626 = vmatpush1.bf16.msra.mxu0 %v582
      %627 = vmatprep.subr.bf16.mxu0 0
      %628 = vmatpush1.bf16.msra.mxu0 %v581
      %629 = vmatprep.subr.bf16.mxu0 0
      %630 = vmatpush2.bf16.msra.mxu0 %v596
      %631 = vmatprep.subr.bf16.mxu0 0
      %632 = vmatpush2.bf16.msra.mxu0 %v595
      %633 = vmatprep.subr.bf16.mxu0 0
      %634 = vmatpush2.bf16.msra.mxu0 %v594
      %635 = vmatprep.subr.bf16.mxu0 0
      %636 = vmatpush2.bf16.msra.mxu0 %v593
      %637 = vmatprep.subr.bf16.mxu0 0
      %638 = vmatpush2.bf16.msra.mxu0 %v592
      %639 = vmatprep.subr.bf16.mxu0 0
      %640 = vmatpush2.bf16.msra.mxu0 %v591
      %641 = vmatprep.subr.bf16.mxu0 0
      %642 = vmatpush2.bf16.msra.mxu0 %v590
      %643 = vmatprep.subr.bf16.mxu0 0
      %644 = vmatpush2.bf16.msra.mxu0 %v589
      %645 = vmatprep.mubr.bf16.mxu0 %v418
      %646 = vmatmul.mubr.bf16.gmra.mxu0 %v417
      %v647 = vpop.f32.mrf.mxu0
      %v648 = vadd.f32 %v265, %v647
      %v649 = vpop.f32.mrf.mxu0
      %v650 = vpop.f32.mrf.mxu0
      %v651 = vadd.f32 %v265, %v650
      %v652 = vpop.f32.mrf.mxu0
      %653 = vmatprep.mubr.bf16.mxu0 %v420
      %654 = vmatmul.mubr.bf16.gmra.mxu0 %v419
      %v655 = vpop.f32.mrf.mxu0
      %v656 = vadd.f32 %v265, %v655
      %v657 = vpop.f32.mrf.mxu0
      %v658 = vpop.f32.mrf.mxu0
      %v659 = vadd.f32 %v265, %v658
      %v660 = vpop.f32.mrf.mxu0
      %661 = vmatprep.mubr.bf16.mxu0 %v422
      %662 = vmatmul.mubr.bf16.gmra.mxu0 %v421
      %v663 = vpop.f32.mrf.mxu0
      %v664 = vadd.f32 %v265, %v663
      %v665 = vpop.f32.mrf.mxu0
      %v666 = vpop.f32.mrf.mxu0
      %v667 = vadd.f32 %v265, %v666
      %v668 = vpop.f32.mrf.mxu0
      %669 = vmatprep.mubr.bf16.mxu0 %v424
      %670 = vmatmul.mubr.bf16.gmra.mxu0 %v423
      %v671 = vpop.f32.mrf.mxu0
      %v672 = vadd.f32 %v265, %v671
      %v673 = vpop.f32.mrf.mxu0
      %v674 = vpop.f32.mrf.mxu0
      %v675 = vadd.f32 %v265, %v674
      %v676 = vpop.f32.mrf.mxu0
      %677 = vmatprep.mubr.bf16.mxu0 %v426
      %678 = vmatmul.mubr.bf16.gmra.mxu0 %v425
      %v679 = vpop.f32.mrf.mxu0
      %v680 = vadd.f32 %v265, %v679
      %v681 = vpop.f32.mrf.mxu0
      %v682 = vpop.f32.mrf.mxu0
      %v683 = vadd.f32 %v265, %v682
      %v684 = vpop.f32.mrf.mxu0
      %685 = vmatprep.mubr.bf16.mxu0 %v428
      %686 = vmatmul.mubr.bf16.gmra.mxu0 %v427
      %v687 = vpop.f32.mrf.mxu0
      %v688 = vadd.f32 %v265, %v687
      %v689 = vpop.f32.mrf.mxu0
      %v690 = vpop.f32.mrf.mxu0
      %v691 = vadd.f32 %v265, %v690
      %v692 = vpop.f32.mrf.mxu0
      %693 = vmatprep.mubr.bf16.mxu0 %v430
      %694 = vmatmul.mubr.bf16.gmra.mxu0 %v429
      %v695 = vpop.f32.mrf.mxu0
      %v696 = vadd.f32 %v265, %v695
      %v697 = vpop.f32.mrf.mxu0
      %v698 = vpop.f32.mrf.mxu0
      %v699 = vadd.f32 %v265, %v698
      %v700 = vpop.f32.mrf.mxu0
      %701 = vmatprep.mubr.bf16.mxu0 %v432
      %702 = vmatmul.mubr.bf16.gmra.mxu0 %v431
      %v703 = vpop.f32.mrf.mxu0
      %v704 = vadd.f32 %v265, %v703
      %v705 = vpop.f32.mrf.mxu0
      %v706 = vpop.f32.mrf.mxu0
      %v707 = vadd.f32 %v265, %v706
      %v708 = vpop.f32.mrf.mxu0
      %709 = vmatprep.mubr.bf16.mxu0 %v434
      %710 = vmatmul.mubr.bf16.gmra.mxu0 %v433
      %v711 = vpop.f32.mrf.mxu0
      %v712 = vadd.f32 %v265, %v711
      %v713 = vpop.f32.mrf.mxu0
      %v714 = vpop.f32.mrf.mxu0
      %v715 = vadd.f32 %v265, %v714
      %v716 = vpop.f32.mrf.mxu0
      %717 = vmatprep.mubr.bf16.mxu0 %v436
      %718 = vmatmul.mubr.bf16.gmra.mxu0 %v435
      %v719 = vpop.f32.mrf.mxu0
      %v720 = vadd.f32 %v265, %v719
      %v721 = vpop.f32.mrf.mxu0
      %v722 = vpop.f32.mrf.mxu0
      %v723 = vadd.f32 %v265, %v722
      %v724 = vpop.f32.mrf.mxu0
      %725 = vmatprep.mubr.bf16.mxu0 %v438
      %726 = vmatmul.mubr.bf16.gmra.mxu0 %v437
      %v727 = vpop.f32.mrf.mxu0
      %v728 = vadd.f32 %v265, %v727
      %v729 = vpop.f32.mrf.mxu0
      %v730 = vpop.f32.mrf.mxu0
      %v731 = vadd.f32 %v265, %v730
      %v732 = vpop.f32.mrf.mxu0
      %733 = vmatprep.mubr.bf16.mxu0 %v440
      %734 = vmatmul.mubr.bf16.gmra.mxu0 %v439
      %v735 = vpop.f32.mrf.mxu0
      %v736 = vadd.f32 %v265, %v735
      %v737 = vpop.f32.mrf.mxu0
      %v738 = vpop.f32.mrf.mxu0
      %v739 = vadd.f32 %v265, %v738
      %v740 = vpop.f32.mrf.mxu0
      %741 = vmatprep.mubr.bf16.mxu0 %v442
      %742 = vmatmul.mubr.bf16.gmra.mxu0 %v441
      %v743 = vpop.f32.mrf.mxu0
      %v744 = vadd.f32 %v265, %v743
      %v745 = vpop.f32.mrf.mxu0
      %v746 = vpop.f32.mrf.mxu0
      %v747 = vadd.f32 %v265, %v746
      %v748 = vpop.f32.mrf.mxu0
      %749 = vmatprep.mubr.bf16.mxu0 %v444
      %750 = vmatmul.mubr.bf16.gmra.mxu0 %v443
      %v751 = vpop.f32.mrf.mxu0
      %v752 = vadd.f32 %v265, %v751
      %v753 = vpop.f32.mrf.mxu0
      %v754 = vpop.f32.mrf.mxu0
      %v755 = vadd.f32 %v265, %v754
      %v756 = vpop.f32.mrf.mxu0
      %757 = vmatprep.mubr.bf16.mxu0 %v446
      %758 = vmatmul.mubr.bf16.gmra.mxu0 %v445
      %v759 = vpop.f32.mrf.mxu0
      %v760 = vadd.f32 %v265, %v759
      %v761 = vpop.f32.mrf.mxu0
      %v762 = vpop.f32.mrf.mxu0
      %v763 = vadd.f32 %v265, %v762
      %v764 = vpop.f32.mrf.mxu0
      %765 = vmatprep.mubr.bf16.mxu0 %v448
      %766 = vmatmul.mubr.bf16.gmra.mxu0 %v447
      %v767 = vpop.f32.mrf.mxu0
      %v768 = vadd.f32 %v265, %v767
      %v769 = vpop.f32.mrf.mxu0
      %v770 = vpop.f32.mrf.mxu0
      %v771 = vadd.f32 %v265, %v770
      %v772 = vpop.f32.mrf.mxu0
      %773 = vmatprep.mubr.bf16.mxu0 %v450
      %774 = vmatmul.mubr.bf16.gmra.mxu0 %v449
      %v775 = vpop.f32.mrf.mxu0
      %v776 = vadd.f32 %v265, %v775
      %v777 = vpop.f32.mrf.mxu0
      %v778 = vpop.f32.mrf.mxu0
      %v779 = vadd.f32 %v265, %v778
      %v780 = vpop.f32.mrf.mxu0
      %781 = vmatprep.mubr.bf16.mxu0 %v452
      %782 = vmatmul.mubr.bf16.gmra.mxu0 %v451
      %v783 = vpop.f32.mrf.mxu0
      %v784 = vadd.f32 %v265, %v783
      %v785 = vpop.f32.mrf.mxu0
      %v786 = vpop.f32.mrf.mxu0
      %v787 = vadd.f32 %v265, %v786
      %v788 = vpop.f32.mrf.mxu0
      %789 = vmatprep.mubr.bf16.mxu0 %v454
      %790 = vmatmul.mubr.bf16.gmra.mxu0 %v453
      %v791 = vpop.f32.mrf.mxu0
      %v792 = vadd.f32 %v265, %v791
      %v793 = vpop.f32.mrf.mxu0
      %v794 = vpop.f32.mrf.mxu0
      %v795 = vadd.f32 %v265, %v794
      %v796 = vpop.f32.mrf.mxu0
      %797 = vmatprep.mubr.bf16.mxu0 %v456
      %798 = vmatmul.mubr.bf16.gmra.mxu0 %v455
      %v799 = vpop.f32.mrf.mxu0
      %v800 = vadd.f32 %v265, %v799
      %v801 = vpop.f32.mrf.mxu0
      %v802 = vpop.f32.mrf.mxu0
      %v803 = vadd.f32 %v265, %v802
      %v804 = vpop.f32.mrf.mxu0
      %805 = vmatprep.mubr.bf16.mxu0 %v458
      %806 = vmatmul.mubr.bf16.gmra.mxu0 %v457
      %v807 = vpop.f32.mrf.mxu0
      %v808 = vadd.f32 %v265, %v807
      %v809 = vpop.f32.mrf.mxu0
      %v810 = vpop.f32.mrf.mxu0
      %v811 = vadd.f32 %v265, %v810
      %v812 = vpop.f32.mrf.mxu0
      %813 = vmatprep.mubr.bf16.mxu0 %v460
      %814 = vmatmul.mubr.bf16.gmra.mxu0 %v459
      %v815 = vpop.f32.mrf.mxu0
      %v816 = vadd.f32 %v265, %v815
      %v817 = vpop.f32.mrf.mxu0
      %v818 = vpop.f32.mrf.mxu0
      %v819 = vadd.f32 %v265, %v818
      %v820 = vpop.f32.mrf.mxu0
      %821 = vmatprep.mubr.bf16.mxu0 %v462
      %822 = vmatmul.mubr.bf16.gmra.mxu0 %v461
      %v823 = vpop.f32.mrf.mxu0
      %v824 = vadd.f32 %v265, %v823
      %v825 = vpop.f32.mrf.mxu0
      %v826 = vpop.f32.mrf.mxu0
      %v827 = vadd.f32 %v265, %v826
      %v828 = vpop.f32.mrf.mxu0
      %829 = vmatprep.mubr.bf16.mxu0 %v464
      %830 = vmatmul.mubr.bf16.gmra.mxu0 %v463
      %v831 = vpop.f32.mrf.mxu0
      %v832 = vadd.f32 %v265, %v831
      %v833 = vpop.f32.mrf.mxu0
      %v834 = vpop.f32.mrf.mxu0
      %v835 = vadd.f32 %v265, %v834
      %v836 = vpop.f32.mrf.mxu0
      %837 = vmatprep.mubr.bf16.mxu0 %v466
      %838 = vmatmul.mubr.bf16.gmra.mxu0 %v465
      %v839 = vpop.f32.mrf.mxu0
      %v840 = vadd.f32 %v265, %v839
      %v841 = vpop.f32.mrf.mxu0
      %v842 = vpop.f32.mrf.mxu0
      %v843 = vadd.f32 %v265, %v842
      %v844 = vpop.f32.mrf.mxu0
      %845 = vdwg.mxu0
      %v846 = vmax.f32 %v648, 0.0
      %v847 = vmax.f32 %v651, 0.0
      %v848 = vmax.f32 %v656, 0.0
      %v849 = vmax.f32 %v659, 0.0
      %v850 = vmax.f32 %v664, 0.0
      %v851 = vmax.f32 %v667, 0.0
      %v852 = vmax.f32 %v672, 0.0
      %v853 = vmax.f32 %v675, 0.0
      %v854 = vmax.f32 %v680, 0.0
      %v855 = vmax.f32 %v683, 0.0
      %v856 = vmax.f32 %v688, 0.0
      %v857 = vmax.f32 %v691, 0.0
      %v858 = vmax.f32 %v696, 0.0
      %v859 = vmax.f32 %v699, 0.0
      %v860 = vmax.f32 %v704, 0.0
      %v861 = vmax.f32 %v707, 0.0
      %v862 = vmax.f32 %v712, 0.0
      %v863 = vmax.f32 %v715, 0.0
      %v864 = vmax.f32 %v720, 0.0
      %v865 = vmax.f32 %v723, 0.0
      %v866 = vmax.f32 %v728, 0.0
      %v867 = vmax.f32 %v731, 0.0
      %v868 = vmax.f32 %v736, 0.0
      %v869 = vmax.f32 %v739, 0.0
      %v870 = vmax.f32 %v744, 0.0
      %v871 = vmax.f32 %v747, 0.0
      %v872 = vmax.f32 %v752, 0.0
      %v873 = vmax.f32 %v755, 0.0
      %v874 = vmax.f32 %v760, 0.0
      %v875 = vmax.f32 %v763, 0.0
      %v876 = vmax.f32 %v768, 0.0
      %v877 = vmax.f32 %v771, 0.0
      %v878 = vmax.f32 %v776, 0.0
      %v879 = vmax.f32 %v779, 0.0
      %v880 = vmax.f32 %v784, 0.0
      %v881 = vmax.f32 %v787, 0.0
      %v882 = vmax.f32 %v792, 0.0
      %v883 = vmax.f32 %v795, 0.0
      %v884 = vmax.f32 %v800, 0.0
      %v885 = vmax.f32 %v803, 0.0
      %v886 = vmax.f32 %v808, 0.0
      %v887 = vmax.f32 %v811, 0.0
      %v888 = vmax.f32 %v816, 0.0
      %v889 = vmax.f32 %v819, 0.0
      %v890 = vmax.f32 %v824, 0.0
      %v891 = vmax.f32 %v827, 0.0
      %v892 = vmax.f32 %v832, 0.0
      %v893 = vmax.f32 %v835, 0.0
      %v894 = vmax.f32 %v840, 0.0
      %v895 = vmax.f32 %v843, 0.0
      %v896 = vpack.c.bf16 %v847, %v846
      %v897 = vpack.c.bf16 %v849, %v848
      %v898 = vpack.c.bf16 %v851, %v850
      %v899 = vpack.c.bf16 %v853, %v852
      %v900 = vpack.c.bf16 %v855, %v854
      %v901 = vpack.c.bf16 %v857, %v856
      %v902 = vpack.c.bf16 %v859, %v858
      %v903 = vpack.c.bf16 %v861, %v860
      %v904 = vpack.c.bf16 %v863, %v862
      %v905 = vpack.c.bf16 %v865, %v864
      %v906 = vpack.c.bf16 %v867, %v866
      %v907 = vpack.c.bf16 %v869, %v868
      %v908 = vpack.c.bf16 %v871, %v870
      %v909 = vpack.c.bf16 %v873, %v872
      %v910 = vpack.c.bf16 %v875, %v874
      %v911 = vpack.c.bf16 %v877, %v876
      %v912 = vpack.c.bf16 %v879, %v878
      %v913 = vpack.c.bf16 %v881, %v880
      %v914 = vpack.c.bf16 %v883, %v882
      %v915 = vpack.c.bf16 %v885, %v884
      %v916 = vpack.c.bf16 %v887, %v886
      %v917 = vpack.c.bf16 %v889, %v888
      %v918 = vpack.c.bf16 %v891, %v890
      %v919 = vpack.c.bf16 %v893, %v892
      %v920 = vpack.c.bf16 %v895, %v894
      %v946 = vunpack.c.l.b16 %v896
      %v947 = vunpack.c.h.b16 %v896
      %v948 = vunpack.c.l.b16 %v897
      %v949 = vunpack.c.h.b16 %v897
      %v950 = vunpack.c.l.b16 %v898
      %v951 = vunpack.c.h.b16 %v898
      %v952 = vunpack.c.l.b16 %v899
      %v953 = vunpack.c.h.b16 %v899
      %v954 = vunpack.c.l.b16 %v900
      %v955 = vunpack.c.h.b16 %v900
      %v956 = vunpack.c.l.b16 %v901
      %v957 = vunpack.c.h.b16 %v901
      %v958 = vunpack.c.l.b16 %v902
      %v959 = vunpack.c.h.b16 %v902
      %v960 = vunpack.c.l.b16 %v903
      %v961 = vunpack.c.h.b16 %v903
      %v962 = vunpack.c.l.b16 %v904
      %v963 = vunpack.c.h.b16 %v904
      %v964 = vunpack.c.l.b16 %v905
      %v965 = vunpack.c.h.b16 %v905
      %v966 = vunpack.c.l.b16 %v906
      %v967 = vunpack.c.h.b16 %v906
      %v968 = vunpack.c.l.b16 %v907
      %v969 = vunpack.c.h.b16 %v907
      %v970 = vunpack.c.l.b16 %v908
      %v971 = vunpack.c.h.b16 %v908
      %v972 = vunpack.c.l.b16 %v909
      %v973 = vunpack.c.h.b16 %v909
      %v974 = vunpack.c.l.b16 %v910
      %v975 = vunpack.c.h.b16 %v910
      %v976 = vunpack.c.l.b16 %v911
      %v977 = vunpack.c.h.b16 %v911
      %v978 = vunpack.c.l.b16 %v912
      %v979 = vunpack.c.h.b16 %v912
      %v980 = vunpack.c.l.b16 %v913
      %v981 = vunpack.c.h.b16 %v913
      %v982 = vunpack.c.l.b16 %v914
      %v983 = vunpack.c.h.b16 %v914
      %v984 = vunpack.c.l.b16 %v915
      %v985 = vunpack.c.h.b16 %v915
      %v986 = vunpack.c.l.b16 %v916
      %v987 = vunpack.c.h.b16 %v916
      %v988 = vunpack.c.l.b16 %v917
      %v989 = vunpack.c.h.b16 %v917
      %v990 = vunpack.c.l.b16 %v918
      %v991 = vunpack.c.h.b16 %v918
      %v992 = vunpack.c.l.b16 %v919
      %v993 = vunpack.c.h.b16 %v919
      %v994 = vunpack.c.l.b16 %v920
      %v995 = vunpack.c.h.b16 %v920
      %v996 = vpack.c.b16 %v946, %v946
      %v997 = vpack.c.b16 %v947, %v947
      %v998 = vpack.c.b16 %v948, %v948
      %v999 = vpack.c.b16 %v949, %v949
      %v1000 = vpack.c.b16 %v950, %v950
      %v1001 = vpack.c.b16 %v951, %v951
      %v1002 = vpack.c.b16 %v952, %v952
      %v1003 = vpack.c.b16 %v953, %v953
      %v1004 = vpack.c.b16 %v954, %v954
      %v1005 = vpack.c.b16 %v955, %v955
      %v1006 = vpack.c.b16 %v956, %v956
      %v1007 = vpack.c.b16 %v957, %v957
      %v1008 = vpack.c.b16 %v958, %v958
      %v1009 = vpack.c.b16 %v959, %v959
      %v1010 = vpack.c.b16 %v960, %v960
      %v1011 = vpack.c.b16 %v961, %v961
      %v1012 = vpack.c.b16 %v962, %v962
      %v1013 = vpack.c.b16 %v963, %v963
      %v1014 = vpack.c.b16 %v964, %v964
      %v1015 = vpack.c.b16 %v965, %v965
      %v1016 = vpack.c.b16 %v966, %v966
      %v1017 = vpack.c.b16 %v967, %v967
      %v1018 = vpack.c.b16 %v968, %v968
      %v1019 = vpack.c.b16 %v969, %v969
      %v1020 = vpack.c.b16 %v970, %v970
      %v1021 = vpack.c.b16 %v971, %v971
      %v1022 = vpack.c.b16 %v972, %v972
      %v1023 = vpack.c.b16 %v973, %v973
      %v1024 = vpack.c.b16 %v974, %v974
      %v1025 = vpack.c.b16 %v975, %v975
      %v1026 = vpack.c.b16 %v976, %v976
      %v1027 = vpack.c.b16 %v977, %v977
      %v1028 = vpack.c.b16 %v978, %v978
      %v1029 = vpack.c.b16 %v979, %v979
      %v1030 = vpack.c.b16 %v980, %v980
      %v1031 = vpack.c.b16 %v981, %v981
      %v1032 = vpack.c.b16 %v982, %v982
      %v1033 = vpack.c.b16 %v983, %v983
      %v1034 = vpack.c.b16 %v984, %v984
      %v1035 = vpack.c.b16 %v985, %v985
      %v1036 = vpack.c.b16 %v986, %v986
      %v1037 = vpack.c.b16 %v987, %v987
      %v1038 = vpack.c.b16 %v988, %v988
      %v1039 = vpack.c.b16 %v989, %v989
      %v1040 = vpack.c.b16 %v990, %v990
      %v1041 = vpack.c.b16 %v991, %v991
      %v1042 = vpack.c.b16 %v992, %v992
      %v1043 = vpack.c.b16 %v993, %v993
      %v1044 = vpack.c.b16 %v994, %v994
      %v1045 = vpack.c.b16 %v995, %v995
      %vm1096 = vcmask 257024
      %1097 = vst.msk [vmem:[%s175] sm:$0xf] %vm1096, %v996
      %1098 = vst.msk [vmem:[%s175 + $0x4] sm:$0xf] %vm1096, %v997
      %1099 = vst.msk [vmem:[%s175 + $0x8] sm:$0xf] %vm1096, %v998
      %1100 = vst.msk [vmem:[%s175 + $0xc] sm:$0xf] %vm1096, %v999
      %1101 = vst.msk [vmem:[%s175 + $0x10] sm:$0xf] %vm1096, %v1000
      %1102 = vst.msk [vmem:[%s175 + $0x14] sm:$0xf] %vm1096, %v1001
      %1103 = vst.msk [vmem:[%s175 + $0x18] sm:$0xf] %vm1096, %v1002
      %1104 = vst.msk [vmem:[%s175 + $0x1c] sm:$0xf] %vm1096, %v1003
      %1105 = vst.msk [vmem:[%s175 + $0x20] sm:$0xf] %vm1096, %v1004
      %1106 = vst.msk [vmem:[%s175 + $0x24] sm:$0xf] %vm1096, %v1005
      %1107 = vst.msk [vmem:[%s175 + $0x28] sm:$0xf] %vm1096, %v1006
      %1108 = vst.msk [vmem:[%s175 + $0x2c] sm:$0xf] %vm1096, %v1007
      %1109 = vst.msk [vmem:[%s175 + $0x30] sm:$0xf] %vm1096, %v1008
      %1110 = vst.msk [vmem:[%s175 + $0x34] sm:$0xf] %vm1096, %v1009
      %1111 = vst.msk [vmem:[%s175 + $0x38] sm:$0xf] %vm1096, %v1010
      %1112 = vst.msk [vmem:[%s175 + $0x3c] sm:$0xf] %vm1096, %v1011
      %1113 = vst.msk [vmem:[%s175 + $0x40] sm:$0xf] %vm1096, %v1012
      %1114 = vst.msk [vmem:[%s175 + $0x44] sm:$0xf] %vm1096, %v1013
      %1115 = vst.msk [vmem:[%s175 + $0x48] sm:$0xf] %vm1096, %v1014
      %1116 = vst.msk [vmem:[%s175 + $0x4c] sm:$0xf] %vm1096, %v1015
      %1117 = vst.msk [vmem:[%s175 + $0x50] sm:$0xf] %vm1096, %v1016
      %1118 = vst.msk [vmem:[%s175 + $0x54] sm:$0xf] %vm1096, %v1017
      %1119 = vst.msk [vmem:[%s175 + $0x58] sm:$0xf] %vm1096, %v1018
      %1120 = vst.msk [vmem:[%s175 + $0x5c] sm:$0xf] %vm1096, %v1019
      %1121 = vst.msk [vmem:[%s175 + $0x60] sm:$0xf] %vm1096, %v1020
      %1122 = vst.msk [vmem:[%s175 + $0x64] sm:$0xf] %vm1096, %v1021
      %1123 = vst.msk [vmem:[%s175 + $0x68] sm:$0xf] %vm1096, %v1022
      %1124 = vst.msk [vmem:[%s175 + $0x6c] sm:$0xf] %vm1096, %v1023
      %1125 = vst.msk [vmem:[%s175 + $0x70] sm:$0xf] %vm1096, %v1024
      %1126 = vst.msk [vmem:[%s175 + $0x74] sm:$0xf] %vm1096, %v1025
      %1127 = vst.msk [vmem:[%s175 + $0x78] sm:$0xf] %vm1096, %v1026
      %1128 = vst.msk [vmem:[%s175 + $0x7c] sm:$0xf] %vm1096, %v1027
      %1129 = vst.msk [vmem:[%s175 + $0x80] sm:$0xf] %vm1096, %v1028
      %1130 = vst.msk [vmem:[%s175 + $0x84] sm:$0xf] %vm1096, %v1029
      %1131 = vst.msk [vmem:[%s175 + $0x88] sm:$0xf] %vm1096, %v1030
      %1132 = vst.msk [vmem:[%s175 + $0x8c] sm:$0xf] %vm1096, %v1031
      %1133 = vst.msk [vmem:[%s175 + $0x90] sm:$0xf] %vm1096, %v1032
      %1134 = vst.msk [vmem:[%s175 + $0x94] sm:$0xf] %vm1096, %v1033
      %1135 = vst.msk [vmem:[%s175 + $0x98] sm:$0xf] %vm1096, %v1034
      %1136 = vst.msk [vmem:[%s175 + $0x9c] sm:$0xf] %vm1096, %v1035
      %1137 = vst.msk [vmem:[%s175 + $0xa0] sm:$0xf] %vm1096, %v1036
      %1138 = vst.msk [vmem:[%s175 + $0xa4] sm:$0xf] %vm1096, %v1037
      %1139 = vst.msk [vmem:[%s175 + $0xa8] sm:$0xf] %vm1096, %v1038
      %1140 = vst.msk [vmem:[%s175 + $0xac] sm:$0xf] %vm1096, %v1039
      %1141 = vst.msk [vmem:[%s175 + $0xb0] sm:$0xf] %vm1096, %v1040
      %1142 = vst.msk [vmem:[%s175 + $0xb4] sm:$0xf] %vm1096, %v1041
      %1143 = vst.msk [vmem:[%s175 + $0xb8] sm:$0xf] %vm1096, %v1042
      %1144 = vst.msk [vmem:[%s175 + $0xbc] sm:$0xf] %vm1096, %v1043
      %1145 = vst.msk [vmem:[%s175 + $0xc0] sm:$0xf] %vm1096, %v1044
      %1146 = vst.msk [vmem:[%s175 + $0xc4] sm:$0xf] %vm1096, %v1045
      %s1147 = smul.u32 50, %s14
      %p1148 = scmp.lt.s32.totalorder %s1147, 99
      %s1149 = scalar_select %p1148, %s1147, 99
      %s1150 = smul.addr %s1149, 4
      %s1151 = scalar_lea.vmem %s3, %s1150
      // Predicated region
      $region33: #{dqn_lstm_forward.5} parent=31 // pred_check
        %p1152 = pneg %p100
      $region34: #{dqn_lstm_forward.5} parent=31 // pred_check_branch
        %1154 = sbr.rel (%p1152) target = $region36
      $region35: #{dqn_lstm_forward.5} parent=31 // pred_region
        %s1155 = smul.u32 50, %s14
      $region36: #{dqn_lstm_forward.5} parent=31 // pred_fallthru
        _
    $region32: #{dqn_lstm_forward.5} parent=5 // pred_fallthru
      _
    %p1156 = scmp.le.s32.totalorder 2, %s9
    // Predicated region
    $region37: #{dqn_lstm_forward.5} parent=5 // pred_check
      %p1157 = pneg %p1156
    $region38: #{dqn_lstm_forward.5} parent=5 // pred_check_branch
      %1159 = sbr.rel (%p1157) target = $region40
    $region39: #{dqn_lstm_forward.5} parent=5 // pred_region
      %s1160 = ssub.s32 %s9, 2
      // Predicated region
      $region41: #{dqn_lstm_forward.5} parent=39 // pred_check
        %p1161 = pneg %p106
      $region42: #{dqn_lstm_forward.5} parent=39 // pred_check_branch
        %1163 = sbr.rel (%p1161) target = $region44
      $region43: #{dqn_lstm_forward.5} parent=39 // pred_region
        %s1164 = smul.u32 50, %s15
        %p1165 = scmp.lt.s32.totalorder %s1164, 99
        %s1166 = scalar_select %p1165, %s1164, 99
        %s1167 = smul.addr %s1166, 4
        %s1168 = scalar_lea.vmem %s3, %s1167
      $region44: #{dqn_lstm_forward.5} parent=39 // pred_fallthru
        _
    $region40: #{dqn_lstm_forward.5} parent=5 // pred_fallthru
      _
  $region6: #{dqn_lstm_forward.5} parent=0 // loop_footer
    %s13 = sadd.s32 1, %s9
  $region7: #{dqn_lstm_forward.5} parent=0 // loop_footer_branch
    %8 = sbr.rel target = $region3
  $region8: #{dqn_lstm_forward.5} parent=0 // loop_exit
    _

// kernel: dqn_lstm_forward.6
$region0: #{dqn_lstm_forward.6}
  #allocation0 [shape = 'u32[]', space=smem, size = 0x4, offset = 0x4, fixed_abs, tag = 'smem constant byte address 0x4 - core index']
  #allocation1 [shape = 'u32[144,128]{1,0:T(1,128)}', space=vmem, size = 0x12000, scoped, tag = 'internal scratch']
  %s0 = inlined_call_operand.vmem [shape: bf16[128,512], index: 0, kind: input, shape index: {}]
  %s1 = inlined_call_operand.vmem [shape: bf16[512,64], index: 1, kind: input, shape index: {}]
  %s2 = inlined_call_operand.vmem [shape: f32[1,64], index: 2, kind: input, shape index: {}]
  %s3 = inlined_call_operand.vmem [shape: bf16[128,64], index: 3, kind: output, shape index: {}]
  %s4 = sld [smem:[#allocation0]]
  $region45: #{dqn_lstm_forward.6} parent=0
    _
  %s6 = ssub.s32 1, %s4
  %s7 = scalar_select 0, %s6, %s4
  loop: start=0, step=1, limit=4
  $region2: #{dqn_lstm_forward.6} parent=0 // loop_pre_header
    _
  $region3: #{dqn_lstm_forward.6} parent=0 // loop_header
    %s9 = sphi 0, %s13
    %p10 = scmp.ge.s32.totalorder %s9, 4
    %s19 = sphi 0, %s21
    %s22 = sphi 0, %s19
    %s23 = sphi 0, %s22
    %s39 = sphi 0, %s23
    %s43 = sphi 0, %s43
    %s45 = sphi 0, %s43
    %s46 = sphi 0, %s45
    %s60 = sphi 0, %s46
    %s64 = sphi 0, %s64
    %s66 = sphi 0, %s64
    %s67 = sphi 0, %s66
    %s81 = sphi 0, %s67
    %s87 = sphi 0, %s89
    %s90 = sphi 0, %s87
    %s91 = sphi 0, %s90
    %s107 = sphi 0, %s91
  $region4: #{dqn_lstm_forward.6} parent=0 // loop_header_branch
    %12 = sbr.rel (%p10) target = $region8
  $region5: #{dqn_lstm_forward.6} parent=0 // loop_body
    %s14 = ssub.s32 %s9, 1
    %s15 = ssub.s32 %s9, 2
    %s16 = sadd.s32 %s9, 1
    %s17 = ssub.s32 %s9, %s16
    %p18 = scmp.eq.s32.totalorder %s17, 0
    %s20 = sadd.s32 %s19, 1
    %s21 = scalar_select %p18, %s19, %s20
    %p24 = pneg %p18
    %p25 = scmp.eq.s32.totalorder %s9, 1
    %p26 = por %p24, %p25
    %p27 = scmp.ne.s32.totalorder %s19, %s22
    %p28 = scmp.eq.s32.totalorder %s9, 0
    %p29 = por %p27, %p28
    %p30 = scmp.ne.s32.totalorder %s19, %s22
    %p31 = scmp.eq.s32.totalorder %s14, 1
    %p32 = por %p30, %p31
    %p33 = scmp.ne.s32.totalorder %s22, %s23
    %p34 = scmp.eq.s32.totalorder %s14, 0
    %p35 = por %p33, %p34
    %p36 = scmp.ne.s32.totalorder %s22, %s23
    %p37 = scmp.eq.s32.totalorder %s15, 1
    %p38 = por %p36, %p37
    %p40 = scmp.ne.s32.totalorder %s23, %s39
    %p41 = scmp.eq.s32.totalorder %s15, 0
    %p42 = por %p40, %p41
    %s44 = sadd.s32 %s43, 1
    %p47 = scmp.eq.s32.totalorder %s9, 1
    %p48 = scmp.ne.s32.totalorder %s43, %s45
    %p49 = scmp.eq.s32.totalorder %s9, 0
    %p50 = por %p48, %p49
    %p51 = scmp.ne.s32.totalorder %s43, %s45
    %p52 = scmp.eq.s32.totalorder %s14, 1
    %p53 = por %p51, %p52
    %p54 = scmp.ne.s32.totalorder %s45, %s46
    %p55 = scmp.eq.s32.totalorder %s14, 0
    %p56 = por %p54, %p55
    %p57 = scmp.ne.s32.totalorder %s45, %s46
    %p58 = scmp.eq.s32.totalorder %s15, 1
    %p59 = por %p57, %p58
    %p61 = scmp.ne.s32.totalorder %s46, %s60
    %p62 = scmp.eq.s32.totalorder %s15, 0
    %p63 = por %p61, %p62
    %s65 = sadd.s32 %s64, 1
    %p68 = scmp.eq.s32.totalorder %s9, 1
    %p69 = scmp.ne.s32.totalorder %s64, %s66
    %p70 = scmp.eq.s32.totalorder %s9, 0
    %p71 = por %p69, %p70
    %p72 = scmp.ne.s32.totalorder %s64, %s66
    %p73 = scmp.eq.s32.totalorder %s14, 1
    %p74 = por %p72, %p73
    %p75 = scmp.ne.s32.totalorder %s66, %s67
    %p76 = scmp.eq.s32.totalorder %s14, 0
    %p77 = por %p75, %p76
    %p78 = scmp.ne.s32.totalorder %s66, %s67
    %p79 = scmp.eq.s32.totalorder %s15, 1
    %p80 = por %p78, %p79
    %p82 = scmp.ne.s32.totalorder %s67, %s81
    %p83 = scmp.eq.s32.totalorder %s15, 0
    %p84 = por %p82, %p83
    %s85 = ssub.s32 %s9, %s16
    %p86 = scmp.eq.s32.totalorder %s85, 0
    %s88 = sadd.s32 %s87, 1
    %s89 = scalar_select %p86, %s87, %s88
    %p92 = pneg %p86
    %p93 = scmp.eq.s32.totalorder %s9, 1
    %p94 = por %p92, %p93
    %p95 = scmp.ne.s32.totalorder %s87, %s90
    %p96 = scmp.eq.s32.totalorder %s9, 0
    %p97 = por %p95, %p96
    %p98 = scmp.ne.s32.totalorder %s87, %s90
    %p99 = scmp.eq.s32.totalorder %s14, 1
    %p100 = por %p98, %p99
    %p101 = scmp.ne.s32.totalorder %s90, %s91
    %p102 = scmp.eq.s32.totalorder %s14, 0
    %p103 = por %p101, %p102
    %p104 = scmp.ne.s32.totalorder %s90, %s91
    %p105 = scmp.eq.s32.totalorder %s15, 1
    %p106 = por %p104, %p105
    %p108 = scmp.ne.s32.totalorder %s91, %s107
    %p109 = scmp.eq.s32.totalorder %s15, 0
    %p110 = por %p108, %p109
    %p111 = scmp.le.s32.totalorder 1, %s9
    %p112 = scmp.lt.s32.totalorder %s9, 3
    %p113 = pnand %p111, %p112
    %p114 = pneg %p113
    // Predicated region
    $region9: #{dqn_lstm_forward.6} parent=5 // pred_check
      _
    $region10: #{dqn_lstm_forward.6} parent=5 // pred_check_branch
      %116 = sbr.rel (%p113) target = $region12
    $region11: #{dqn_lstm_forward.6} parent=5 // pred_region
      %s117 = ssub.s32 %s9, 1
      // Predicated region
      $region13: #{dqn_lstm_forward.6} parent=11 // pred_check
        %p118 = pneg %p56
      $region14: #{dqn_lstm_forward.6} parent=11 // pred_check_branch
        %120 = sbr.rel (%p118) target = $region16
      $region15: #{dqn_lstm_forward.6} parent=11 // pred_region
        _
      $region16: #{dqn_lstm_forward.6} parent=11 // pred_fallthru
        _
      // Predicated region
      $region17: #{dqn_lstm_forward.6} parent=11 // pred_check
        %p121 = pneg %p77
      $region18: #{dqn_lstm_forward.6} parent=11 // pred_check_branch
        %123 = sbr.rel (%p121) target = $region20
      $region19: #{dqn_lstm_forward.6} parent=11 // pred_region
        _
      $region20: #{dqn_lstm_forward.6} parent=11 // pred_fallthru
        _
    $region12: #{dqn_lstm_forward.6} parent=5 // pred_fallthru
      _
    %p124 = scmp.lt.s32.totalorder %s9, 2
    // Predicated region
    $region21: #{dqn_lstm_forward.6} parent=5 // pred_check
      %p125 = pneg %p124
    $region22: #{dqn_lstm_forward.6} parent=5 // pred_check_branch
      %127 = sbr.rel (%p125) target = $region24
    $region23: #{dqn_lstm_forward.6} parent=5 // pred_region
      // Predicated region
      $region25: #{dqn_lstm_forward.6} parent=23 // pred_check
        %p128 = pneg %p29
      $region26: #{dqn_lstm_forward.6} parent=23 // pred_check_branch
        %130 = sbr.rel (%p128) target = $region28
      $region27: #{dqn_lstm_forward.6} parent=23 // pred_region
        %s131 = smul.u32 8, %s9
        %p132 = scmp.lt.s32.totalorder %s131, 15
        %s133 = scalar_select %p132, %s131, 15
        %s134 = smul.addr %s133, 4
        %s135 = smul.addr %s134, 4
        %s136 = scalar_lea.vmem %s0, %s135
        %s137 = smul.u32 8, %s9
      $region28: #{dqn_lstm_forward.6} parent=23 // pred_fallthru
        _
    $region24: #{dqn_lstm_forward.6} parent=5 // pred_fallthru
      _
    %p138 = scmp.le.s32.totalorder 1, %s9
    %p139 = scmp.lt.s32.totalorder %s9, 3
    %p140 = pnand %p138, %p139
    %p141 = pneg %p140
    // Predicated region
    $region29: #{dqn_lstm_forward.6} parent=5 // pred_check
      _
    $region30: #{dqn_lstm_forward.6} parent=5 // pred_check_branch
      %143 = sbr.rel (%p140) target = $region32
    $region31: #{dqn_lstm_forward.6} parent=5 // pred_region
      %s144 = ssub.s32 %s9, 1
      %s145 = smul.u32 8, %s14
      %p146 = scmp.lt.s32.totalorder %s145, 15
      %s147 = scalar_select %p146, %s145, 15
      %s148 = smul.addr %s147, 4
      %s149 = smul.addr %s148, 4
      %s150 = scalar_lea.vmem %s0, %s149
      %p151 = pneg %p35
      %p152 = pneg %p32
      %p153 = pneg %p56
      %p154 = pneg %p53
      %p155 = pneg %p77
      %p156 = pneg %p74
      %p157 = pneg %p103
      %p158 = pneg %p100
      %s159 = smul.u32 8, %s14
      %p160 = scmp.lt.s32.totalorder %s159, 15
      %s161 = scalar_select %p160, %s159, 15
      %s162 = smul.addr %s161, 4
      %s163 = scalar_lea.vmem %s3, %s162
      %s164 = smul.u32 8, %s14
      %p165 = scmp.lt.s32.totalorder %s164, 15
      %s166 = scalar_select %p165, %s164, 15
      %s167 = smul.addr %s166, 4
      %s168 = smul.addr %s167, 4
      %s169 = scalar_lea.vmem %s0, %s168
      %s170 = smul.u32 8, %s14
      %s171 = smul.u32 8, %s14
      %p172 = scmp.lt.s32.totalorder %s171, 15
      %s173 = scalar_select %p172, %s171, 15
      %s174 = smul.addr %s173, 4
      %s175 = scalar_lea.vmem %s3, %s174
      %s176 = smul.u32 8, %s14
      %v178 = vld [vmem:[%s169] sm:$0xff]
      %v179 = vld [vmem:[%s169 + $0x8] sm:$0xff]
      %v180 = vld [vmem:[%s169 + $0x10] sm:$0xff]
      %v181 = vld [vmem:[%s169 + $0x18] sm:$0xff]
      %v182 = vld [vmem:[%s169 + $0x20] sm:$0xff]
      %v183 = vld [vmem:[%s169 + $0x28] sm:$0xff]
      %v184 = vld [vmem:[%s169 + $0x30] sm:$0xff]
      %v185 = vld [vmem:[%s169 + $0x38] sm:$0xff]
      %v186 = vld [vmem:[%s169 + $0x40] sm:$0xff]
      %v187 = vld [vmem:[%s169 + $0x48] sm:$0xff]
      %v188 = vld [vmem:[%s169 + $0x50] sm:$0xff]
      %v189 = vld [vmem:[%s169 + $0x58] sm:$0xff]
      %v190 = vld [vmem:[%s169 + $0x60] sm:$0xff]
      %v191 = vld [vmem:[%s169 + $0x68] sm:$0xff]
      %v192 = vld [vmem:[%s169 + $0x70] sm:$0xff]
      %v193 = vld [vmem:[%s169 + $0x78] sm:$0xff]
      %v194 = vld [vmem:[%s1] sm:$0xf]
      %v195 = vld [vmem:[%s1 + $0x4] sm:$0xf]
      %v196 = vld [vmem:[%s1 + $0x8] sm:$0xf]
      %v197 = vld [vmem:[%s1 + $0xc] sm:$0xf]
      %v198 = vld [vmem:[%s1 + $0x10] sm:$0xf]
      %v199 = vld [vmem:[%s1 + $0x14] sm:$0xf]
      %v200 = vld [vmem:[%s1 + $0x18] sm:$0xf]
      %v201 = vld [vmem:[%s1 + $0x1c] sm:$0xf]
      %v202 = vld [vmem:[%s1 + $0x20] sm:$0xf]
      %v203 = vld [vmem:[%s1 + $0x24] sm:$0xf]
      %v204 = vld [vmem:[%s1 + $0x28] sm:$0xf]
      %v205 = vld [vmem:[%s1 + $0x2c] sm:$0xf]
      %v206 = vld [vmem:[%s1 + $0x30] sm:$0xf]
      %v207 = vld [vmem:[%s1 + $0x34] sm:$0xf]
      %v208 = vld [vmem:[%s1 + $0x38] sm:$0xf]
      %v209 = vld [vmem:[%s1 + $0x3c] sm:$0xf]
      %v210 = vld [vmem:[%s1 + $0x40] sm:$0xf]
      %v211 = vld [vmem:[%s1 + $0x44] sm:$0xf]
      %v212 = vld [vmem:[%s1 + $0x48] sm:$0xf]
      %v213 = vld [vmem:[%s1 + $0x4c] sm:$0xf]
      %v214 = vld [vmem:[%s1 + $0x50] sm:$0xf]
      %v215 = vld [vmem:[%s1 + $0x54] sm:$0xf]
      %v216 = vld [vmem:[%s1 + $0x58] sm:$0xf]
      %v217 = vld [vmem:[%s1 + $0x5c] sm:$0xf]
      %v218 = vld [vmem:[%s1 + $0x60] sm:$0xf]
      %v219 = vld [vmem:[%s1 + $0x64] sm:$0xf]
      %v220 = vld [vmem:[%s1 + $0x68] sm:$0xf]
      %v221 = vld [vmem:[%s1 + $0x6c] sm:$0xf]
      %v222 = vld [vmem:[%s1 + $0x70] sm:$0xf]
      %v223 = vld [vmem:[%s1 + $0x74] sm:$0xf]
      %v224 = vld [vmem:[%s1 + $0x78] sm:$0xf]
      %v225 = vld [vmem:[%s1 + $0x7c] sm:$0xf]
      %v226 = vld [vmem:[%s1 + $0x80] sm:$0xf]
      %v227 = vld [vmem:[%s1 + $0x84] sm:$0xf]
      %v228 = vld [vmem:[%s1 + $0x88] sm:$0xf]
      %v229 = vld [vmem:[%s1 + $0x8c] sm:$0xf]
      %v230 = vld [vmem:[%s1 + $0x90] sm:$0xf]
      %v231 = vld [vmem:[%s1 + $0x94] sm:$0xf]
      %v232 = vld [vmem:[%s1 + $0x98] sm:$0xf]
      %v233 = vld [vmem:[%s1 + $0x9c] sm:$0xf]
      %v234 = vld [vmem:[%s1 + $0xa0] sm:$0xf]
      %v235 = vld [vmem:[%s1 + $0xa4] sm:$0xf]
      %v236 = vld [vmem:[%s1 + $0xa8] sm:$0xf]
      %v237 = vld [vmem:[%s1 + $0xac] sm:$0xf]
      %v238 = vld [vmem:[%s1 + $0xb0] sm:$0xf]
      %v239 = vld [vmem:[%s1 + $0xb4] sm:$0xf]
      %v240 = vld [vmem:[%s1 + $0xb8] sm:$0xf]
      %v241 = vld [vmem:[%s1 + $0xbc] sm:$0xf]
      %v242 = vld [vmem:[%s1 + $0xc0] sm:$0xf]
      %v243 = vld [vmem:[%s1 + $0xc4] sm:$0xf]
      %v244 = vld [vmem:[%s1 + $0xc8] sm:$0xf]
      %v245 = vld [vmem:[%s1 + $0xcc] sm:$0xf]
      %v246 = vld [vmem:[%s1 + $0xd0] sm:$0xf]
      %v247 = vld [vmem:[%s1 + $0xd4] sm:$0xf]
      %v248 = vld [vmem:[%s1 + $0xd8] sm:$0xf]
      %v249 = vld [vmem:[%s1 + $0xdc] sm:$0xf]
      %v250 = vld [vmem:[%s1 + $0xe0] sm:$0xf]
      %v251 = vld [vmem:[%s1 + $0xe4] sm:$0xf]
      %v252 = vld [vmem:[%s1 + $0xe8] sm:$0xf]
      %v253 = vld [vmem:[%s1 + $0xec] sm:$0xf]
      %v254 = vld [vmem:[%s1 + $0xf0] sm:$0xf]
      %v255 = vld [vmem:[%s1 + $0xf4] sm:$0xf]
      %v256 = vld [vmem:[%s1 + $0xf8] sm:$0xf]
      %v257 = vld [vmem:[%s1 + $0xfc] sm:$0xf]
      %v258 = vld [vmem:[%s2] sm:$0x1]
      %v260 = vlaneseq
      %v261 = vshrl.u32 %v260, 7
      %v262 = vsub.s32 0, %v261
      %v263 = vrot.slane %v258, %v262
      %v281 = vunpack.c.l.b16 %v178
      %v282 = vunpack.c.h.b16 %v178
      %v283 = vunpack.c.l.b16 %v179
      %v284 = vunpack.c.h.b16 %v179
      %v285 = vunpack.c.l.b16 %v180
      %v286 = vunpack.c.h.b16 %v180
      %v287 = vunpack.c.l.b16 %v181
      %v288 = vunpack.c.h.b16 %v181
      %v289 = vunpack.c.l.b16 %v182
      %v290 = vunpack.c.h.b16 %v182
      %v291 = vunpack.c.l.b16 %v183
      %v292 = vunpack.c.h.b16 %v183
      %v293 = vunpack.c.l.b16 %v184
      %v294 = vunpack.c.h.b16 %v184
      %v295 = vunpack.c.l.b16 %v185
      %v296 = vunpack.c.h.b16 %v185
      %v297 = vunpack.c.l.b16 %v186
      %v298 = vunpack.c.h.b16 %v186
      %v299 = vunpack.c.l.b16 %v187
      %v300 = vunpack.c.h.b16 %v187
      %v301 = vunpack.c.l.b16 %v188
      %v302 = vunpack.c.h.b16 %v188
      %v303 = vunpack.c.l.b16 %v189
      %v304 = vunpack.c.h.b16 %v189
      %v305 = vunpack.c.l.b16 %v190
      %v306 = vunpack.c.h.b16 %v190
      %v307 = vunpack.c.l.b16 %v191
      %v308 = vunpack.c.h.b16 %v191
      %v309 = vunpack.c.l.b16 %v192
      %v310 = vunpack.c.h.b16 %v192
      %v311 = vunpack.c.l.b16 %v193
      %v312 = vunpack.c.h.b16 %v193
      %v313 = vpack.c.b16 %v285, %v281
      %v314 = vpack.c.b16 %v286, %v282
      %v315 = vpack.c.b16 %v287, %v283
      %v316 = vpack.c.b16 %v288, %v284
      %v317 = vpack.c.b16 %v293, %v289
      %v318 = vpack.c.b16 %v294, %v290
      %v319 = vpack.c.b16 %v295, %v291
      %v320 = vpack.c.b16 %v296, %v292
      %v321 = vpack.c.b16 %v301, %v297
      %v322 = vpack.c.b16 %v302, %v298
      %v323 = vpack.c.b16 %v303, %v299
      %v324 = vpack.c.b16 %v304, %v300
      %v325 = vpack.c.b16 %v309, %v305
      %v326 = vpack.c.b16 %v310, %v306
      %v327 = vpack.c.b16 %v311, %v307
      %v328 = vpack.c.b16 %v312, %v308
      %v409 = vunpack.c.l.b16 %v194
      %v410 = vunpack.c.l.b16 %v195
      %v411 = vunpack.c.l.b16 %v196
      %v412 = vunpack.c.l.b16 %v197
      %v413 = vunpack.c.l.b16 %v198
      %v414 = vunpack.c.l.b16 %v199
      %v415 = vunpack.c.l.b16 %v200
      %v416 = vunpack.c.l.b16 %v201
      %v417 = vunpack.c.l.b16 %v202
      %v418 = vunpack.c.l.b16 %v203
      %v419 = vunpack.c.l.b16 %v204
      %v420 = vunpack.c.l.b16 %v205
      %v421 = vunpack.c.l.b16 %v206
      %v422 = vunpack.c.l.b16 %v207
      %v423 = vunpack.c.l.b16 %v208
      %v424 = vunpack.c.l.b16 %v209
      %v425 = vunpack.c.l.b16 %v210
      %v426 = vunpack.c.l.b16 %v211
      %v427 = vunpack.c.l.b16 %v212
      %v428 = vunpack.c.l.b16 %v213
      %v429 = vunpack.c.l.b16 %v214
      %v430 = vunpack.c.l.b16 %v215
      %v431 = vunpack.c.l.b16 %v216
      %v432 = vunpack.c.l.b16 %v217
      %v433 = vunpack.c.l.b16 %v218
      %v434 = vunpack.c.l.b16 %v219
      %v435 = vunpack.c.l.b16 %v220
      %v436 = vunpack.c.l.b16 %v221
      %v437 = vunpack.c.l.b16 %v222
      %v438 = vunpack.c.l.b16 %v223
      %v439 = vunpack.c.l.b16 %v224
      %v440 = vunpack.c.l.b16 %v225
      %v441 = vunpack.c.l.b16 %v226
      %v442 = vunpack.c.l.b16 %v227
      %v443 = vunpack.c.l.b16 %v228
      %v444 = vunpack.c.l.b16 %v229
      %v445 = vunpack.c.l.b16 %v230
      %v446 = vunpack.c.l.b16 %v231
      %v447 = vunpack.c.l.b16 %v232
      %v448 = vunpack.c.l.b16 %v233
      %v449 = vunpack.c.l.b16 %v234
      %v450 = vunpack.c.l.b16 %v235
      %v451 = vunpack.c.l.b16 %v236
      %v452 = vunpack.c.l.b16 %v237
      %v453 = vunpack.c.l.b16 %v238
      %v454 = vunpack.c.l.b16 %v239
      %v455 = vunpack.c.l.b16 %v240
      %v456 = vunpack.c.l.b16 %v241
      %v457 = vunpack.c.l.b16 %v242
      %v458 = vunpack.c.l.b16 %v243
      %v459 = vunpack.c.l.b16 %v244
      %v460 = vunpack.c.l.b16 %v245
      %v461 = vunpack.c.l.b16 %v246
      %v462 = vunpack.c.l.b16 %v247
      %v463 = vunpack.c.l.b16 %v248
      %v464 = vunpack.c.l.b16 %v249
      %v465 = vunpack.c.l.b16 %v250
      %v466 = vunpack.c.l.b16 %v251
      %v467 = vunpack.c.l.b16 %v252
      %v468 = vunpack.c.l.b16 %v253
      %v469 = vunpack.c.l.b16 %v254
      %v470 = vunpack.c.l.b16 %v255
      %v471 = vunpack.c.l.b16 %v256
      %v472 = vunpack.c.l.b16 %v257
      %v473 = vpack.c.b16 %v410, %v409
      %v474 = vpack.c.b16 %v412, %v411
      %v475 = vpack.c.b16 %v414, %v413
      %v476 = vpack.c.b16 %v416, %v415
      %v477 = vpack.c.b16 %v418, %v417
      %v478 = vpack.c.b16 %v420, %v419
      %v479 = vpack.c.b16 %v422, %v421
      %v480 = vpack.c.b16 %v424, %v423
      %v481 = vpack.c.b16 %v426, %v425
      %v482 = vpack.c.b16 %v428, %v427
      %v483 = vpack.c.b16 %v430, %v429
      %v484 = vpack.c.b16 %v432, %v431
      %v485 = vpack.c.b16 %v434, %v433
      %v486 = vpack.c.b16 %v436, %v435
      %v487 = vpack.c.b16 %v438, %v437
      %v488 = vpack.c.b16 %v440, %v439
      %v489 = vpack.c.b16 %v442, %v441
      %v490 = vpack.c.b16 %v444, %v443
      %v491 = vpack.c.b16 %v446, %v445
      %v492 = vpack.c.b16 %v448, %v447
      %v493 = vpack.c.b16 %v450, %v449
      %v494 = vpack.c.b16 %v452, %v451
      %v495 = vpack.c.b16 %v454, %v453
      %v496 = vpack.c.b16 %v456, %v455
      %v497 = vpack.c.b16 %v458, %v457
      %v498 = vpack.c.b16 %v460, %v459
      %v499 = vpack.c.b16 %v462, %v461
      %v500 = vpack.c.b16 %v464, %v463
      %v501 = vpack.c.b16 %v466, %v465
      %v502 = vpack.c.b16 %v468, %v467
      %v503 = vpack.c.b16 %v470, %v469
      %v504 = vpack.c.b16 %v472, %v471
      %537 = vmatprep.subr.bf16.mxu0 0
      %538 = vmatpush1.bf16.msra.mxu0 %v480
      %539 = vmatprep.subr.bf16.mxu0 0
      %540 = vmatpush1.bf16.msra.mxu0 %v479
      %541 = vmatprep.subr.bf16.mxu0 0
      %542 = vmatpush1.bf16.msra.mxu0 %v478
      %543 = vmatprep.subr.bf16.mxu0 0
      %544 = vmatpush1.bf16.msra.mxu0 %v477
      %545 = vmatprep.subr.bf16.mxu0 0
      %546 = vmatpush1.bf16.msra.mxu0 %v476
      %547 = vmatprep.subr.bf16.mxu0 0
      %548 = vmatpush1.bf16.msra.mxu0 %v475
      %549 = vmatprep.subr.bf16.mxu0 0
      %550 = vmatpush1.bf16.msra.mxu0 %v474
      %551 = vmatprep.subr.bf16.mxu0 0
      %552 = vmatpush1.bf16.msra.mxu0 %v473
      %553 = vmatprep.subr.bf16.mxu0 0
      %554 = vmatpush2.bf16.msra.mxu0 %v488
      %555 = vmatprep.subr.bf16.mxu0 0
      %556 = vmatpush2.bf16.msra.mxu0 %v487
      %557 = vmatprep.subr.bf16.mxu0 0
      %558 = vmatpush2.bf16.msra.mxu0 %v486
      %559 = vmatprep.subr.bf16.mxu0 0
      %560 = vmatpush2.bf16.msra.mxu0 %v485
      %561 = vmatprep.subr.bf16.mxu0 0
      %562 = vmatpush2.bf16.msra.mxu0 %v484
      %563 = vmatprep.subr.bf16.mxu0 0
      %564 = vmatpush2.bf16.msra.mxu0 %v483
      %565 = vmatprep.subr.bf16.mxu0 0
      %566 = vmatpush2.bf16.msra.mxu0 %v482
      %567 = vmatprep.subr.bf16.mxu0 0
      %568 = vmatpush2.bf16.msra.mxu0 %v481
      %569 = vmatprep.mubr.bf16.mxu0 %v314
      %570 = vmatmul.mubr.bf16.gmra.mxu0 %v313
      %v571 = vpop.f32.mrf.mxu0
      %v572 = vadd.f32 %v263, %v571
      %v573 = vpop.f32.mrf.mxu0
      %v574 = vpop.f32.mrf.mxu0
      %v575 = vadd.f32 %v263, %v574
      %v576 = vpop.f32.mrf.mxu0
      %577 = vmatprep.mubr.bf16.mxu0 %v318
      %578 = vmatmul.mubr.bf16.gmra.mxu0 %v317
      %v579 = vpop.f32.mrf.mxu0
      %v580 = vadd.f32 %v263, %v579
      %v581 = vpop.f32.mrf.mxu0
      %v582 = vpop.f32.mrf.mxu0
      %v583 = vadd.f32 %v263, %v582
      %v584 = vpop.f32.mrf.mxu0
      %585 = vmatprep.mubr.bf16.mxu0 %v322
      %586 = vmatmul.mubr.bf16.gmra.mxu0 %v321
      %v587 = vpop.f32.mrf.mxu0
      %v588 = vadd.f32 %v263, %v587
      %v589 = vpop.f32.mrf.mxu0
      %v590 = vpop.f32.mrf.mxu0
      %v591 = vadd.f32 %v263, %v590
      %v592 = vpop.f32.mrf.mxu0
      %593 = vmatprep.mubr.bf16.mxu0 %v326
      %594 = vmatmul.mubr.bf16.gmra.mxu0 %v325
      %v595 = vpop.f32.mrf.mxu0
      %v596 = vadd.f32 %v263, %v595
      %v597 = vpop.f32.mrf.mxu0
      %v598 = vpop.f32.mrf.mxu0
      %v599 = vadd.f32 %v263, %v598
      %v600 = vpop.f32.mrf.mxu0
      %601 = vdwg.mxu0
      %602 = vmatprep.subr.bf16.mxu0 0
      %603 = vmatpush1.bf16.msra.mxu0 %v496
      %604 = vmatprep.subr.bf16.mxu0 0
      %605 = vmatpush1.bf16.msra.mxu0 %v495
      %606 = vmatprep.subr.bf16.mxu0 0
      %607 = vmatpush1.bf16.msra.mxu0 %v494
      %608 = vmatprep.subr.bf16.mxu0 0
      %609 = vmatpush1.bf16.msra.mxu0 %v493
      %610 = vmatprep.subr.bf16.mxu0 0
      %611 = vmatpush1.bf16.msra.mxu0 %v492
      %612 = vmatprep.subr.bf16.mxu0 0
      %613 = vmatpush1.bf16.msra.mxu0 %v491
      %614 = vmatprep.subr.bf16.mxu0 0
      %615 = vmatpush1.bf16.msra.mxu0 %v490
      %616 = vmatprep.subr.bf16.mxu0 0
      %617 = vmatpush1.bf16.msra.mxu0 %v489
      %618 = vmatprep.subr.bf16.mxu0 0
      %619 = vmatpush2.bf16.msra.mxu0 %v504
      %620 = vmatprep.subr.bf16.mxu0 0
      %621 = vmatpush2.bf16.msra.mxu0 %v503
      %622 = vmatprep.subr.bf16.mxu0 0
      %623 = vmatpush2.bf16.msra.mxu0 %v502
      %624 = vmatprep.subr.bf16.mxu0 0
      %625 = vmatpush2.bf16.msra.mxu0 %v501
      %626 = vmatprep.subr.bf16.mxu0 0
      %627 = vmatpush2.bf16.msra.mxu0 %v500
      %628 = vmatprep.subr.bf16.mxu0 0
      %629 = vmatpush2.bf16.msra.mxu0 %v499
      %630 = vmatprep.subr.bf16.mxu0 0
      %631 = vmatpush2.bf16.msra.mxu0 %v498
      %632 = vmatprep.subr.bf16.mxu0 0
      %633 = vmatpush2.bf16.msra.mxu0 %v497
      %634 = vmatprep.mubr.bf16.mxu0 %v316
      %635 = vmatmul.mubr.bf16.gmra.mxu0 %v315
      %v636 = vpop.f32.mrf.mxu0
      %v637 = vadd.f32 %v572, %v636
      %v638 = vpop.f32.mrf.mxu0
      %v639 = vpop.f32.mrf.mxu0
      %v640 = vadd.f32 %v575, %v639
      %v641 = vpop.f32.mrf.mxu0
      %642 = vmatprep.mubr.bf16.mxu0 %v320
      %643 = vmatmul.mubr.bf16.gmra.mxu0 %v319
      %v644 = vpop.f32.mrf.mxu0
      %v645 = vadd.f32 %v580, %v644
      %v646 = vpop.f32.mrf.mxu0
      %v647 = vpop.f32.mrf.mxu0
      %v648 = vadd.f32 %v583, %v647
      %v649 = vpop.f32.mrf.mxu0
      %650 = vmatprep.mubr.bf16.mxu0 %v324
      %651 = vmatmul.mubr.bf16.gmra.mxu0 %v323
      %v652 = vpop.f32.mrf.mxu0
      %v653 = vadd.f32 %v588, %v652
      %v654 = vpop.f32.mrf.mxu0
      %v655 = vpop.f32.mrf.mxu0
      %v656 = vadd.f32 %v591, %v655
      %v657 = vpop.f32.mrf.mxu0
      %658 = vmatprep.mubr.bf16.mxu0 %v328
      %659 = vmatmul.mubr.bf16.gmra.mxu0 %v327
      %v660 = vpop.f32.mrf.mxu0
      %v661 = vadd.f32 %v596, %v660
      %v662 = vpop.f32.mrf.mxu0
      %v663 = vpop.f32.mrf.mxu0
      %v664 = vadd.f32 %v599, %v663
      %v665 = vpop.f32.mrf.mxu0
      %666 = vdwg.mxu0
      %v667 = vmax.f32 %v637, 0.0
      %v668 = vmax.f32 %v640, 0.0
      %v669 = vmax.f32 %v645, 0.0
      %v670 = vmax.f32 %v648, 0.0
      %v671 = vmax.f32 %v653, 0.0
      %v672 = vmax.f32 %v656, 0.0
      %v673 = vmax.f32 %v661, 0.0
      %v674 = vmax.f32 %v664, 0.0
      %v675 = vpack.c.bf16 %v668, %v667
      %v676 = vpack.c.bf16 %v670, %v669
      %v677 = vpack.c.bf16 %v672, %v671
      %v678 = vpack.c.bf16 %v674, %v673
      %v683 = vunpack.c.l.b16 %v675
      %v684 = vunpack.c.h.b16 %v675
      %v685 = vunpack.c.l.b16 %v676
      %v686 = vunpack.c.h.b16 %v676
      %v687 = vunpack.c.l.b16 %v677
      %v688 = vunpack.c.h.b16 %v677
      %v689 = vunpack.c.l.b16 %v678
      %v690 = vunpack.c.h.b16 %v678
      %v691 = vpack.c.b16 %v683, %v683
      %v692 = vpack.c.b16 %v684, %v684
      %v693 = vpack.c.b16 %v685, %v685
      %v694 = vpack.c.b16 %v686, %v686
      %v695 = vpack.c.b16 %v687, %v687
      %v696 = vpack.c.b16 %v688, %v688
      %v697 = vpack.c.b16 %v689, %v689
      %v698 = vpack.c.b16 %v690, %v690
      %vm707 = vcmask 519168
      %708 = vst.msk [vmem:[%s175] sm:$0xf] %vm707, %v691
      %709 = vst.msk [vmem:[%s175 + $0x4] sm:$0xf] %vm707, %v692
      %710 = vst.msk [vmem:[%s175 + $0x8] sm:$0xf] %vm707, %v693
      %711 = vst.msk [vmem:[%s175 + $0xc] sm:$0xf] %vm707, %v694
      %712 = vst.msk [vmem:[%s175 + $0x10] sm:$0xf] %vm707, %v695
      %713 = vst.msk [vmem:[%s175 + $0x14] sm:$0xf] %vm707, %v696
      %714 = vst.msk [vmem:[%s175 + $0x18] sm:$0xf] %vm707, %v697
      %715 = vst.msk [vmem:[%s175 + $0x1c] sm:$0xf] %vm707, %v698
      %s716 = smul.u32 8, %s14
      %p717 = scmp.lt.s32.totalorder %s716, 15
      %s718 = scalar_select %p717, %s716, 15
      %s719 = smul.addr %s718, 4
      %s720 = scalar_lea.vmem %s3, %s719
      // Predicated region
      $region33: #{dqn_lstm_forward.6} parent=31 // pred_check
        %p721 = pneg %p100
      $region34: #{dqn_lstm_forward.6} parent=31 // pred_check_branch
        %723 = sbr.rel (%p721) target = $region36
      $region35: #{dqn_lstm_forward.6} parent=31 // pred_region
        %s724 = smul.u32 8, %s14
      $region36: #{dqn_lstm_forward.6} parent=31 // pred_fallthru
        _
    $region32: #{dqn_lstm_forward.6} parent=5 // pred_fallthru
      _
    %p725 = scmp.le.s32.totalorder 2, %s9
    // Predicated region
    $region37: #{dqn_lstm_forward.6} parent=5 // pred_check
      %p726 = pneg %p725
    $region38: #{dqn_lstm_forward.6} parent=5 // pred_check_branch
      %728 = sbr.rel (%p726) target = $region40
    $region39: #{dqn_lstm_forward.6} parent=5 // pred_region
      %s729 = ssub.s32 %s9, 2
      // Predicated region
      $region41: #{dqn_lstm_forward.6} parent=39 // pred_check
        %p730 = pneg %p106
      $region42: #{dqn_lstm_forward.6} parent=39 // pred_check_branch
        %732 = sbr.rel (%p730) target = $region44
      $region43: #{dqn_lstm_forward.6} parent=39 // pred_region
        %s733 = smul.u32 8, %s15
        %p734 = scmp.lt.s32.totalorder %s733, 15
        %s735 = scalar_select %p734, %s733, 15
        %s736 = smul.addr %s735, 4
        %s737 = scalar_lea.vmem %s3, %s736
      $region44: #{dqn_lstm_forward.6} parent=39 // pred_fallthru
        _
    $region40: #{dqn_lstm_forward.6} parent=5 // pred_fallthru
      _
  $region6: #{dqn_lstm_forward.6} parent=0 // loop_footer
    %s13 = sadd.s32 1, %s9
  $region7: #{dqn_lstm_forward.6} parent=0 // loop_footer_branch
    %8 = sbr.rel target = $region3
  $region8: #{dqn_lstm_forward.6} parent=0 // loop_exit
    _

// kernel: dqn_lstm_forward.7
$region0: #{dqn_lstm_forward.7}
  #allocation0 [shape = 'u32[]', space=smem, size = 0x4, offset = 0x4, fixed_abs, tag = 'smem constant byte address 0x4 - core index']
  #allocation1 [shape = 'u32[144,128]{1,0:T(1,128)}', space=vmem, size = 0x12000, scoped, tag = 'internal scratch']
  %s0 = inlined_call_operand.vmem [shape: bf16[8,1024], index: 0, kind: input, shape index: {}]
  %s1 = inlined_call_operand.vmem [shape: bf16[1024,64], index: 1, kind: input, shape index: {}]
  %s2 = inlined_call_operand.vmem [shape: f32[1,64], index: 2, kind: input, shape index: {}]
  %s3 = inlined_call_operand.vmem [shape: bf16[8,64], index: 3, kind: output, shape index: {}]
  %s4 = sld [smem:[#allocation0]]
  $region22: #{dqn_lstm_forward.7} parent=0
    _
  %s6 = ssub.s32 1, %s4
  %s7 = scalar_select 0, %s6, %s4
  // Predicated region
  $region2: #{dqn_lstm_forward.7} parent=0 // pred_check
    _
  $region3: #{dqn_lstm_forward.7} parent=0 // pred_check_branch
    %9 = sbr.rel (0) target = $region5
  $region4: #{dqn_lstm_forward.7} parent=0 // pred_region
    _
  $region5: #{dqn_lstm_forward.7} parent=0 // pred_fallthru
    _
  // Predicated region
  $region6: #{dqn_lstm_forward.7} parent=0 // pred_check
    _
  $region7: #{dqn_lstm_forward.7} parent=0 // pred_check_branch
    %11 = sbr.rel (0) target = $region9
  $region8: #{dqn_lstm_forward.7} parent=0 // pred_region
    _
  $region9: #{dqn_lstm_forward.7} parent=0 // pred_fallthru
    _
  // Predicated region
  $region10: #{dqn_lstm_forward.7} parent=0 // pred_check
    _
  $region11: #{dqn_lstm_forward.7} parent=0 // pred_check_branch
    %13 = sbr.rel (0) target = $region13
  $region12: #{dqn_lstm_forward.7} parent=0 // pred_region
    _
  $region13: #{dqn_lstm_forward.7} parent=0 // pred_fallthru
    _
  %v15 = vld [vmem:[%s0] sm:$0xff]
  %v16 = vld [vmem:[%s0 + $0x8] sm:$0xff]
  %v17 = vld [vmem:[%s0 + $0x10] sm:$0xff]
  %v18 = vld [vmem:[%s0 + $0x18] sm:$0xff]
  %v19 = vld [vmem:[%s1] sm:$0xf]
  %v20 = vld [vmem:[%s1 + $0x4] sm:$0xf]
  %v21 = vld [vmem:[%s1 + $0x8] sm:$0xf]
  %v22 = vld [vmem:[%s1 + $0xc] sm:$0xf]
  %v23 = vld [vmem:[%s1 + $0x10] sm:$0xf]
  %v24 = vld [vmem:[%s1 + $0x14] sm:$0xf]
  %v25 = vld [vmem:[%s1 + $0x18] sm:$0xf]
  %v26 = vld [vmem:[%s1 + $0x1c] sm:$0xf]
  %v27 = vld [vmem:[%s1 + $0x20] sm:$0xf]
  %v28 = vld [vmem:[%s1 + $0x24] sm:$0xf]
  %v29 = vld [vmem:[%s1 + $0x28] sm:$0xf]
  %v30 = vld [vmem:[%s1 + $0x2c] sm:$0xf]
  %v31 = vld [vmem:[%s1 + $0x30] sm:$0xf]
  %v32 = vld [vmem:[%s1 + $0x34] sm:$0xf]
  %v33 = vld [vmem:[%s1 + $0x38] sm:$0xf]
  %v34 = vld [vmem:[%s1 + $0x3c] sm:$0xf]
  %v35 = vld [vmem:[%s1 + $0x40] sm:$0xf]
  %v36 = vld [vmem:[%s1 + $0x44] sm:$0xf]
  %v37 = vld [vmem:[%s1 + $0x48] sm:$0xf]
  %v38 = vld [vmem:[%s1 + $0x4c] sm:$0xf]
  %v39 = vld [vmem:[%s1 + $0x50] sm:$0xf]
  %v40 = vld [vmem:[%s1 + $0x54] sm:$0xf]
  %v41 = vld [vmem:[%s1 + $0x58] sm:$0xf]
  %v42 = vld [vmem:[%s1 + $0x5c] sm:$0xf]
  %v43 = vld [vmem:[%s1 + $0x60] sm:$0xf]
  %v44 = vld [vmem:[%s1 + $0x64] sm:$0xf]
  %v45 = vld [vmem:[%s1 + $0x68] sm:$0xf]
  %v46 = vld [vmem:[%s1 + $0x6c] sm:$0xf]
  %v47 = vld [vmem:[%s1 + $0x70] sm:$0xf]
  %v48 = vld [vmem:[%s1 + $0x74] sm:$0xf]
  %v49 = vld [vmem:[%s1 + $0x78] sm:$0xf]
  %v50 = vld [vmem:[%s1 + $0x7c] sm:$0xf]
  %v51 = vld [vmem:[%s1 + $0x80] sm:$0xf]
  %v52 = vld [vmem:[%s1 + $0x84] sm:$0xf]
  %v53 = vld [vmem:[%s1 + $0x88] sm:$0xf]
  %v54 = vld [vmem:[%s1 + $0x8c] sm:$0xf]
  %v55 = vld [vmem:[%s1 + $0x90] sm:$0xf]
  %v56 = vld [vmem:[%s1 + $0x94] sm:$0xf]
  %v57 = vld [vmem:[%s1 + $0x98] sm:$0xf]
  %v58 = vld [vmem:[%s1 + $0x9c] sm:$0xf]
  %v59 = vld [vmem:[%s1 + $0xa0] sm:$0xf]
  %v60 = vld [vmem:[%s1 + $0xa4] sm:$0xf]
  %v61 = vld [vmem:[%s1 + $0xa8] sm:$0xf]
  %v62 = vld [vmem:[%s1 + $0xac] sm:$0xf]
  %v63 = vld [vmem:[%s1 + $0xb0] sm:$0xf]
  %v64 = vld [vmem:[%s1 + $0xb4] sm:$0xf]
  %v65 = vld [vmem:[%s1 + $0xb8] sm:$0xf]
  %v66 = vld [vmem:[%s1 + $0xbc] sm:$0xf]
  %v67 = vld [vmem:[%s1 + $0xc0] sm:$0xf]
  %v68 = vld [vmem:[%s1 + $0xc4] sm:$0xf]
  %v69 = vld [vmem:[%s1 + $0xc8] sm:$0xf]
  %v70 = vld [vmem:[%s1 + $0xcc] sm:$0xf]
  %v71 = vld [vmem:[%s1 + $0xd0] sm:$0xf]
  %v72 = vld [vmem:[%s1 + $0xd4] sm:$0xf]
  %v73 = vld [vmem:[%s1 + $0xd8] sm:$0xf]
  %v74 = vld [vmem:[%s1 + $0xdc] sm:$0xf]
  %v75 = vld [vmem:[%s1 + $0xe0] sm:$0xf]
  %v76 = vld [vmem:[%s1 + $0xe4] sm:$0xf]
  %v77 = vld [vmem:[%s1 + $0xe8] sm:$0xf]
  %v78 = vld [vmem:[%s1 + $0xec] sm:$0xf]
  %v79 = vld [vmem:[%s1 + $0xf0] sm:$0xf]
  %v80 = vld [vmem:[%s1 + $0xf4] sm:$0xf]
  %v81 = vld [vmem:[%s1 + $0xf8] sm:$0xf]
  %v82 = vld [vmem:[%s1 + $0xfc] sm:$0xf]
  %v83 = vld [vmem:[%s1 + $0x100] sm:$0xf]
  %v84 = vld [vmem:[%s1 + $0x104] sm:$0xf]
  %v85 = vld [vmem:[%s1 + $0x108] sm:$0xf]
  %v86 = vld [vmem:[%s1 + $0x10c] sm:$0xf]
  %v87 = vld [vmem:[%s1 + $0x110] sm:$0xf]
  %v88 = vld [vmem:[%s1 + $0x114] sm:$0xf]
  %v89 = vld [vmem:[%s1 + $0x118] sm:$0xf]
  %v90 = vld [vmem:[%s1 + $0x11c] sm:$0xf]
  %v91 = vld [vmem:[%s1 + $0x120] sm:$0xf]
  %v92 = vld [vmem:[%s1 + $0x124] sm:$0xf]
  %v93 = vld [vmem:[%s1 + $0x128] sm:$0xf]
  %v94 = vld [vmem:[%s1 + $0x12c] sm:$0xf]
  %v95 = vld [vmem:[%s1 + $0x130] sm:$0xf]
  %v96 = vld [vmem:[%s1 + $0x134] sm:$0xf]
  %v97 = vld [vmem:[%s1 + $0x138] sm:$0xf]
  %v98 = vld [vmem:[%s1 + $0x13c] sm:$0xf]
  %v99 = vld [vmem:[%s1 + $0x140] sm:$0xf]
  %v100 = vld [vmem:[%s1 + $0x144] sm:$0xf]
  %v101 = vld [vmem:[%s1 + $0x148] sm:$0xf]
  %v102 = vld [vmem:[%s1 + $0x14c] sm:$0xf]
  %v103 = vld [vmem:[%s1 + $0x150] sm:$0xf]
  %v104 = vld [vmem:[%s1 + $0x154] sm:$0xf]
  %v105 = vld [vmem:[%s1 + $0x158] sm:$0xf]
  %v106 = vld [vmem:[%s1 + $0x15c] sm:$0xf]
  %v107 = vld [vmem:[%s1 + $0x160] sm:$0xf]
  %v108 = vld [vmem:[%s1 + $0x164] sm:$0xf]
  %v109 = vld [vmem:[%s1 + $0x168] sm:$0xf]
  %v110 = vld [vmem:[%s1 + $0x16c] sm:$0xf]
  %v111 = vld [vmem:[%s1 + $0x170] sm:$0xf]
  %v112 = vld [vmem:[%s1 + $0x174] sm:$0xf]
  %v113 = vld [vmem:[%s1 + $0x178] sm:$0xf]
  %v114 = vld [vmem:[%s1 + $0x17c] sm:$0xf]
  %v115 = vld [vmem:[%s1 + $0x180] sm:$0xf]
  %v116 = vld [vmem:[%s1 + $0x184] sm:$0xf]
  %v117 = vld [vmem:[%s1 + $0x188] sm:$0xf]
  %v118 = vld [vmem:[%s1 + $0x18c] sm:$0xf]
  %v119 = vld [vmem:[%s1 + $0x190] sm:$0xf]
  %v120 = vld [vmem:[%s1 + $0x194] sm:$0xf]
  %v121 = vld [vmem:[%s1 + $0x198] sm:$0xf]
  %v122 = vld [vmem:[%s1 + $0x19c] sm:$0xf]
  %v123 = vld [vmem:[%s1 + $0x1a0] sm:$0xf]
  %v124 = vld [vmem:[%s1 + $0x1a4] sm:$0xf]
  %v125 = vld [vmem:[%s1 + $0x1a8] sm:$0xf]
  %v126 = vld [vmem:[%s1 + $0x1ac] sm:$0xf]
  %v127 = vld [vmem:[%s1 + $0x1b0] sm:$0xf]
  %v128 = vld [vmem:[%s1 + $0x1b4] sm:$0xf]
  %v129 = vld [vmem:[%s1 + $0x1b8] sm:$0xf]
  %v130 = vld [vmem:[%s1 + $0x1bc] sm:$0xf]
  %v131 = vld [vmem:[%s1 + $0x1c0] sm:$0xf]
  %v132 = vld [vmem:[%s1 + $0x1c4] sm:$0xf]
  %v133 = vld [vmem:[%s1 + $0x1c8] sm:$0xf]
  %v134 = vld [vmem:[%s1 + $0x1cc] sm:$0xf]
  %v135 = vld [vmem:[%s1 + $0x1d0] sm:$0xf]
  %v136 = vld [vmem:[%s1 + $0x1d4] sm:$0xf]
  %v137 = vld [vmem:[%s1 + $0x1d8] sm:$0xf]
  %v138 = vld [vmem:[%s1 + $0x1dc] sm:$0xf]
  %v139 = vld [vmem:[%s1 + $0x1e0] sm:$0xf]
  %v140 = vld [vmem:[%s1 + $0x1e4] sm:$0xf]
  %v141 = vld [vmem:[%s1 + $0x1e8] sm:$0xf]
  %v142 = vld [vmem:[%s1 + $0x1ec] sm:$0xf]
  %v143 = vld [vmem:[%s1 + $0x1f0] sm:$0xf]
  %v144 = vld [vmem:[%s1 + $0x1f4] sm:$0xf]
  %v145 = vld [vmem:[%s1 + $0x1f8] sm:$0xf]
  %v146 = vld [vmem:[%s1 + $0x1fc] sm:$0xf]
  %v147 = vld [vmem:[%s2] sm:$0x1]
  %v149 = vlaneseq
  %v150 = vshrl.u32 %v149, 7
  %v151 = vsub.s32 0, %v150
  %v152 = vrot.slane %v147, %v151
  %v158 = vunpack.c.l.b16 %v15
  %v159 = vunpack.c.h.b16 %v15
  %v160 = vunpack.c.l.b16 %v16
  %v161 = vunpack.c.h.b16 %v16
  %v162 = vunpack.c.l.b16 %v17
  %v163 = vunpack.c.h.b16 %v17
  %v164 = vunpack.c.l.b16 %v18
  %v165 = vunpack.c.h.b16 %v18
  %v166 = vpack.c.b16 %v158, %v158
  %v167 = vpack.c.b16 %v159, %v159
  %v168 = vpack.c.b16 %v160, %v160
  %v169 = vpack.c.b16 %v161, %v161
  %v170 = vpack.c.b16 %v162, %v162
  %v171 = vpack.c.b16 %v163, %v163
  %v172 = vpack.c.b16 %v164, %v164
  %v173 = vpack.c.b16 %v165, %v165
  %v310 = vunpack.c.l.b16 %v19
  %v311 = vunpack.c.l.b16 %v20
  %v312 = vunpack.c.l.b16 %v21
  %v313 = vunpack.c.l.b16 %v22
  %v314 = vunpack.c.l.b16 %v23
  %v315 = vunpack.c.l.b16 %v24
  %v316 = vunpack.c.l.b16 %v25
  %v317 = vunpack.c.l.b16 %v26
  %v318 = vunpack.c.l.b16 %v27
  %v319 = vunpack.c.l.b16 %v28
  %v320 = vunpack.c.l.b16 %v29
  %v321 = vunpack.c.l.b16 %v30
  %v322 = vunpack.c.l.b16 %v31
  %v323 = vunpack.c.l.b16 %v32
  %v324 = vunpack.c.l.b16 %v33
  %v325 = vunpack.c.l.b16 %v34
  %v326 = vunpack.c.l.b16 %v35
  %v327 = vunpack.c.l.b16 %v36
  %v328 = vunpack.c.l.b16 %v37
  %v329 = vunpack.c.l.b16 %v38
  %v330 = vunpack.c.l.b16 %v39
  %v331 = vunpack.c.l.b16 %v40
  %v332 = vunpack.c.l.b16 %v41
  %v333 = vunpack.c.l.b16 %v42
  %v334 = vunpack.c.l.b16 %v43
  %v335 = vunpack.c.l.b16 %v44
  %v336 = vunpack.c.l.b16 %v45
  %v337 = vunpack.c.l.b16 %v46
  %v338 = vunpack.c.l.b16 %v47
  %v339 = vunpack.c.l.b16 %v48
  %v340 = vunpack.c.l.b16 %v49
  %v341 = vunpack.c.l.b16 %v50
  %v342 = vunpack.c.l.b16 %v51
  %v343 = vunpack.c.l.b16 %v52
  %v344 = vunpack.c.l.b16 %v53
  %v345 = vunpack.c.l.b16 %v54
  %v346 = vunpack.c.l.b16 %v55
  %v347 = vunpack.c.l.b16 %v56
  %v348 = vunpack.c.l.b16 %v57
  %v349 = vunpack.c.l.b16 %v58
  %v350 = vunpack.c.l.b16 %v59
  %v351 = vunpack.c.l.b16 %v60
  %v352 = vunpack.c.l.b16 %v61
  %v353 = vunpack.c.l.b16 %v62
  %v354 = vunpack.c.l.b16 %v63
  %v355 = vunpack.c.l.b16 %v64
  %v356 = vunpack.c.l.b16 %v65
  %v357 = vunpack.c.l.b16 %v66
  %v358 = vunpack.c.l.b16 %v67
  %v359 = vunpack.c.l.b16 %v68
  %v360 = vunpack.c.l.b16 %v69
  %v361 = vunpack.c.l.b16 %v70
  %v362 = vunpack.c.l.b16 %v71
  %v363 = vunpack.c.l.b16 %v72
  %v364 = vunpack.c.l.b16 %v73
  %v365 = vunpack.c.l.b16 %v74
  %v366 = vunpack.c.l.b16 %v75
  %v367 = vunpack.c.l.b16 %v76
  %v368 = vunpack.c.l.b16 %v77
  %v369 = vunpack.c.l.b16 %v78
  %v370 = vunpack.c.l.b16 %v79
  %v371 = vunpack.c.l.b16 %v80
  %v372 = vunpack.c.l.b16 %v81
  %v373 = vunpack.c.l.b16 %v82
  %v374 = vunpack.c.l.b16 %v83
  %v375 = vunpack.c.l.b16 %v84
  %v376 = vunpack.c.l.b16 %v85
  %v377 = vunpack.c.l.b16 %v86
  %v378 = vunpack.c.l.b16 %v87
  %v379 = vunpack.c.l.b16 %v88
  %v380 = vunpack.c.l.b16 %v89
  %v381 = vunpack.c.l.b16 %v90
  %v382 = vunpack.c.l.b16 %v91
  %v383 = vunpack.c.l.b16 %v92
  %v384 = vunpack.c.l.b16 %v93
  %v385 = vunpack.c.l.b16 %v94
  %v386 = vunpack.c.l.b16 %v95
  %v387 = vunpack.c.l.b16 %v96
  %v388 = vunpack.c.l.b16 %v97
  %v389 = vunpack.c.l.b16 %v98
  %v390 = vunpack.c.l.b16 %v99
  %v391 = vunpack.c.l.b16 %v100
  %v392 = vunpack.c.l.b16 %v101
  %v393 = vunpack.c.l.b16 %v102
  %v394 = vunpack.c.l.b16 %v103
  %v395 = vunpack.c.l.b16 %v104
  %v396 = vunpack.c.l.b16 %v105
  %v397 = vunpack.c.l.b16 %v106
  %v398 = vunpack.c.l.b16 %v107
  %v399 = vunpack.c.l.b16 %v108
  %v400 = vunpack.c.l.b16 %v109
  %v401 = vunpack.c.l.b16 %v110
  %v402 = vunpack.c.l.b16 %v111
  %v403 = vunpack.c.l.b16 %v112
  %v404 = vunpack.c.l.b16 %v113
  %v405 = vunpack.c.l.b16 %v114
  %v406 = vunpack.c.l.b16 %v115
  %v407 = vunpack.c.l.b16 %v116
  %v408 = vunpack.c.l.b16 %v117
  %v409 = vunpack.c.l.b16 %v118
  %v410 = vunpack.c.l.b16 %v119
  %v411 = vunpack.c.l.b16 %v120
  %v412 = vunpack.c.l.b16 %v121
  %v413 = vunpack.c.l.b16 %v122
  %v414 = vunpack.c.l.b16 %v123
  %v415 = vunpack.c.l.b16 %v124
  %v416 = vunpack.c.l.b16 %v125
  %v417 = vunpack.c.l.b16 %v126
  %v418 = vunpack.c.l.b16 %v127
  %v419 = vunpack.c.l.b16 %v128
  %v420 = vunpack.c.l.b16 %v129
  %v421 = vunpack.c.l.b16 %v130
  %v422 = vunpack.c.l.b16 %v131
  %v423 = vunpack.c.l.b16 %v132
  %v424 = vunpack.c.l.b16 %v133
  %v425 = vunpack.c.l.b16 %v134
  %v426 = vunpack.c.l.b16 %v135
  %v427 = vunpack.c.l.b16 %v136
  %v428 = vunpack.c.l.b16 %v137
  %v429 = vunpack.c.l.b16 %v138
  %v430 = vunpack.c.l.b16 %v139
  %v431 = vunpack.c.l.b16 %v140
  %v432 = vunpack.c.l.b16 %v141
  %v433 = vunpack.c.l.b16 %v142
  %v434 = vunpack.c.l.b16 %v143
  %v435 = vunpack.c.l.b16 %v144
  %v436 = vunpack.c.l.b16 %v145
  %v437 = vunpack.c.l.b16 %v146
  %v438 = vpack.c.b16 %v311, %v310
  %v439 = vpack.c.b16 %v313, %v312
  %v440 = vpack.c.b16 %v315, %v314
  %v441 = vpack.c.b16 %v317, %v316
  %v442 = vpack.c.b16 %v319, %v318
  %v443 = vpack.c.b16 %v321, %v320
  %v444 = vpack.c.b16 %v323, %v322
  %v445 = vpack.c.b16 %v325, %v324
  %v446 = vpack.c.b16 %v327, %v326
  %v447 = vpack.c.b16 %v329, %v328
  %v448 = vpack.c.b16 %v331, %v330
  %v449 = vpack.c.b16 %v333, %v332
  %v450 = vpack.c.b16 %v335, %v334
  %v451 = vpack.c.b16 %v337, %v336
  %v452 = vpack.c.b16 %v339, %v338
  %v453 = vpack.c.b16 %v341, %v340
  %v454 = vpack.c.b16 %v343, %v342
  %v455 = vpack.c.b16 %v345, %v344
  %v456 = vpack.c.b16 %v347, %v346
  %v457 = vpack.c.b16 %v349, %v348
  %v458 = vpack.c.b16 %v351, %v350
  %v459 = vpack.c.b16 %v353, %v352
  %v460 = vpack.c.b16 %v355, %v354
  %v461 = vpack.c.b16 %v357, %v356
  %v462 = vpack.c.b16 %v359, %v358
  %v463 = vpack.c.b16 %v361, %v360
  %v464 = vpack.c.b16 %v363, %v362
  %v465 = vpack.c.b16 %v365, %v364
  %v466 = vpack.c.b16 %v367, %v366
  %v467 = vpack.c.b16 %v369, %v368
  %v468 = vpack.c.b16 %v371, %v370
  %v469 = vpack.c.b16 %v373, %v372
  %v470 = vpack.c.b16 %v375, %v374
  %v471 = vpack.c.b16 %v377, %v376
  %v472 = vpack.c.b16 %v379, %v378
  %v473 = vpack.c.b16 %v381, %v380
  %v474 = vpack.c.b16 %v383, %v382
  %v475 = vpack.c.b16 %v385, %v384
  %v476 = vpack.c.b16 %v387, %v386
  %v477 = vpack.c.b16 %v389, %v388
  %v478 = vpack.c.b16 %v391, %v390
  %v479 = vpack.c.b16 %v393, %v392
  %v480 = vpack.c.b16 %v395, %v394
  %v481 = vpack.c.b16 %v397, %v396
  %v482 = vpack.c.b16 %v399, %v398
  %v483 = vpack.c.b16 %v401, %v400
  %v484 = vpack.c.b16 %v403, %v402
  %v485 = vpack.c.b16 %v405, %v404
  %v486 = vpack.c.b16 %v407, %v406
  %v487 = vpack.c.b16 %v409, %v408
  %v488 = vpack.c.b16 %v411, %v410
  %v489 = vpack.c.b16 %v413, %v412
  %v490 = vpack.c.b16 %v415, %v414
  %v491 = vpack.c.b16 %v417, %v416
  %v492 = vpack.c.b16 %v419, %v418
  %v493 = vpack.c.b16 %v421, %v420
  %v494 = vpack.c.b16 %v423, %v422
  %v495 = vpack.c.b16 %v425, %v424
  %v496 = vpack.c.b16 %v427, %v426
  %v497 = vpack.c.b16 %v429, %v428
  %v498 = vpack.c.b16 %v431, %v430
  %v499 = vpack.c.b16 %v433, %v432
  %v500 = vpack.c.b16 %v435, %v434
  %v501 = vpack.c.b16 %v437, %v436
  %566 = vmatprep.subr.bf16.mxu0 0
  %567 = vmatpush1.bf16.msra.mxu0 %v445
  %568 = vmatprep.subr.bf16.mxu0 0
  %569 = vmatpush1.bf16.msra.mxu0 %v444
  %570 = vmatprep.subr.bf16.mxu0 0
  %571 = vmatpush1.bf16.msra.mxu0 %v443
  %572 = vmatprep.subr.bf16.mxu0 0
  %573 = vmatpush1.bf16.msra.mxu0 %v442
  %574 = vmatprep.subr.bf16.mxu0 0
  %575 = vmatpush1.bf16.msra.mxu0 %v441
  %576 = vmatprep.subr.bf16.mxu0 0
  %577 = vmatpush1.bf16.msra.mxu0 %v440
  %578 = vmatprep.subr.bf16.mxu0 0
  %579 = vmatpush1.bf16.msra.mxu0 %v439
  %580 = vmatprep.subr.bf16.mxu0 0
  %581 = vmatpush1.bf16.msra.mxu0 %v438
  %582 = vmatprep.subr.bf16.mxu0 0
  %583 = vmatpush2.bf16.msra.mxu0 %v453
  %584 = vmatprep.subr.bf16.mxu0 0
  %585 = vmatpush2.bf16.msra.mxu0 %v452
  %586 = vmatprep.subr.bf16.mxu0 0
  %587 = vmatpush2.bf16.msra.mxu0 %v451
  %588 = vmatprep.subr.bf16.mxu0 0
  %589 = vmatpush2.bf16.msra.mxu0 %v450
  %590 = vmatprep.subr.bf16.mxu0 0
  %591 = vmatpush2.bf16.msra.mxu0 %v449
  %592 = vmatprep.subr.bf16.mxu0 0
  %593 = vmatpush2.bf16.msra.mxu0 %v448
  %594 = vmatprep.subr.bf16.mxu0 0
  %595 = vmatpush2.bf16.msra.mxu0 %v447
  %596 = vmatprep.subr.bf16.mxu0 0
  %597 = vmatpush2.bf16.msra.mxu0 %v446
  %598 = vmatprep.mubr.bf16.mxu0 %v167
  %599 = vmatmul.mubr.bf16.gmra.mxu0 %v166
  %v600 = vpop.f32.mrf.mxu0
  %v601 = vadd.f32 %v152, %v600
  %v602 = vpop.f32.mrf.mxu0
  %v603 = vpop.f32.mrf.mxu0
  %v604 = vpop.f32.mrf.mxu0
  %605 = vdwg.mxu0
  %606 = vmatprep.subr.bf16.mxu0 0
  %607 = vmatpush1.bf16.msra.mxu0 %v461
  %608 = vmatprep.subr.bf16.mxu0 0
  %609 = vmatpush1.bf16.msra.mxu0 %v460
  %610 = vmatprep.subr.bf16.mxu0 0
  %611 = vmatpush1.bf16.msra.mxu0 %v459
  %612 = vmatprep.subr.bf16.mxu0 0
  %613 = vmatpush1.bf16.msra.mxu0 %v458
  %614 = vmatprep.subr.bf16.mxu0 0
  %615 = vmatpush1.bf16.msra.mxu0 %v457
  %616 = vmatprep.subr.bf16.mxu0 0
  %617 = vmatpush1.bf16.msra.mxu0 %v456
  %618 = vmatprep.subr.bf16.mxu0 0
  %619 = vmatpush1.bf16.msra.mxu0 %v455
  %620 = vmatprep.subr.bf16.mxu0 0
  %621 = vmatpush1.bf16.msra.mxu0 %v454
  %622 = vmatprep.subr.bf16.mxu0 0
  %623 = vmatpush2.bf16.msra.mxu0 %v469
  %624 = vmatprep.subr.bf16.mxu0 0
  %625 = vmatpush2.bf16.msra.mxu0 %v468
  %626 = vmatprep.subr.bf16.mxu0 0
  %627 = vmatpush2.bf16.msra.mxu0 %v467
  %628 = vmatprep.subr.bf16.mxu0 0
  %629 = vmatpush2.bf16.msra.mxu0 %v466
  %630 = vmatprep.subr.bf16.mxu0 0
  %631 = vmatpush2.bf16.msra.mxu0 %v465
  %632 = vmatprep.subr.bf16.mxu0 0
  %633 = vmatpush2.bf16.msra.mxu0 %v464
  %634 = vmatprep.subr.bf16.mxu0 0
  %635 = vmatpush2.bf16.msra.mxu0 %v463
  %636 = vmatprep.subr.bf16.mxu0 0
  %637 = vmatpush2.bf16.msra.mxu0 %v462
  %638 = vmatprep.mubr.bf16.mxu0 %v169
  %639 = vmatmul.mubr.bf16.gmra.mxu0 %v168
  %v640 = vpop.f32.mrf.mxu0
  %v641 = vadd.f32 %v601, %v640
  %v642 = vpop.f32.mrf.mxu0
  %v643 = vpop.f32.mrf.mxu0
  %v644 = vpop.f32.mrf.mxu0
  %645 = vdwg.mxu0
  %646 = vmatprep.subr.bf16.mxu0 0
  %647 = vmatpush1.bf16.msra.mxu0 %v477
  %648 = vmatprep.subr.bf16.mxu0 0
  %649 = vmatpush1.bf16.msra.mxu0 %v476
  %650 = vmatprep.subr.bf16.mxu0 0
  %651 = vmatpush1.bf16.msra.mxu0 %v475
  %652 = vmatprep.subr.bf16.mxu0 0
  %653 = vmatpush1.bf16.msra.mxu0 %v474
  %654 = vmatprep.subr.bf16.mxu0 0
  %655 = vmatpush1.bf16.msra.mxu0 %v473
  %656 = vmatprep.subr.bf16.mxu0 0
  %657 = vmatpush1.bf16.msra.mxu0 %v472
  %658 = vmatprep.subr.bf16.mxu0 0
  %659 = vmatpush1.bf16.msra.mxu0 %v471
  %660 = vmatprep.subr.bf16.mxu0 0
  %661 = vmatpush1.bf16.msra.mxu0 %v470
  %662 = vmatprep.subr.bf16.mxu0 0
  %663 = vmatpush2.bf16.msra.mxu0 %v485
  %664 = vmatprep.subr.bf16.mxu0 0
  %665 = vmatpush2.bf16.msra.mxu0 %v484
  %666 = vmatprep.subr.bf16.mxu0 0
  %667 = vmatpush2.bf16.msra.mxu0 %v483
  %668 = vmatprep.subr.bf16.mxu0 0
  %669 = vmatpush2.bf16.msra.mxu0 %v482
  %670 = vmatprep.subr.bf16.mxu0 0
  %671 = vmatpush2.bf16.msra.mxu0 %v481
  %672 = vmatprep.subr.bf16.mxu0 0
  %673 = vmatpush2.bf16.msra.mxu0 %v480
  %674 = vmatprep.subr.bf16.mxu0 0
  %675 = vmatpush2.bf16.msra.mxu0 %v479
  %676 = vmatprep.subr.bf16.mxu0 0
  %677 = vmatpush2.bf16.msra.mxu0 %v478
  %678 = vmatprep.mubr.bf16.mxu0 %v171
  %679 = vmatmul.mubr.bf16.gmra.mxu0 %v170
  %v680 = vpop.f32.mrf.mxu0
  %v681 = vadd.f32 %v641, %v680
  %v682 = vpop.f32.mrf.mxu0
  %v683 = vpop.f32.mrf.mxu0
  %v684 = vpop.f32.mrf.mxu0
  %685 = vdwg.mxu0
  %686 = vmatprep.subr.bf16.mxu0 0
  %687 = vmatpush1.bf16.msra.mxu0 %v493
  %688 = vmatprep.subr.bf16.mxu0 0
  %689 = vmatpush1.bf16.msra.mxu0 %v492
  %690 = vmatprep.subr.bf16.mxu0 0
  %691 = vmatpush1.bf16.msra.mxu0 %v491
  %692 = vmatprep.subr.bf16.mxu0 0
  %693 = vmatpush1.bf16.msra.mxu0 %v490
  %694 = vmatprep.subr.bf16.mxu0 0
  %695 = vmatpush1.bf16.msra.mxu0 %v489
  %696 = vmatprep.subr.bf16.mxu0 0
  %697 = vmatpush1.bf16.msra.mxu0 %v488
  %698 = vmatprep.subr.bf16.mxu0 0
  %699 = vmatpush1.bf16.msra.mxu0 %v487
  %700 = vmatprep.subr.bf16.mxu0 0
  %701 = vmatpush1.bf16.msra.mxu0 %v486
  %702 = vmatprep.subr.bf16.mxu0 0
  %703 = vmatpush2.bf16.msra.mxu0 %v501
  %704 = vmatprep.subr.bf16.mxu0 0
  %705 = vmatpush2.bf16.msra.mxu0 %v500
  %706 = vmatprep.subr.bf16.mxu0 0
  %707 = vmatpush2.bf16.msra.mxu0 %v499
  %708 = vmatprep.subr.bf16.mxu0 0
  %709 = vmatpush2.bf16.msra.mxu0 %v498
  %710 = vmatprep.subr.bf16.mxu0 0
  %711 = vmatpush2.bf16.msra.mxu0 %v497
  %712 = vmatprep.subr.bf16.mxu0 0
  %713 = vmatpush2.bf16.msra.mxu0 %v496
  %714 = vmatprep.subr.bf16.mxu0 0
  %715 = vmatpush2.bf16.msra.mxu0 %v495
  %716 = vmatprep.subr.bf16.mxu0 0
  %717 = vmatpush2.bf16.msra.mxu0 %v494
  %718 = vmatprep.mubr.bf16.mxu0 %v173
  %719 = vmatmul.mubr.bf16.gmra.mxu0 %v172
  %v720 = vpop.f32.mrf.mxu0
  %v721 = vadd.f32 %v681, %v720
  %v722 = vpop.f32.mrf.mxu0
  %v723 = vpop.f32.mrf.mxu0
  %v724 = vpop.f32.mrf.mxu0
  %725 = vdwg.mxu0
  %v726 = vmax.f32 %v721, 0.0
  %v727 = vpack.c.bf16 %v726, %v726
  %vm728 = vcmask 519168
  %729 = vst.msk [vmem:[%s3] sm:$0xf] %vm728, %v727
  // Predicated region
  $region14: #{dqn_lstm_forward.7} parent=0 // pred_check
    _
  $region15: #{dqn_lstm_forward.7} parent=0 // pred_check_branch
    %731 = sbr.rel (0) target = $region17
  $region16: #{dqn_lstm_forward.7} parent=0 // pred_region
    _
  $region17: #{dqn_lstm_forward.7} parent=0 // pred_fallthru
    _
  // Predicated region
  $region18: #{dqn_lstm_forward.7} parent=0 // pred_check
    _
  $region19: #{dqn_lstm_forward.7} parent=0 // pred_check_branch
    %733 = sbr.rel (0) target = $region21
  $region20: #{dqn_lstm_forward.7} parent=0 // pred_region
    _
  $region21: #{dqn_lstm_forward.7} parent=0 // pred_fallthru
    _

// kernel: dqn_lstm_forward.8
$region0: #{dqn_lstm_forward.8}
  #allocation0 [shape = 'u32[]', space=smem, size = 0x4, offset = 0x4, fixed_abs, tag = 'smem constant byte address 0x4 - core index']
  #allocation1 [shape = 'u32[144,128]{1,0:T(1,128)}', space=vmem, size = 0x12000, scoped, tag = 'internal scratch']
  %s0 = inlined_call_operand.vmem [shape: bf16[8,64], index: 0, kind: input, shape index: {}]
  %s1 = inlined_call_operand.vmem [shape: bf16[64,128], index: 1, kind: input, shape index: {}]
  %s2 = inlined_call_operand.vmem [shape: f32[1,128], index: 2, kind: input, shape index: {}]
  %s3 = inlined_call_operand.vmem [shape: f32[8,128], index: 3, kind: output, shape index: {}]
  %s4 = sld [smem:[#allocation0]]
  $region22: #{dqn_lstm_forward.8} parent=0
    _
  %s6 = ssub.s32 1, %s4
  %s7 = scalar_select 0, %s6, %s4
  // Predicated region
  $region2: #{dqn_lstm_forward.8} parent=0 // pred_check
    _
  $region3: #{dqn_lstm_forward.8} parent=0 // pred_check_branch
    %9 = sbr.rel (0) target = $region5
  $region4: #{dqn_lstm_forward.8} parent=0 // pred_region
    _
  $region5: #{dqn_lstm_forward.8} parent=0 // pred_fallthru
    _
  // Predicated region
  $region6: #{dqn_lstm_forward.8} parent=0 // pred_check
    _
  $region7: #{dqn_lstm_forward.8} parent=0 // pred_check_branch
    %11 = sbr.rel (0) target = $region9
  $region8: #{dqn_lstm_forward.8} parent=0 // pred_region
    _
  $region9: #{dqn_lstm_forward.8} parent=0 // pred_fallthru
    _
  // Predicated region
  $region10: #{dqn_lstm_forward.8} parent=0 // pred_check
    _
  $region11: #{dqn_lstm_forward.8} parent=0 // pred_check_branch
    %13 = sbr.rel (0) target = $region13
  $region12: #{dqn_lstm_forward.8} parent=0 // pred_region
    _
  $region13: #{dqn_lstm_forward.8} parent=0 // pred_fallthru
    _
  %v15 = vld [vmem:[%s0] sm:$0xf]
  %v16 = vld [vmem:[%s1] sm:$0xf]
  %v17 = vld [vmem:[%s1 + $0x4] sm:$0xf]
  %v18 = vld [vmem:[%s1 + $0x8] sm:$0xf]
  %v19 = vld [vmem:[%s1 + $0xc] sm:$0xf]
  %v20 = vld [vmem:[%s1 + $0x10] sm:$0xf]
  %v21 = vld [vmem:[%s1 + $0x14] sm:$0xf]
  %v22 = vld [vmem:[%s1 + $0x18] sm:$0xf]
  %v23 = vld [vmem:[%s1 + $0x1c] sm:$0xf]
  %v24 = vld [vmem:[%s2] sm:$0x1]
  %v26 = vlaneseq
  %v27 = vshrl.u32 %v26, 7
  %v28 = vsub.s32 0, %v27
  %v29 = vrot.slane %v24, %v28
  %v39 = vunpack.c.l.b16 %v16
  %v40 = vunpack.c.l.b16 %v17
  %v41 = vunpack.c.l.b16 %v18
  %v42 = vunpack.c.l.b16 %v19
  %v43 = vunpack.c.l.b16 %v20
  %v44 = vunpack.c.l.b16 %v21
  %v45 = vunpack.c.l.b16 %v22
  %v46 = vunpack.c.l.b16 %v23
  %v47 = vpack.c.b16 %v40, %v39
  %v48 = vpack.c.b16 %v42, %v41
  %v49 = vpack.c.b16 %v44, %v43
  %v50 = vpack.c.b16 %v46, %v45
  %vm55 = vcmask 523264
  %v57 = vsel %vm55, %v15, 0
  %59 = vmatprep.subr.bf16.mxu0 0
  %60 = vmatpush1.bf16.msra.mxu0 0
  %61 = vmatprep.subr.bf16.mxu0 0
  %62 = vmatpush1.bf16.msra.mxu0 0
  %63 = vmatprep.subr.bf16.mxu0 0
  %64 = vmatpush1.bf16.msra.mxu0 0
  %65 = vmatprep.subr.bf16.mxu0 0
  %66 = vmatpush1.bf16.msra.mxu0 0
  %67 = vmatprep.subr.bf16.mxu0 0
  %68 = vmatpush1.bf16.msra.mxu0 %v50
  %69 = vmatprep.subr.bf16.mxu0 0
  %70 = vmatpush1.bf16.msra.mxu0 %v49
  %71 = vmatprep.subr.bf16.mxu0 0
  %72 = vmatpush1.bf16.msra.mxu0 %v48
  %73 = vmatprep.subr.bf16.mxu0 0
  %74 = vmatpush1.bf16.msra.mxu0 %v47
  %75 = vmatprep.subr.bf16.mxu0 0
  %76 = vmatpush2.bf16.msra.mxu0 0
  %77 = vmatprep.subr.bf16.mxu0 0
  %78 = vmatpush2.bf16.msra.mxu0 0
  %79 = vmatprep.subr.bf16.mxu0 0
  %80 = vmatpush2.bf16.msra.mxu0 0
  %81 = vmatprep.subr.bf16.mxu0 0
  %82 = vmatpush2.bf16.msra.mxu0 0
  %83 = vmatprep.subr.bf16.mxu0 0
  %84 = vmatpush2.bf16.msra.mxu0 0
  %85 = vmatprep.subr.bf16.mxu0 0
  %86 = vmatpush2.bf16.msra.mxu0 0
  %87 = vmatprep.subr.bf16.mxu0 0
  %88 = vmatpush2.bf16.msra.mxu0 0
  %89 = vmatprep.subr.bf16.mxu0 0
  %90 = vmatpush2.bf16.msra.mxu0 0
  %91 = vmatprep.mubr.bf16.mxu0 0
  %92 = vmatmul.mubr.bf16.gmra.mxu0 %v57
  %v93 = vpop.f32.mrf.mxu0
  %v94 = vadd.f32 %v29, %v93
  %v95 = vpop.f32.mrf.mxu0
  %v96 = vpop.f32.mrf.mxu0
  %v97 = vpop.f32.mrf.mxu0
  %98 = vdwg.mxu0
  %99 = vst [vmem:[%s3] sm:$0xff] %v94
  // Predicated region
  $region14: #{dqn_lstm_forward.8} parent=0 // pred_check
    _
  $region15: #{dqn_lstm_forward.8} parent=0 // pred_check_branch
    %101 = sbr.rel (0) target = $region17
  $region16: #{dqn_lstm_forward.8} parent=0 // pred_region
    _
  $region17: #{dqn_lstm_forward.8} parent=0 // pred_fallthru
    _
  // Predicated region
  $region18: #{dqn_lstm_forward.8} parent=0 // pred_check
    _
  $region19: #{dqn_lstm_forward.8} parent=0 // pred_check_branch
    %103 = sbr.rel (0) target = $region21
  $region20: #{dqn_lstm_forward.8} parent=0 // pred_region
    _
  $region21: #{dqn_lstm_forward.8} parent=0 // pred_fallthru
    _

// kernel: dqn_lstm_forward.9
$region0: #{dqn_lstm_forward.9}
  #allocation0 [shape = 'u32[]', space=smem, size = 0x4, offset = 0x4, fixed_abs, tag = 'smem constant byte address 0x4 - core index']
  #allocation1 [shape = 'u32[144,128]{1,0:T(1,128)}', space=vmem, size = 0x12000, scoped, tag = 'internal scratch']
  %s0 = inlined_call_operand.vmem [shape: f32[4,8,128], index: 0, kind: input, shape index: {}]
  %s1 = inlined_call_operand.vmem [shape: bf16[32,128], index: 1, kind: input, shape index: {}]
  %s2 = inlined_call_operand.vmem [shape: f32[8,32], index: 2, kind: input, shape index: {}]
  %s3 = inlined_call_operand.vmem [shape: f32[8,32], index: 3, kind: input, shape index: {}]
  %s4 = inlined_call_operand.vmem [shape: bf16[32,128], index: 4, kind: input, shape index: {}]
  %s5 = inlined_call_operand.vmem [shape: f32[1,128], index: 5, kind: input, shape index: {}]
  %s6 = inlined_call_operand.vmem [shape: f32[4,8,128], index: 6, kind: output, shape index: {0}]
  %s7 = inlined_call_operand.vmem [shape: f32[8,32], index: 7, kind: output, shape index: {1}]
  %s8 = inlined_call_operand.vmem [shape: f32[8,32], index: 8, kind: output, shape index: {2}]
  %9 = xla_tuple %s6, %s7, %s8
  %s10 = sld [smem:[#allocation0]]
  $region50: #{dqn_lstm_forward.9} parent=0
    _
  %s12 = ssub.s32 1, %s10
  %s13 = scalar_select 0, %s12, %s10
  // Predicated region
  $region2: #{dqn_lstm_forward.9} parent=0 // pred_check
    _
  $region3: #{dqn_lstm_forward.9} parent=0 // pred_check_branch
    %15 = sbr.rel (0) target = $region5
  $region4: #{dqn_lstm_forward.9} parent=0 // pred_region
    _
  $region5: #{dqn_lstm_forward.9} parent=0 // pred_fallthru
    _
  // Predicated region
  $region6: #{dqn_lstm_forward.9} parent=0 // pred_check
    _
  $region7: #{dqn_lstm_forward.9} parent=0 // pred_check_branch
    %17 = sbr.rel (0) target = $region9
  $region8: #{dqn_lstm_forward.9} parent=0 // pred_region
    _
  $region9: #{dqn_lstm_forward.9} parent=0 // pred_fallthru
    _
  // Predicated region
  $region10: #{dqn_lstm_forward.9} parent=0 // pred_check
    _
  $region11: #{dqn_lstm_forward.9} parent=0 // pred_check_branch
    %19 = sbr.rel (0) target = $region13
  $region12: #{dqn_lstm_forward.9} parent=0 // pred_region
    _
  $region13: #{dqn_lstm_forward.9} parent=0 // pred_fallthru
    _
  // Predicated region
  $region14: #{dqn_lstm_forward.9} parent=0 // pred_check
    _
  $region15: #{dqn_lstm_forward.9} parent=0 // pred_check_branch
    %21 = sbr.rel (0) target = $region17
  $region16: #{dqn_lstm_forward.9} parent=0 // pred_region
    _
  $region17: #{dqn_lstm_forward.9} parent=0 // pred_fallthru
    _
  // Predicated region
  $region18: #{dqn_lstm_forward.9} parent=0 // pred_check
    _
  $region19: #{dqn_lstm_forward.9} parent=0 // pred_check_branch
    %23 = sbr.rel (0) target = $region21
  $region20: #{dqn_lstm_forward.9} parent=0 // pred_region
    _
  $region21: #{dqn_lstm_forward.9} parent=0 // pred_fallthru
    _
  // Predicated region
  $region22: #{dqn_lstm_forward.9} parent=0 // pred_check
    _
  $region23: #{dqn_lstm_forward.9} parent=0 // pred_check_branch
    %25 = sbr.rel (0) target = $region25
  $region24: #{dqn_lstm_forward.9} parent=0 // pred_region
    _
  $region25: #{dqn_lstm_forward.9} parent=0 // pred_fallthru
    _
  %v27 = vld [vmem:[%s1] sm:$0xf]
  %v28 = vld [vmem:[%s1 + $0x4] sm:$0xf]
  %v29 = vld [vmem:[%s1 + $0x8] sm:$0xf]
  %v30 = vld [vmem:[%s1 + $0xc] sm:$0xf]
  %v31 = vld [vmem:[%s4] sm:$0xf]
  %v32 = vld [vmem:[%s4 + $0x4] sm:$0xf]
  %v33 = vld [vmem:[%s4 + $0x8] sm:$0xf]
  %v34 = vld [vmem:[%s4 + $0xc] sm:$0xf]
  %v35 = vld [vmem:[%s5] sm:$0x1]
  %v36 = vld [vmem:[%s2] sm:$0xff]
  %v37 = vld [vmem:[%s3] sm:$0xff]
  %v38 = vld [vmem:[%s0] sm:$0xff]
  %v39 = vpack.c.bf16 %v36, %v36
  %v44 = vunpack.c.l.b16 %v27
  %v45 = vunpack.c.l.b16 %v28
  %v46 = vunpack.c.l.b16 %v29
  %v47 = vunpack.c.l.b16 %v30
  %v48 = vpack.c.b16 %v45, %v44
  %v49 = vpack.c.b16 %v47, %v46
  %vm52 = vcmask 261120
  %v54 = vsel %vm52, %v39, 0
  %56 = vmatprep.subr.bf16.mxu0 0
  %57 = vmatpush1.bf16.msra.mxu0 0
  %58 = vmatprep.subr.bf16.mxu0 0
  %59 = vmatpush1.bf16.msra.mxu0 0
  %60 = vmatprep.subr.bf16.mxu0 0
  %61 = vmatpush1.bf16.msra.mxu0 0
  %62 = vmatprep.subr.bf16.mxu0 0
  %63 = vmatpush1.bf16.msra.mxu0 0
  %64 = vmatprep.subr.bf16.mxu0 0
  %65 = vmatpush1.bf16.msra.mxu0 0
  %66 = vmatprep.subr.bf16.mxu0 0
  %67 = vmatpush1.bf16.msra.mxu0 0
  %68 = vmatprep.subr.bf16.mxu0 0
  %69 = vmatpush1.bf16.msra.mxu0 %v49
  %70 = vmatprep.subr.bf16.mxu0 0
  %71 = vmatpush1.bf16.msra.mxu0 %v48
  %72 = vmatprep.subr.bf16.mxu0 0
  %73 = vmatpush2.bf16.msra.mxu0 0
  %74 = vmatprep.subr.bf16.mxu0 0
  %75 = vmatpush2.bf16.msra.mxu0 0
  %76 = vmatprep.subr.bf16.mxu0 0
  %77 = vmatpush2.bf16.msra.mxu0 0
  %78 = vmatprep.subr.bf16.mxu0 0
  %79 = vmatpush2.bf16.msra.mxu0 0
  %80 = vmatprep.subr.bf16.mxu0 0
  %81 = vmatpush2.bf16.msra.mxu0 0
  %82 = vmatprep.subr.bf16.mxu0 0
  %83 = vmatpush2.bf16.msra.mxu0 0
  %84 = vmatprep.subr.bf16.mxu0 0
  %85 = vmatpush2.bf16.msra.mxu0 0
  %86 = vmatprep.subr.bf16.mxu0 0
  %87 = vmatpush2.bf16.msra.mxu0 0
  %88 = vmatprep.mubr.bf16.mxu0 0
  %89 = vmatmul.mubr.bf16.gmra.mxu0 %v54
  %v90 = vpop.f32.mrf.mxu0
  %v91 = vadd.f32 %v38, %v90
  %v92 = vpop.f32.mrf.mxu0
  %v93 = vpop.f32.mrf.mxu0
  %v94 = vpop.f32.mrf.mxu0
  %95 = vdwg.mxu0
  %v96 = vxor.u32 %v91, 2147483648
  %v97 = vmul.f32 %v96, 1.442695
  %v98 = vpow.pop %v97
  %v99 = vadd.f32 %v98, 1.0
  %v100 = vrcp.pop %v99
  %v101 = vmul.f32 1.0, %v100
  %v102 = vtanh.pop %v91
  %104 = vrot.lane.b32.xlu0 %v37, 32
  %v105 = vpop.permute.xlu0 %104
  %v107 = vmul.f32 %v101, %v105
  %109 = vrot.lane.b32.xlu0 %v102, 32
  %v110 = vpop.permute.xlu0 %109
  %v112 = vmul.f32 %v101, %v110
  %114 = vrot.lane.b32.xlu0 %v112, 32
  %v115 = vpop.permute.xlu0 %114
  %v117 = vadd.f32 %v107, %v115
  %v118 = vtanh.pop %v117
  %120 = vrot.lane.b32.xlu0 %v118, 32
  %v121 = vpop.permute.xlu0 %120
  %v123 = vmul.f32 %v101, %v121
  %v124 = vpack.c.bf16 %v123, %v123
  %v126 = vlaneseq
  %v127 = vshrl.u32 %v126, 7
  %v128 = vsub.s32 0, %v127
  %v129 = vrot.slane %v35, %v128
  %132 = vrot.lane.b32.xlu0 %v124, 64
  %v133 = vpop.permute.xlu0 %132
  %v138 = vunpack.c.l.b16 %v31
  %v139 = vunpack.c.l.b16 %v32
  %v140 = vunpack.c.l.b16 %v33
  %v141 = vunpack.c.l.b16 %v34
  %v142 = vpack.c.b16 %v139, %v138
  %v143 = vpack.c.b16 %v141, %v140
  %v147 = vsel %vm52, %v133, 0
  %149 = vmatprep.subr.bf16.mxu0 0
  %150 = vmatpush1.bf16.msra.mxu0 0
  %151 = vmatprep.subr.bf16.mxu0 0
  %152 = vmatpush1.bf16.msra.mxu0 0
  %153 = vmatprep.subr.bf16.mxu0 0
  %154 = vmatpush1.bf16.msra.mxu0 0
  %155 = vmatprep.subr.bf16.mxu0 0
  %156 = vmatpush1.bf16.msra.mxu0 0
  %157 = vmatprep.subr.bf16.mxu0 0
  %158 = vmatpush1.bf16.msra.mxu0 0
  %159 = vmatprep.subr.bf16.mxu0 0
  %160 = vmatpush1.bf16.msra.mxu0 0
  %161 = vmatprep.subr.bf16.mxu0 0
  %162 = vmatpush1.bf16.msra.mxu0 %v143
  %163 = vmatprep.subr.bf16.mxu0 0
  %164 = vmatpush1.bf16.msra.mxu0 %v142
  %165 = vmatprep.subr.bf16.mxu0 0
  %166 = vmatpush2.bf16.msra.mxu0 0
  %167 = vmatprep.subr.bf16.mxu0 0
  %168 = vmatpush2.bf16.msra.mxu0 0
  %169 = vmatprep.subr.bf16.mxu0 0
  %170 = vmatpush2.bf16.msra.mxu0 0
  %171 = vmatprep.subr.bf16.mxu0 0
  %172 = vmatpush2.bf16.msra.mxu0 0
  %173 = vmatprep.subr.bf16.mxu0 0
  %174 = vmatpush2.bf16.msra.mxu0 0
  %175 = vmatprep.subr.bf16.mxu0 0
  %176 = vmatpush2.bf16.msra.mxu0 0
  %177 = vmatprep.subr.bf16.mxu0 0
  %178 = vmatpush2.bf16.msra.mxu0 0
  %179 = vmatprep.subr.bf16.mxu0 0
  %180 = vmatpush2.bf16.msra.mxu0 0
  %181 = vmatprep.mubr.bf16.mxu0 0
  %182 = vmatmul.mubr.bf16.gmra.mxu0 %v147
  %v183 = vpop.f32.mrf.mxu0
  %v184 = vadd.f32 %v129, %v183
  %v185 = vpop.f32.mrf.mxu0
  %v186 = vpop.f32.mrf.mxu0
  %v187 = vpop.f32.mrf.mxu0
  %188 = vdwg.mxu0
  %189 = vst [vmem:[%s6] sm:$0xff] %v184
  %s190 = scalar_lea.vmem %s0, 8
  %v191 = vld [vmem:[%s190] sm:$0xff]
  %192 = vmatprep.subr.bf16.mxu0 0
  %193 = vmatpush1.bf16.msra.mxu0 0
  %194 = vmatprep.subr.bf16.mxu0 0
  %195 = vmatpush1.bf16.msra.mxu0 0
  %196 = vmatprep.subr.bf16.mxu0 0
  %197 = vmatpush1.bf16.msra.mxu0 0
  %198 = vmatprep.subr.bf16.mxu0 0
  %199 = vmatpush1.bf16.msra.mxu0 0
  %200 = vmatprep.subr.bf16.mxu0 0
  %201 = vmatpush1.bf16.msra.mxu0 0
  %202 = vmatprep.subr.bf16.mxu0 0
  %203 = vmatpush1.bf16.msra.mxu0 0
  %204 = vmatprep.subr.bf16.mxu0 0
  %205 = vmatpush1.bf16.msra.mxu0 %v49
  %206 = vmatprep.subr.bf16.mxu0 0
  %207 = vmatpush1.bf16.msra.mxu0 %v48
  %208 = vmatprep.subr.bf16.mxu0 0
  %209 = vmatpush2.bf16.msra.mxu0 0
  %210 = vmatprep.subr.bf16.mxu0 0
  %211 = vmatpush2.bf16.msra.mxu0 0
  %212 = vmatprep.subr.bf16.mxu0 0
  %213 = vmatpush2.bf16.msra.mxu0 0
  %214 = vmatprep.subr.bf16.mxu0 0
  %215 = vmatpush2.bf16.msra.mxu0 0
  %216 = vmatprep.subr.bf16.mxu0 0
  %217 = vmatpush2.bf16.msra.mxu0 0
  %218 = vmatprep.subr.bf16.mxu0 0
  %219 = vmatpush2.bf16.msra.mxu0 0
  %220 = vmatprep.subr.bf16.mxu0 0
  %221 = vmatpush2.bf16.msra.mxu0 0
  %222 = vmatprep.subr.bf16.mxu0 0
  %223 = vmatpush2.bf16.msra.mxu0 0
  %224 = vmatprep.mubr.bf16.mxu0 0
  %225 = vmatmul.mubr.bf16.gmra.mxu0 %v147
  %v226 = vpop.f32.mrf.mxu0
  %v227 = vadd.f32 %v191, %v226
  %v228 = vpop.f32.mrf.mxu0
  %v229 = vpop.f32.mrf.mxu0
  %v230 = vpop.f32.mrf.mxu0
  %231 = vdwg.mxu0
  %v232 = vxor.u32 %v227, 2147483648
  %v233 = vmul.f32 %v232, 1.442695
  %v234 = vpow.pop %v233
  %v235 = vadd.f32 %v234, 1.0
  %v236 = vrcp.pop %v235
  %v237 = vmul.f32 1.0, %v236
  %v238 = vtanh.pop %v227
  %v239 = vmul.f32 %v237, %v117
  %241 = vrot.lane.b32.xlu0 %v238, 32
  %v242 = vpop.permute.xlu0 %241
  %v244 = vmul.f32 %v237, %v242
  %246 = vrot.lane.b32.xlu0 %v244, 32
  %v247 = vpop.permute.xlu0 %246
  %v249 = vadd.f32 %v239, %v247
  %v250 = vtanh.pop %v249
  %252 = vrot.lane.b32.xlu0 %v250, 32
  %v253 = vpop.permute.xlu0 %252
  %v255 = vmul.f32 %v237, %v253
  %v256 = vpack.c.bf16 %v255, %v255
  %258 = vrot.lane.b32.xlu0 %v256, 64
  %v259 = vpop.permute.xlu0 %258
  %v261 = vsel %vm52, %v259, 0
  %263 = vmatprep.subr.bf16.mxu0 0
  %264 = vmatpush1.bf16.msra.mxu0 0
  %265 = vmatprep.subr.bf16.mxu0 0
  %266 = vmatpush1.bf16.msra.mxu0 0
  %267 = vmatprep.subr.bf16.mxu0 0
  %268 = vmatpush1.bf16.msra.mxu0 0
  %269 = vmatprep.subr.bf16.mxu0 0
  %270 = vmatpush1.bf16.msra.mxu0 0
  %271 = vmatprep.subr.bf16.mxu0 0
  %272 = vmatpush1.bf16.msra.mxu0 0
  %273 = vmatprep.subr.bf16.mxu0 0
  %274 = vmatpush1.bf16.msra.mxu0 0
  %275 = vmatprep.subr.bf16.mxu0 0
  %276 = vmatpush1.bf16.msra.mxu0 %v143
  %277 = vmatprep.subr.bf16.mxu0 0
  %278 = vmatpush1.bf16.msra.mxu0 %v142
  %279 = vmatprep.subr.bf16.mxu0 0
  %280 = vmatpush2.bf16.msra.mxu0 0
  %281 = vmatprep.subr.bf16.mxu0 0
  %282 = vmatpush2.bf16.msra.mxu0 0
  %283 = vmatprep.subr.bf16.mxu0 0
  %284 = vmatpush2.bf16.msra.mxu0 0
  %285 = vmatprep.subr.bf16.mxu0 0
  %286 = vmatpush2.bf16.msra.mxu0 0
  %287 = vmatprep.subr.bf16.mxu0 0
  %288 = vmatpush2.bf16.msra.mxu0 0
  %289 = vmatprep.subr.bf16.mxu0 0
  %290 = vmatpush2.bf16.msra.mxu0 0
  %291 = vmatprep.subr.bf16.mxu0 0
  %292 = vmatpush2.bf16.msra.mxu0 0
  %293 = vmatprep.subr.bf16.mxu0 0
  %294 = vmatpush2.bf16.msra.mxu0 0
  %295 = vmatprep.mubr.bf16.mxu0 0
  %296 = vmatmul.mubr.bf16.gmra.mxu0 %v261
  %v297 = vpop.f32.mrf.mxu0
  %v298 = vadd.f32 %v129, %v297
  %v299 = vpop.f32.mrf.mxu0
  %v300 = vpop.f32.mrf.mxu0
  %v301 = vpop.f32.mrf.mxu0
  %302 = vdwg.mxu0
  %s303 = scalar_lea.vmem %s6, 8
  %304 = vst [vmem:[%s303] sm:$0xff] %v298
  %s305 = scalar_lea.vmem %s0, 16
  %v306 = vld [vmem:[%s305] sm:$0xff]
  %307 = vmatprep.subr.bf16.mxu0 0
  %308 = vmatpush1.bf16.msra.mxu0 0
  %309 = vmatprep.subr.bf16.mxu0 0
  %310 = vmatpush1.bf16.msra.mxu0 0
  %311 = vmatprep.subr.bf16.mxu0 0
  %312 = vmatpush1.bf16.msra.mxu0 0
  %313 = vmatprep.subr.bf16.mxu0 0
  %314 = vmatpush1.bf16.msra.mxu0 0
  %315 = vmatprep.subr.bf16.mxu0 0
  %316 = vmatpush1.bf16.msra.mxu0 0
  %317 = vmatprep.subr.bf16.mxu0 0
  %318 = vmatpush1.bf16.msra.mxu0 0
  %319 = vmatprep.subr.bf16.mxu0 0
  %320 = vmatpush1.bf16.msra.mxu0 %v49
  %321 = vmatprep.subr.bf16.mxu0 0
  %322 = vmatpush1.bf16.msra.mxu0 %v48
  %323 = vmatprep.subr.bf16.mxu0 0
  %324 = vmatpush2.bf16.msra.mxu0 0
  %325 = vmatprep.subr.bf16.mxu0 0
  %326 = vmatpush2.bf16.msra.mxu0 0
  %327 = vmatprep.subr.bf16.mxu0 0
  %328 = vmatpush2.bf16.msra.mxu0 0
  %329 = vmatprep.subr.bf16.mxu0 0
  %330 = vmatpush2.bf16.msra.mxu0 0
  %331 = vmatprep.subr.bf16.mxu0 0
  %332 = vmatpush2.bf16.msra.mxu0 0
  %333 = vmatprep.subr.bf16.mxu0 0
  %334 = vmatpush2.bf16.msra.mxu0 0
  %335 = vmatprep.subr.bf16.mxu0 0
  %336 = vmatpush2.bf16.msra.mxu0 0
  %337 = vmatprep.subr.bf16.mxu0 0
  %338 = vmatpush2.bf16.msra.mxu0 0
  %339 = vmatprep.mubr.bf16.mxu0 0
  %340 = vmatmul.mubr.bf16.gmra.mxu0 %v261
  %v341 = vpop.f32.mrf.mxu0
  %v342 = vadd.f32 %v306, %v341
  %v343 = vpop.f32.mrf.mxu0
  %v344 = vpop.f32.mrf.mxu0
  %v345 = vpop.f32.mrf.mxu0
  %346 = vdwg.mxu0
  %v347 = vxor.u32 %v342, 2147483648
  %v348 = vmul.f32 %v347, 1.442695
  %v349 = vpow.pop %v348
  %v350 = vadd.f32 %v349, 1.0
  %v351 = vrcp.pop %v350
  %v352 = vmul.f32 1.0, %v351
  %v353 = vtanh.pop %v342
  %v354 = vmul.f32 %v352, %v249
  %356 = vrot.lane.b32.xlu0 %v353, 32
  %v357 = vpop.permute.xlu0 %356
  %v359 = vmul.f32 %v352, %v357
  %361 = vrot.lane.b32.xlu0 %v359, 32
  %v362 = vpop.permute.xlu0 %361
  %v364 = vadd.f32 %v354, %v362
  %v365 = vtanh.pop %v364
  %367 = vrot.lane.b32.xlu0 %v365, 32
  %v368 = vpop.permute.xlu0 %367
  %v370 = vmul.f32 %v352, %v368
  %v371 = vpack.c.bf16 %v370, %v370
  %373 = vrot.lane.b32.xlu0 %v371, 64
  %v374 = vpop.permute.xlu0 %373
  %v376 = vsel %vm52, %v374, 0
  %378 = vmatprep.subr.bf16.mxu0 0
  %379 = vmatpush1.bf16.msra.mxu0 0
  %380 = vmatprep.subr.bf16.mxu0 0
  %381 = vmatpush1.bf16.msra.mxu0 0
  %382 = vmatprep.subr.bf16.mxu0 0
  %383 = vmatpush1.bf16.msra.mxu0 0
  %384 = vmatprep.subr.bf16.mxu0 0
  %385 = vmatpush1.bf16.msra.mxu0 0
  %386 = vmatprep.subr.bf16.mxu0 0
  %387 = vmatpush1.bf16.msra.mxu0 0
  %388 = vmatprep.subr.bf16.mxu0 0
  %389 = vmatpush1.bf16.msra.mxu0 0
  %390 = vmatprep.subr.bf16.mxu0 0
  %391 = vmatpush1.bf16.msra.mxu0 %v143
  %392 = vmatprep.subr.bf16.mxu0 0
  %393 = vmatpush1.bf16.msra.mxu0 %v142
  %394 = vmatprep.subr.bf16.mxu0 0
  %395 = vmatpush2.bf16.msra.mxu0 0
  %396 = vmatprep.subr.bf16.mxu0 0
  %397 = vmatpush2.bf16.msra.mxu0 0
  %398 = vmatprep.subr.bf16.mxu0 0
  %399 = vmatpush2.bf16.msra.mxu0 0
  %400 = vmatprep.subr.bf16.mxu0 0
  %401 = vmatpush2.bf16.msra.mxu0 0
  %402 = vmatprep.subr.bf16.mxu0 0
  %403 = vmatpush2.bf16.msra.mxu0 0
  %404 = vmatprep.subr.bf16.mxu0 0
  %405 = vmatpush2.bf16.msra.mxu0 0
  %406 = vmatprep.subr.bf16.mxu0 0
  %407 = vmatpush2.bf16.msra.mxu0 0
  %408 = vmatprep.subr.bf16.mxu0 0
  %409 = vmatpush2.bf16.msra.mxu0 0
  %410 = vmatprep.mubr.bf16.mxu0 0
  %411 = vmatmul.mubr.bf16.gmra.mxu0 %v376
  %v412 = vpop.f32.mrf.mxu0
  %v413 = vadd.f32 %v129, %v412
  %v414 = vpop.f32.mrf.mxu0
  %v415 = vpop.f32.mrf.mxu0
  %v416 = vpop.f32.mrf.mxu0
  %417 = vdwg.mxu0
  %s418 = scalar_lea.vmem %s6, 16
  %419 = vst [vmem:[%s418] sm:$0xff] %v413
  %s420 = scalar_lea.vmem %s0, 24
  %v421 = vld [vmem:[%s420] sm:$0xff]
  %422 = vmatprep.subr.bf16.mxu0 0
  %423 = vmatpush1.bf16.msra.mxu0 0
  %424 = vmatprep.subr.bf16.mxu0 0
  %425 = vmatpush1.bf16.msra.mxu0 0
  %426 = vmatprep.subr.bf16.mxu0 0
  %427 = vmatpush1.bf16.msra.mxu0 0
  %428 = vmatprep.subr.bf16.mxu0 0
  %429 = vmatpush1.bf16.msra.mxu0 0
  %430 = vmatprep.subr.bf16.mxu0 0
  %431 = vmatpush1.bf16.msra.mxu0 0
  %432 = vmatprep.subr.bf16.mxu0 0
  %433 = vmatpush1.bf16.msra.mxu0 0
  %434 = vmatprep.subr.bf16.mxu0 0
  %435 = vmatpush1.bf16.msra.mxu0 %v49
  %436 = vmatprep.subr.bf16.mxu0 0
  %437 = vmatpush1.bf16.msra.mxu0 %v48
  %438 = vmatprep.subr.bf16.mxu0 0
  %439 = vmatpush2.bf16.msra.mxu0 0
  %440 = vmatprep.subr.bf16.mxu0 0
  %441 = vmatpush2.bf16.msra.mxu0 0
  %442 = vmatprep.subr.bf16.mxu0 0
  %443 = vmatpush2.bf16.msra.mxu0 0
  %444 = vmatprep.subr.bf16.mxu0 0
  %445 = vmatpush2.bf16.msra.mxu0 0
  %446 = vmatprep.subr.bf16.mxu0 0
  %447 = vmatpush2.bf16.msra.mxu0 0
  %448 = vmatprep.subr.bf16.mxu0 0
  %449 = vmatpush2.bf16.msra.mxu0 0
  %450 = vmatprep.subr.bf16.mxu0 0
  %451 = vmatpush2.bf16.msra.mxu0 0
  %452 = vmatprep.subr.bf16.mxu0 0
  %453 = vmatpush2.bf16.msra.mxu0 0
  %454 = vmatprep.mubr.bf16.mxu0 0
  %455 = vmatmul.mubr.bf16.gmra.mxu0 %v376
  %v456 = vpop.f32.mrf.mxu0
  %v457 = vadd.f32 %v421, %v456
  %v458 = vpop.f32.mrf.mxu0
  %v459 = vpop.f32.mrf.mxu0
  %v460 = vpop.f32.mrf.mxu0
  %461 = vdwg.mxu0
  %v462 = vxor.u32 %v457, 2147483648
  %v463 = vmul.f32 %v462, 1.442695
  %v464 = vpow.pop %v463
  %v465 = vadd.f32 %v464, 1.0
  %v466 = vrcp.pop %v465
  %v467 = vmul.f32 1.0, %v466
  %v468 = vtanh.pop %v457
  %v469 = vmul.f32 %v467, %v364
  %471 = vrot.lane.b32.xlu0 %v468, 32
  %v472 = vpop.permute.xlu0 %471
  %v474 = vmul.f32 %v467, %v472
  %476 = vrot.lane.b32.xlu0 %v474, 32
  %v477 = vpop.permute.xlu0 %476
  %v479 = vadd.f32 %v469, %v477
  %v480 = vtanh.pop %v479
  %482 = vrot.lane.b32.xlu0 %v480, 32
  %v483 = vpop.permute.xlu0 %482
  %v485 = vmul.f32 %v467, %v483
  %v486 = vpack.c.bf16 %v485, %v485
  %488 = vrot.lane.b32.xlu0 %v486, 64
  %v489 = vpop.permute.xlu0 %488
  %v491 = vsel %vm52, %v489, 0
  %493 = vmatprep.subr.bf16.mxu0 0
  %494 = vmatpush1.bf16.msra.mxu0 0
  %495 = vmatprep.subr.bf16.mxu0 0
  %496 = vmatpush1.bf16.msra.mxu0 0
  %497 = vmatprep.subr.bf16.mxu0 0
  %498 = vmatpush1.bf16.msra.mxu0 0
  %499 = vmatprep.subr.bf16.mxu0 0
  %500 = vmatpush1.bf16.msra.mxu0 0
  %501 = vmatprep.subr.bf16.mxu0 0
  %502 = vmatpush1.bf16.msra.mxu0 0
  %503 = vmatprep.subr.bf16.mxu0 0
  %504 = vmatpush1.bf16.msra.mxu0 0
  %505 = vmatprep.subr.bf16.mxu0 0
  %506 = vmatpush1.bf16.msra.mxu0 %v143
  %507 = vmatprep.subr.bf16.mxu0 0
  %508 = vmatpush1.bf16.msra.mxu0 %v142
  %509 = vmatprep.subr.bf16.mxu0 0
  %510 = vmatpush2.bf16.msra.mxu0 0
  %511 = vmatprep.subr.bf16.mxu0 0
  %512 = vmatpush2.bf16.msra.mxu0 0
  %513 = vmatprep.subr.bf16.mxu0 0
  %514 = vmatpush2.bf16.msra.mxu0 0
  %515 = vmatprep.subr.bf16.mxu0 0
  %516 = vmatpush2.bf16.msra.mxu0 0
  %517 = vmatprep.subr.bf16.mxu0 0
  %518 = vmatpush2.bf16.msra.mxu0 0
  %519 = vmatprep.subr.bf16.mxu0 0
  %520 = vmatpush2.bf16.msra.mxu0 0
  %521 = vmatprep.subr.bf16.mxu0 0
  %522 = vmatpush2.bf16.msra.mxu0 0
  %523 = vmatprep.subr.bf16.mxu0 0
  %524 = vmatpush2.bf16.msra.mxu0 0
  %525 = vmatprep.mubr.bf16.mxu0 0
  %526 = vmatmul.mubr.bf16.gmra.mxu0 %v491
  %v527 = vpop.f32.mrf.mxu0
  %v528 = vadd.f32 %v129, %v527
  %v529 = vpop.f32.mrf.mxu0
  %v530 = vpop.f32.mrf.mxu0
  %v531 = vpop.f32.mrf.mxu0
  %532 = vdwg.mxu0
  %s533 = scalar_lea.vmem %s6, 24
  %534 = vst [vmem:[%s533] sm:$0xff] %v528
  %536 = vrot.lane.b32.xlu0 %v485, 64
  %v537 = vpop.permute.xlu0 %536
  %539 = vst.msk [vmem:[%s7] sm:$0xff] %vm52, %v537
  %541 = vrot.lane.b32.xlu0 %v479, 96
  %v542 = vpop.permute.xlu0 %541
  %544 = vst.msk [vmem:[%s8] sm:$0xff] %vm52, %v542
  // Predicated region
  $region26: #{dqn_lstm_forward.9} parent=0 // pred_check
    _
  $region27: #{dqn_lstm_forward.9} parent=0 // pred_check_branch
    %546 = sbr.rel (0) target = $region29
  $region28: #{dqn_lstm_forward.9} parent=0 // pred_region
    _
  $region29: #{dqn_lstm_forward.9} parent=0 // pred_fallthru
    _
  // Predicated region
  $region30: #{dqn_lstm_forward.9} parent=0 // pred_check
    _
  $region31: #{dqn_lstm_forward.9} parent=0 // pred_check_branch
    %548 = sbr.rel (0) target = $region33
  $region32: #{dqn_lstm_forward.9} parent=0 // pred_region
    _
  $region33: #{dqn_lstm_forward.9} parent=0 // pred_fallthru
    _
  // Predicated region
  $region34: #{dqn_lstm_forward.9} parent=0 // pred_check
    _
  $region35: #{dqn_lstm_forward.9} parent=0 // pred_check_branch
    %550 = sbr.rel (0) target = $region37
  $region36: #{dqn_lstm_forward.9} parent=0 // pred_region
    _
  $region37: #{dqn_lstm_forward.9} parent=0 // pred_fallthru
    _
  // Predicated region
  $region38: #{dqn_lstm_forward.9} parent=0 // pred_check
    _
  $region39: #{dqn_lstm_forward.9} parent=0 // pred_check_branch
    %552 = sbr.rel (0) target = $region41
  $region40: #{dqn_lstm_forward.9} parent=0 // pred_region
    _
  $region41: #{dqn_lstm_forward.9} parent=0 // pred_fallthru
    _
  // Predicated region
  $region42: #{dqn_lstm_forward.9} parent=0 // pred_check
    _
  $region43: #{dqn_lstm_forward.9} parent=0 // pred_check_branch
    %554 = sbr.rel (0) target = $region45
  $region44: #{dqn_lstm_forward.9} parent=0 // pred_region
    _
  $region45: #{dqn_lstm_forward.9} parent=0 // pred_fallthru
    _
  // Predicated region
  $region46: #{dqn_lstm_forward.9} parent=0 // pred_check
    _
  $region47: #{dqn_lstm_forward.9} parent=0 // pred_check_branch
    %556 = sbr.rel (0) target = $region49
  $region48: #{dqn_lstm_forward.9} parent=0 // pred_region
    _
  $region49: #{dqn_lstm_forward.9} parent=0 // pred_fallthru
    _

</llo_original>
